<compile_context>
chip_gen: v5e
topology: v5e:2x2
jax: 0.10.0
libtpu: 0.0.40
codegen_flags: <defaults>
</compile_context>

<pallas_src>
import math
from typing import NamedTuple, Optional

import numpy as np
import jax
import jax.numpy as jnp
from jax.experimental import pallas as pl
from jax.experimental.pallas import tpu as pltpu  # noqa: F401  (kept for parity / future tuning)


# ----------------------------- configuration --------------------------------
B = 2            # batch
M = 4            # channels (variates)
SEQ_LEN = 16     # L
PATCH_SIZE = 4
STRIDE = 2
PATCH_NUM = (SEQ_LEN - PATCH_SIZE) // STRIDE + 1          # 7
PRED_LEN = 8
LABEL_LEN = 4
OUTPUT_LEN = PRED_LEN + LABEL_LEN                         # 12
D_MODEL = 32
N_HEAD = 4
N_LAYERS = 2     # configs.gpt_layers
HEAD_DIM = D_MODEL // N_HEAD                              # 8
BM = B * M                                                # 8 sequences
ROWS = PATCH_NUM * BM                                     # 56 (row = n*BM + bm)
SROWS = N_HEAD * ROWS                                     # 224 (head-stacked rows)
OUT_PAD = 128                                             # lane-dense output width
NEG_BIG = -1e30  # finite large negative (avoids -inf intermediates)

# ---- packed-constant buffer layout (all offsets are multiples of 8 sublanes) ----
CW = 128                                                  # const buffer lane width
OFF_MASK = 0                                              # (224, 56) per-head tiled mask bias
OFF_HEADM = OFF_MASK + SROWS                              # (224, 32) per-head 0/1 lane mask
OFF_WPE = OFF_HEADM + SROWS                               # (56, 32)  wpe expanded + b_in folded
OFF_WIN = OFF_WPE + ROWS                                  # (4, 32)   in_layer weight (8 rows slot)
OFF_LAYER0 = OFF_WIN + 8
ROW_WQ, ROW_WK, ROW_WV, ROW_WAP = 0, 32, 64, 96           # each (32, 32)
ROW_WFC = 128                                             # (32, 128)
ROW_WMP = 160                                             # (128, 32)
ROW_BIAS = 288                                            # 16 bias/ln rows (see pack_constants)
LAYER_ROWS = 304
OFF_LNF = OFF_LAYER0 + N_LAYERS * LAYER_ROWS              # row0: lnf_w, row1: lnf_b (8-row slot)
OFF_WVAL = OFF_LNF + 8                                    # (224, 12 padded to 128)
OFF_BVAL = OFF_WVAL + PATCH_NUM * D_MODEL                 # row0: b_val (12 padded to 128)
TOTAL_CONST_ROWS = OFF_BVAL + 8                           # 1360 rows * 128 lanes * 4B ~ 0.7 MiB

# host-side patch gather indices (layout-only)
PATCH_IDX = np.arange(PATCH_NUM)[:, None] * STRIDE + np.arange(PATCH_SIZE)[None, :]   # (7, 4)


class ModelPrediction(NamedTuple):
    value_values: Optional[jnp.ndarray]
    token_values: Optional[jnp.ndarray]
    token_logits: Optional[jnp.ndarray]
    attn_mask_idxs: Optional[jnp.ndarray]


# ------------------------------ shared math ----------------------------------
def _layernorm(x, w, b, eps=1e-5):
    mu = jnp.mean(x, axis=-1, keepdims=True)
    var = jnp.mean(jnp.square(x - mu), axis=-1, keepdims=True)
    return (x - mu) * jax.lax.rsqrt(var + eps) * w + b


def _gelu_new(x):
    # GPT2 "gelu_new"
    return 0.5 * x * (1.0 + jnp.tanh(math.sqrt(2.0 / math.pi)
                                     * (x + 0.044715 * x * x * x)))


# Additive attention mask: rows/cols ordered (patch n)*BM + (sequence bm).
# Attend iff same sequence and key patch <= query patch.
def _make_mask_bias():
    r = np.arange(ROWS)
    same_seq = (r[:, None] % BM) == (r[None, :] % BM)
    causal = (r[None, :] // BM) <= (r[:, None] // BM)
    return np.where(same_seq & causal, 0.0, NEG_BIG).astype(np.float32)


# ------------------------------ Pallas kernel --------------------------------
def gpt4ts_fused_kernel(xt_ref, patches_ref, const_ref, out_ref):
    """Entire GPT4TS forward (normalize -> patch -> GPT2 encoder -> values -> denorm).

    xt:      (BM, L)            raw time series, one sequence per row
    patches: (ROWS, PATCH_SIZE) raw (un-normalized) patches, row = n*BM + bm
    const:   (TOTAL_CONST_ROWS, 128) packed weights/masks (see pack_constants)
    out:     (BM, OUT_PAD)      denormalized predictions in lanes [0:OUTPUT_LEN]
    """
    f32 = jnp.float32

    # ---- per-sequence normalization stats (over time, i.e. lanes) ----
    xt = xt_ref[...]                                           # (8, 16)
    means = jnp.mean(xt, axis=-1, keepdims=True)               # (8, 1)
    xc = xt - means
    var = jnp.mean(xc * xc, axis=-1, keepdims=True)            # unbiased=False
    stdev = jnp.sqrt(var + 1e-5)
    inv_std = pl.reciprocal(stdev, approx=False)               # (8, 1)  EUP

    # broadcast stats to patch rows (row = n*BM + bm -> sequence bm)
    means_r = jnp.concatenate([means] * PATCH_NUM, axis=0)     # (56, 1)
    inv_std_r = jnp.concatenate([inv_std] * PATCH_NUM, axis=0)
    patches = (patches_ref[...] - means_r) * inv_std_r         # (56, 4)

    # ---- in_layer + GPT2 positional embedding (+ b_in folded at pack time) ----
    w_in = const_ref[OFF_WIN:OFF_WIN + PATCH_SIZE, :D_MODEL]   # (4, 32)
    x = jnp.dot(patches, w_in, preferred_element_type=f32)
    x = x + const_ref[OFF_WPE:OFF_WPE + ROWS, :D_MODEL]        # (56, 32)

    mask_bias = const_ref[OFF_MASK:OFF_MASK + SROWS, :ROWS]    # (224, 56), layer-invariant
    head_mask = const_ref[OFF_HEADM:OFF_HEADM + SROWS, :D_MODEL]  # (224, 32)

    for l in range(N_LAYERS):
        base = OFF_LAYER0 + l * LAYER_ROWS
        bb = base + ROW_BIAS
        ln1_w = const_ref[bb + 0:bb + 1, :D_MODEL]
        ln1_b = const_ref[bb + 1:bb + 2, :D_MODEL]
        b_q = const_ref[bb + 2:bb + 3, :D_MODEL]               # pre-scaled by 1/sqrt(hd)
        b_k = const_ref[bb + 3:bb + 4, :D_MODEL]
        b_v = const_ref[bb + 4:bb + 5, :D_MODEL]
        b_ap = const_ref[bb + 5:bb + 6, :D_MODEL]
        ln2_w = const_ref[bb + 6:bb + 7, :D_MODEL]
        ln2_b = const_ref[bb + 7:bb + 8, :D_MODEL]
        b_fc = const_ref[bb + 8:bb + 9, :4 * D_MODEL]
        b_mp = const_ref[bb + 9:bb + 10, :D_MODEL]

        w_q = const_ref[base + ROW_WQ:base + ROW_WQ + D_MODEL, :D_MODEL]      # pre-scaled
        w_k = const_ref[base + ROW_WK:base + ROW_WK + D_MODEL, :D_MODEL]
        w_v = const_ref[base + ROW_WV:base + ROW_WV + D_MODEL, :D_MODEL]
        w_ap = const_ref[base + ROW_WAP:base + ROW_WAP + D_MODEL, :D_MODEL]
        w_fc = const_ref[base + ROW_WFC:base + ROW_WFC + D_MODEL, :4 * D_MODEL]
        w_mp = const_ref[base + ROW_WMP:base + ROW_WMP + 4 * D_MODEL, :D_MODEL]

        # ---- self-attention sub-block (all sequences AND all heads at once) ----
        h = _layernorm(x, ln1_w, ln1_b)                        # (56, 32)
        q = jnp.dot(h, w_q, preferred_element_type=f32) + b_q  # (56, 32), scale folded
        k = jnp.dot(h, w_k, preferred_element_type=f32) + b_k
        v = jnp.dot(h, w_v, preferred_element_type=f32) + b_v

        # head-masked block-diagonal Q: block hh keeps only head-hh lanes, so a single
        # (224,32)x(32,56) dot yields per-head scores stacked along sublanes.
        q_blk = jnp.concatenate([q] * N_HEAD, axis=0) * head_mask             # (224, 32)
        s = jax.lax.dot_general(q_blk, k, (((1,), (1,)), ((), ())),
                                preferred_element_type=f32)                   # (224, 56)
        s = s + mask_bias
        s = s - jnp.max(s, axis=-1, keepdims=True)
        e = jnp.exp(s)
        probs = e * pl.reciprocal(jnp.sum(e, axis=-1, keepdims=True), approx=False)

        # context for all heads in one dot; per-block lane mask then sublane-block sum
        # reconstructs the concatenated per-head context (56, 32).
        ctx_blk = jnp.dot(probs, v, preferred_element_type=f32) * head_mask   # (224, 32)
        ctx = ctx_blk[0:ROWS, :]
        for hh in range(1, N_HEAD):
            ctx = ctx + ctx_blk[hh * ROWS:(hh + 1) * ROWS, :]
        x = x + jnp.dot(ctx, w_ap, preferred_element_type=f32) + b_ap

        # ---- MLP sub-block ----
        h2 = _layernorm(x, ln2_w, ln2_b)
        ff = jnp.dot(h2, w_fc, preferred_element_type=f32) + b_fc             # (56, 128)
        ff = _gelu_new(ff)
        x = x + jnp.dot(ff, w_mp, preferred_element_type=f32) + b_mp

    lnf_w = const_ref[OFF_LNF:OFF_LNF + 1, :D_MODEL]
    lnf_b = const_ref[OFF_LNF + 1:OFF_LNF + 2, :D_MODEL]
    x = _layernorm(x, lnf_w, lnf_b)                            # (56, 32)

    # ---- values_layer: per-patch accumulation (no 224-lane concat), lane-dense out ----
    vals = jnp.broadcast_to(const_ref[OFF_BVAL:OFF_BVAL + 1, :], (BM, OUT_PAD))
    for n in range(PATCH_NUM):
        xn_blk = x[n * BM:(n + 1) * BM, :]                                    # (8, 32)
        w_n = const_ref[OFF_WVAL + n * D_MODEL:OFF_WVAL + (n + 1) * D_MODEL, :]  # (32, 128)
        vals = vals + jnp.dot(xn_blk, w_n, preferred_element_type=f32)

    # ---- denormalize (lanes >= OUTPUT_LEN are padding, discarded on host) ----
    out_ref[...] = vals * stdev + means


# --------------------- pack all weights/masks into one buffer -----------------
def pack_constants(p):
    buf = np.zeros((TOTAL_CONST_ROWS, CW), np.float32)
    scale = 1.0 / math.sqrt(HEAD_DIM)

    # per-head tiled additive mask and per-head lane mask
    mask = _make_mask_bias()                                              # (56, 56)
    buf[OFF_MASK:OFF_MASK + SROWS, :ROWS] = np.tile(mask, (N_HEAD, 1))
    hm = np.zeros((SROWS, D_MODEL), np.float32)
    for hh in range(N_HEAD):
        hm[hh * ROWS:(hh + 1) * ROWS, hh * HEAD_DIM:(hh + 1) * HEAD_DIM] = 1.0
    buf[OFF_HEADM:OFF_HEADM + SROWS, :D_MODEL] = hm

    # expanded positional embedding with in_layer bias folded in
    wpe = np.asarray(p['wpe'], np.float32)                                # (7, 32)
    b_in = np.asarray(p['b_in'], np.float32)                              # (1, 32)
    buf[OFF_WPE:OFF_WPE + ROWS, :D_MODEL] = np.repeat(wpe, BM, axis=0) + b_in
    buf[OFF_WIN:OFF_WIN + PATCH_SIZE, :D_MODEL] = np.asarray(p['w_in'], np.float32)

    for l in range(N_LAYERS):
        base = OFF_LAYER0 + l * LAYER_ROWS
        w_qkv = np.asarray(p['w_qkv'][l], np.float32)                     # (32, 96)
        b_qkv = np.asarray(p['b_qkv'][l], np.float32)                     # (96,)
        buf[base + ROW_WQ:base + ROW_WQ + D_MODEL, :D_MODEL] = w_qkv[:, :D_MODEL] * scale
        buf[base + ROW_WK:base + ROW_WK + D_MODEL, :D_MODEL] = w_qkv[:, D_MODEL:2 * D_MODEL]
        buf[base + ROW_WV:base + ROW_WV + D_MODEL, :D_MODEL] = w_qkv[:, 2 * D_MODEL:]
        buf[base + ROW_WAP:base + ROW_WAP + D_MODEL, :D_MODEL] = np.asarray(p['w_ap'][l], np.float32)
        buf[base + ROW_WFC:base + ROW_WFC + D_MODEL, :4 * D_MODEL] = np.asarray(p['w_fc'][l], np.float32)
        buf[base + ROW_WMP:base + ROW_WMP + 4 * D_MODEL, :D_MODEL] = np.asarray(p['w_mp'][l], np.float32)
        bb = base + ROW_BIAS
        buf[bb + 0, :D_MODEL] = np.asarray(p['ln1_w'][l], np.float32)
        buf[bb + 1, :D_MODEL] = np.asarray(p['ln1_b'][l], np.float32)
        buf[bb + 2, :D_MODEL] = b_qkv[:D_MODEL] * scale
        buf[bb + 3, :D_MODEL] = b_qkv[D_MODEL:2 * D_MODEL]
        buf[bb + 4, :D_MODEL] = b_qkv[2 * D_MODEL:]
        buf[bb + 5, :D_MODEL] = np.asarray(p['b_ap'][l], np.float32)
        buf[bb + 6, :D_MODEL] = np.asarray(p['ln2_w'][l], np.float32)
        buf[bb + 7, :D_MODEL] = np.asarray(p['ln2_b'][l], np.float32)
        buf[bb + 8, :4 * D_MODEL] = np.asarray(p['b_fc'][l], np.float32)
        buf[bb + 9, :D_MODEL] = np.asarray(p['b_mp'][l], np.float32)

    buf[OFF_LNF, :D_MODEL] = np.asarray(p['lnf_w'][0], np.float32)
    buf[OFF_LNF + 1, :D_MODEL] = np.asarray(p['lnf_b'][0], np.float32)
    buf[OFF_WVAL:OFF_WVAL + PATCH_NUM * D_MODEL, :OUTPUT_LEN] = np.asarray(p['w_val'], np.float32)
    buf[OFF_BVAL, :OUTPUT_LEN] = np.asarray(p['b_val'][0], np.float32)
    return jnp.asarray(buf)


@jax.jit
def gpt4ts_forward_pallas(x, const_buf):
    """x: (B, L, M) -> ModelPrediction with value_values (B, OUTPUT_LEN, M)."""
    # Host side: layout-only rearrange 'b l m -> (b m) l' and patch gather (224 floats).
    xt = jnp.transpose(x, (0, 2, 1)).reshape(BM, SEQ_LEN)                 # (8, 16)
    patches = jnp.transpose(xt[:, PATCH_IDX], (1, 0, 2)).reshape(ROWS, PATCH_SIZE)  # (56, 4)
    out = pl.pallas_call(
        gpt4ts_fused_kernel,
        out_shape=jax.ShapeDtypeStruct((BM, OUT_PAD), jnp.float32),
    )(xt, patches, const_buf)                                             # single fused call
    # Host side: drop lane padding, '(b m) l -> b l m'
    vals = out[:, :OUTPUT_LEN].reshape(B, M, OUTPUT_LEN).transpose(0, 2, 1)
    return ModelPrediction(vals, None, None, None)


# ----------------------- pure-JAX reference (sanity) --------------------------
def _patchify_and_normalize(x):
    means = jnp.mean(x, axis=1, keepdims=True)                     # (B,1,M)
    xc = x - means
    stdev = jnp.sqrt(jnp.mean(jnp.square(xc), axis=1, keepdims=True) + 1e-5)
    xn = xc / stdev
    xn = jnp.transpose(xn, (0, 2, 1))                              # (B, M, L)
    starts = jnp.arange(PATCH_NUM) * STRIDE
    idx = starts[:, None] + jnp.arange(PATCH_SIZE)[None, :]        # (N, P)
    patches = xn[:, :, idx]                                        # (B, M, N, P)
    patches = patches.reshape(B * M, PATCH_NUM, PATCH_SIZE)
    return patches, means, stdev


def _encoder_ref(patches, p):
    x = patches @ p['w_in'] + p['b_in']                            # (BM, N, D)
    x = x + p['wpe'][None]
    n = x.shape[1]
    causal = jnp.tril(jnp.ones((n, n), dtype=bool))
    for l in range(N_LAYERS):
        h = _layernorm(x, p['ln1_w'][l], p['ln1_b'][l])
        qkv = h @ p['w_qkv'][l] + p['b_qkv'][l]
        q, k, v = jnp.split(qkv, 3, axis=-1)

        def heads(t):
            return t.reshape(t.shape[0], n, N_HEAD, HEAD_DIM).transpose(0, 2, 1, 3)

        qh, kh, vh = heads(q), heads(k), heads(v)
        s = jnp.einsum('bhqd,bhkd->bhqk', qh, kh) / math.sqrt(HEAD_DIM)
        s = jnp.where(causal, s, NEG_BIG)
        prob = jax.nn.softmax(s, axis=-1)
        ctx = jnp.einsum('bhqk,bhkd->bhqd', prob, vh)
        ctx = ctx.transpose(0, 2, 1, 3).reshape(x.shape[0], n, D_MODEL)
        x = x + ctx @ p['w_ap'][l] + p['b_ap'][l]
        h2 = _layernorm(x, p['ln2_w'][l], p['ln2_b'][l])
        ff = _gelu_new(h2 @ p['w_fc'][l] + p['b_fc'][l])
        x = x + ff @ p['w_mp'][l] + p['b_mp'][l]
    return _layernorm(x, p['lnf_w'][0], p['lnf_b'][0])


def gpt4ts_forward_ref(x, params):
    patches, means, stdev = _patchify_and_normalize(x)
    hidden = _encoder_ref(patches, params)
    flat = hidden.reshape(B * M, PATCH_NUM * D_MODEL)
    vals = flat @ params['w_val'] + params['b_val']
    vals = vals.reshape(B, M, OUTPUT_LEN).transpose(0, 2, 1)
    vals = vals * stdev + means
    return ModelPrediction(vals, None, None, None)


# ------------------------------ parameters ------------------------------------
def init_params(key):
    ks = jax.random.split(key, 12)
    std = 0.02
    f32 = jnp.float32
    p = {}
    p['w_in'] = (jax.random.normal(ks[0], (PATCH_SIZE, D_MODEL)) * std).astype(f32)
    p['b_in'] = (jax.random.normal(ks[1], (1, D_MODEL)) * 0.01).astype(f32)
    p['wpe'] = (jax.random.normal(ks[2], (PATCH_NUM, D_MODEL)) * std).astype(f32)
    p['ln1_w'] = jnp.ones((N_LAYERS, D_MODEL), f32)
    p['ln1_b'] = jnp.zeros((N_LAYERS, D_MODEL), f32)
    p['w_qkv'] = (jax.random.normal(ks[3], (N_LAYERS, D_MODEL, 3 * D_MODEL)) * std).astype(f32)
    p['b_qkv'] = (jax.random.normal(ks[4], (N_LAYERS, 3 * D_MODEL)) * 0.01).astype(f32)
    p['w_ap'] = (jax.random.normal(ks[5], (N_LAYERS, D_MODEL, D_MODEL)) * std).astype(f32)
    p['b_ap'] = jnp.zeros((N_LAYERS, D_MODEL), f32)
    p['ln2_w'] = jnp.ones((N_LAYERS, D_MODEL), f32)
    p['ln2_b'] = jnp.zeros((N_LAYERS, D_MODEL), f32)
    p['w_fc'] = (jax.random.normal(ks[6], (N_LAYERS, D_MODEL, 4 * D_MODEL)) * std).astype(f32)
    p['b_fc'] = (jax.random.normal(ks[7], (N_LAYERS, 4 * D_MODEL)) * 0.01).astype(f32)
    p['w_mp'] = (jax.random.normal(ks[8], (N_LAYERS, 4 * D_MODEL, D_MODEL)) * std).astype(f32)
    p['b_mp'] = jnp.zeros((N_LAYERS, D_MODEL), f32)
    p['lnf_w'] = jnp.ones((1, D_MODEL), f32)
    p['lnf_b'] = jnp.zeros((1, D_MODEL), f32)
    p['w_val'] = (jax.random.normal(ks[9], (PATCH_NUM * D_MODEL, OUTPUT_LEN)) * std).astype(f32)
    p['b_val'] = (jax.random.normal(ks[10], (1, OUTPUT_LEN)) * 0.01).astype(f32)
    return p


# --------------------------------- main ---------------------------------------
if __name__ == "__main__":
    key = jax.random.PRNGKey(0)
    k_x, k_p = jax.random.split(key)
    # input: (B, L, M) = (batch, seq_len, channels), like the PyTorch module
    x = jax.random.normal(k_x, (B, SEQ_LEN, M), dtype=jnp.float32)
    params = init_params(k_p)
    const_buf = pack_constants(params)          # one-time packing of all weights/masks

    pred = gpt4ts_forward_pallas(x, const_buf)
    jax.block_until_ready(pred.value_values)

    ref = gpt4ts_forward_ref(x, params)
    np.testing.assert_allclose(np.asarray(pred.value_values),
                               np.asarray(ref.value_values),
                               rtol=1e-4, atol=1e-4)
    assert pred.value_values.shape == (B, OUTPUT_LEN, M)
    print("KERNEL_OK")
</pallas_src>

<mosaic_0001>
module attributes {stable_mosaic.version = 11 : i64} {
  func.func @gpt4ts_fused_kernel(%arg0: memref<8x16xf32, #tpu.memory_space<vmem>>, %arg1: memref<56x4xf32, #tpu.memory_space<vmem>>, %arg2: memref<1360x128xf32, #tpu.memory_space<vmem>>, %arg3: memref<8x128xf32, #tpu.memory_space<vmem>>) attributes {dimension_semantics = [], scalar_prefetch = 0 : i64, scratch_operands = 0 : i64, tpu.core_type = #tpu.core_type<tc>} {
    %c0 = arith.constant 0 : index
    %c0_0 = arith.constant 0 : index
    %0 = vector.load %arg0[%c0, %c0_0] : memref<8x16xf32, #tpu.memory_space<vmem>>, vector<8x16xf32>
    %cst = arith.constant dense<0.000000e+00> : vector<8xf32>
    %1 = vector.multi_reduction <add>, %0, %cst [1] : vector<8x16xf32> to vector<8xf32>
    %2 = vector.shape_cast %1 : vector<8xf32> to vector<8x1xf32>
    %cst_1 = arith.constant 1.600000e+01 : f32
    %3 = vector.broadcast %cst_1 : f32 to vector<8x1xf32>
    %4 = arith.divf %2, %3 : vector<8x1xf32>
    %5 = vector.broadcast %4 : vector<8x1xf32> to vector<8x16xf32>
    %6 = arith.subf %0, %5 : vector<8x16xf32>
    %7 = arith.mulf %6, %6 : vector<8x16xf32>
    %cst_2 = arith.constant dense<0.000000e+00> : vector<8xf32>
    %8 = vector.multi_reduction <add>, %7, %cst_2 [1] : vector<8x16xf32> to vector<8xf32>
    %9 = vector.shape_cast %8 : vector<8xf32> to vector<8x1xf32>
    %cst_3 = arith.constant 1.600000e+01 : f32
    %10 = vector.broadcast %cst_3 : f32 to vector<8x1xf32>
    %11 = arith.divf %9, %10 : vector<8x1xf32>
    %cst_4 = arith.constant 9.99999974E-6 : f32
    %12 = vector.broadcast %cst_4 : f32 to vector<8x1xf32>
    %13 = arith.addf %11, %12 : vector<8x1xf32>
    %14 = math.sqrt %13 : vector<8x1xf32>
    %15 = tpu.reciprocal %14 : vector<8x1xf32> -> vector<8x1xf32>
    %16 = tpu.concatenate %4, %4, %4, %4, %4, %4, %4 in 0 : vector<8x1xf32>, vector<8x1xf32>, vector<8x1xf32>, vector<8x1xf32>, vector<8x1xf32>, vector<8x1xf32>, vector<8x1xf32> -> vector<56x1xf32>
    %17 = tpu.concatenate %15, %15, %15, %15, %15, %15, %15 in 0 : vector<8x1xf32>, vector<8x1xf32>, vector<8x1xf32>, vector<8x1xf32>, vector<8x1xf32>, vector<8x1xf32>, vector<8x1xf32> -> vector<56x1xf32>
    %c0_5 = arith.constant 0 : index
    %c0_6 = arith.constant 0 : index
    %18 = vector.load %arg1[%c0_5, %c0_6] : memref<56x4xf32, #tpu.memory_space<vmem>>, vector<56x4xf32>
    %19 = vector.broadcast %16 : vector<56x1xf32> to vector<56x4xf32>
    %20 = arith.subf %18, %19 : vector<56x4xf32>
    %21 = vector.broadcast %17 : vector<56x1xf32> to vector<56x4xf32>
    %22 = arith.mulf %20, %21 : vector<56x4xf32>
    %c504 = arith.constant 504 : index
    %c0_7 = arith.constant 0 : index
    %23 = vector.load %arg2[%c504, %c0_7] : memref<1360x128xf32, #tpu.memory_space<vmem>>, vector<4x32xf32>
    %cst_8 = arith.constant dense<0.000000e+00> : vector<56x32xf32>
    %24 = tpu.matmul %22, %23, %cst_8 {dimension_numbers = #tpu.dot_dimension_numbers<[1], [0], [0], [1], [0, 0, 1, 1], [], []>} : vector<56x4xf32>, vector<4x32xf32>, vector<56x32xf32> -> vector<56x32xf32>
    %c448 = arith.constant 448 : index
    %c0_9 = arith.constant 0 : index
    %25 = vector.load %arg2[%c448, %c0_9] : memref<1360x128xf32, #tpu.memory_space<vmem>>, vector<56x32xf32>
    %26 = arith.addf %24, %25 : vector<56x32xf32>
    %c0_10 = arith.constant 0 : index
    %c0_11 = arith.constant 0 : index
    %27 = vector.load %arg2[%c0_10, %c0_11] : memref<1360x128xf32, #tpu.memory_space<vmem>>, vector<224x56xf32>
    %c224 = arith.constant 224 : index
    %c0_12 = arith.constant 0 : index
    %28 = vector.load %arg2[%c224, %c0_12] : memref<1360x128xf32, #tpu.memory_space<vmem>>, vector<224x32xf32>
    %c800 = arith.constant 800 : index
    %c0_13 = arith.constant 0 : index
    %29 = vector.load %arg2[%c800, %c0_13] : memref<1360x128xf32, #tpu.memory_space<vmem>>, vector<1x32xf32>
    %c801 = arith.constant 801 : index
    %c0_14 = arith.constant 0 : index
    %30 = vector.load %arg2[%c801, %c0_14] : memref<1360x128xf32, #tpu.memory_space<vmem>>, vector<1x32xf32>
    %c802 = arith.constant 802 : index
    %c0_15 = arith.constant 0 : index
    %31 = vector.load %arg2[%c802, %c0_15] : memref<1360x128xf32, #tpu.memory_space<vmem>>, vector<1x32xf32>
    %c803 = arith.constant 803 : index
    %c0_16 = arith.constant 0 : index
    %32 = vector.load %arg2[%c803, %c0_16] : memref<1360x128xf32, #tpu.memory_space<vmem>>, vector<1x32xf32>
    %c804 = arith.constant 804 : index
    %c0_17 = arith.constant 0 : index
    %33 = vector.load %arg2[%c804, %c0_17] : memref<1360x128xf32, #tpu.memory_space<vmem>>, vector<1x32xf32>
    %c805 = arith.constant 805 : index
    %c0_18 = arith.constant 0 : index
    %34 = vector.load %arg2[%c805, %c0_18] : memref<1360x128xf32, #tpu.memory_space<vmem>>, vector<1x32xf32>
    %c806 = arith.constant 806 : index
    %c0_19 = arith.constant 0 : index
    %35 = vector.load %arg2[%c806, %c0_19] : memref<1360x128xf32, #tpu.memory_space<vmem>>, vector<1x32xf32>
    %c807 = arith.constant 807 : index
    %c0_20 = arith.constant 0 : index
    %36 = vector.load %arg2[%c807, %c0_20] : memref<1360x128xf32, #tpu.memory_space<vmem>>, vector<1x32xf32>
    %c808 = arith.constant 808 : index
    %c0_21 = arith.constant 0 : index
    %37 = vector.load %arg2[%c808, %c0_21] : memref<1360x128xf32, #tpu.memory_space<vmem>>, vector<1x128xf32>
    %c809 = arith.constant 809 : index
    %c0_22 = arith.constant 0 : index
    %38 = vector.load %arg2[%c809, %c0_22] : memref<1360x128xf32, #tpu.memory_space<vmem>>, vector<1x32xf32>
    %c512 = arith.constant 512 : index
    %c0_23 = arith.constant 0 : index
    %39 = vector.load %arg2[%c512, %c0_23] : memref<1360x128xf32, #tpu.memory_space<vmem>>, vector<32x32xf32>
    %c544 = arith.constant 544 : index
    %c0_24 = arith.constant 0 : index
    %40 = vector.load %arg2[%c544, %c0_24] : memref<1360x128xf32, #tpu.memory_space<vmem>>, vector<32x32xf32>
    %c576 = arith.constant 576 : index
    %c0_25 = arith.constant 0 : index
    %41 = vector.load %arg2[%c576, %c0_25] : memref<1360x128xf32, #tpu.memory_space<vmem>>, vector<32x32xf32>
    %c608 = arith.constant 608 : index
    %c0_26 = arith.constant 0 : index
    %42 = vector.load %arg2[%c608, %c0_26] : memref<1360x128xf32, #tpu.memory_space<vmem>>, vector<32x32xf32>
    %c640 = arith.constant 640 : index
    %c0_27 = arith.constant 0 : index
    %43 = vector.load %arg2[%c640, %c0_27] : memref<1360x128xf32, #tpu.memory_space<vmem>>, vector<32x128xf32>
    %c672 = arith.constant 672 : index
    %c0_28 = arith.constant 0 : index
    %44 = vector.load %arg2[%c672, %c0_28] : memref<1360x128xf32, #tpu.memory_space<vmem>>, vector<128x32xf32>
    %cst_29 = arith.constant dense<0.000000e+00> : vector<56xf32>
    %45 = vector.multi_reduction <add>, %26, %cst_29 [1] : vector<56x32xf32> to vector<56xf32>
    %46 = vector.shape_cast %45 : vector<56xf32> to vector<56x1xf32>
    %cst_30 = arith.constant 3.200000e+01 : f32
    %47 = vector.broadcast %cst_30 : f32 to vector<56x1xf32>
    %48 = arith.divf %46, %47 : vector<56x1xf32>
    %49 = vector.broadcast %48 : vector<56x1xf32> to vector<56x32xf32>
    %50 = arith.subf %26, %49 : vector<56x32xf32>
    %51 = arith.mulf %50, %50 : vector<56x32xf32>
    %cst_31 = arith.constant dense<0.000000e+00> : vector<56xf32>
    %52 = vector.multi_reduction <add>, %51, %cst_31 [1] : vector<56x32xf32> to vector<56xf32>
    %53 = vector.shape_cast %52 : vector<56xf32> to vector<56x1xf32>
    %cst_32 = arith.constant 3.200000e+01 : f32
    %54 = vector.broadcast %cst_32 : f32 to vector<56x1xf32>
    %55 = arith.divf %53, %54 : vector<56x1xf32>
    %56 = vector.broadcast %48 : vector<56x1xf32> to vector<56x32xf32>
    %57 = arith.subf %26, %56 : vector<56x32xf32>
    %cst_33 = arith.constant 9.99999974E-6 : f32
    %58 = vector.broadcast %cst_33 : f32 to vector<56x1xf32>
    %59 = arith.addf %55, %58 : vector<56x1xf32>
    %60 = math.rsqrt %59 : vector<56x1xf32>
    %61 = vector.broadcast %60 : vector<56x1xf32> to vector<56x32xf32>
    %62 = arith.mulf %57, %61 : vector<56x32xf32>
    %63 = vector.broadcast %29 : vector<1x32xf32> to vector<56x32xf32>
    %64 = arith.mulf %62, %63 : vector<56x32xf32>
    %65 = vector.broadcast %30 : vector<1x32xf32> to vector<56x32xf32>
    %66 = arith.addf %64, %65 : vector<56x32xf32>
    %cst_34 = arith.constant dense<0.000000e+00> : vector<56x32xf32>
    %67 = tpu.matmul %66, %39, %cst_34 {dimension_numbers = #tpu.dot_dimension_numbers<[1], [0], [0], [1], [0, 0, 1, 1], [], []>} : vector<56x32xf32>, vector<32x32xf32>, vector<56x32xf32> -> vector<56x32xf32>
    %68 = vector.broadcast %31 : vector<1x32xf32> to vector<56x32xf32>
    %69 = arith.addf %67, %68 : vector<56x32xf32>
    %cst_35 = arith.constant dense<0.000000e+00> : vector<56x32xf32>
    %70 = tpu.matmul %66, %40, %cst_35 {dimension_numbers = #tpu.dot_dimension_numbers<[1], [0], [0], [1], [0, 0, 1, 1], [], []>} : vector<56x32xf32>, vector<32x32xf32>, vector<56x32xf32> -> vector<56x32xf32>
    %71 = vector.broadcast %32 : vector<1x32xf32> to vector<56x32xf32>
    %72 = arith.addf %70, %71 : vector<56x32xf32>
    %cst_36 = arith.constant dense<0.000000e+00> : vector<56x32xf32>
    %73 = tpu.matmul %66, %41, %cst_36 {dimension_numbers = #tpu.dot_dimension_numbers<[1], [0], [0], [1], [0, 0, 1, 1], [], []>} : vector<56x32xf32>, vector<32x32xf32>, vector<56x32xf32> -> vector<56x32xf32>
    %74 = vector.broadcast %33 : vector<1x32xf32> to vector<56x32xf32>
    %75 = arith.addf %73, %74 : vector<56x32xf32>
    %76 = tpu.concatenate %69, %69, %69, %69 in 0 : vector<56x32xf32>, vector<56x32xf32>, vector<56x32xf32>, vector<56x32xf32> -> vector<224x32xf32>
    %77 = arith.mulf %76, %28 : vector<224x32xf32>
    %cst_37 = arith.constant dense<0.000000e+00> : vector<224x56xf32>
    %78 = tpu.matmul %77, %72, %cst_37 {dimension_numbers = #tpu.dot_dimension_numbers<[1], [1], [0], [0], [0, 0, 1, 0], [], []>} : vector<224x32xf32>, vector<56x32xf32>, vector<224x56xf32> -> vector<224x56xf32>
    %79 = arith.addf %78, %27 : vector<224x56xf32>
    %cst_38 = arith.constant dense<0xFF800000> : vector<224xf32>
    %80 = vector.multi_reduction <maximumf>, %79, %cst_38 [1] : vector<224x56xf32> to vector<224xf32>
    %81 = vector.shape_cast %80 : vector<224xf32> to vector<224x1xf32>
    %82 = vector.broadcast %81 : vector<224x1xf32> to vector<224x56xf32>
    %83 = arith.subf %79, %82 : vector<224x56xf32>
    %84 = math.exp %83 : vector<224x56xf32>
    %cst_39 = arith.constant dense<0.000000e+00> : vector<224xf32>
    %85 = vector.multi_reduction <add>, %84, %cst_39 [1] : vector<224x56xf32> to vector<224xf32>
    %86 = vector.shape_cast %85 : vector<224xf32> to vector<224x1xf32>
    %87 = tpu.reciprocal %86 : vector<224x1xf32> -> vector<224x1xf32>
    %88 = vector.broadcast %87 : vector<224x1xf32> to vector<224x56xf32>
    %89 = arith.mulf %84, %88 : vector<224x56xf32>
    %cst_40 = arith.constant dense<0.000000e+00> : vector<224x32xf32>
    %90 = tpu.matmul %89, %75, %cst_40 {dimension_numbers = #tpu.dot_dimension_numbers<[1], [0], [0], [1], [0, 0, 1, 1], [], []>} : vector<224x56xf32>, vector<56x32xf32>, vector<224x32xf32> -> vector<224x32xf32>
    %91 = arith.mulf %90, %28 : vector<224x32xf32>
    %92 = vector.extract_strided_slice %91 {offsets = [0, 0], sizes = [56, 32], strides = [1, 1]} : vector<224x32xf32> to vector<56x32xf32>
    %93 = vector.extract_strided_slice %91 {offsets = [56, 0], sizes = [56, 32], strides = [1, 1]} : vector<224x32xf32> to vector<56x32xf32>
    %94 = arith.addf %92, %93 : vector<56x32xf32>
    %95 = vector.extract_strided_slice %91 {offsets = [112, 0], sizes = [56, 32], strides = [1, 1]} : vector<224x32xf32> to vector<56x32xf32>
    %96 = arith.addf %94, %95 : vector<56x32xf32>
    %97 = vector.extract_strided_slice %91 {offsets = [168, 0], sizes = [56, 32], strides = [1, 1]} : vector<224x32xf32> to vector<56x32xf32>
    %98 = arith.addf %96, %97 : vector<56x32xf32>
    %cst_41 = arith.constant dense<0.000000e+00> : vector<56x32xf32>
    %99 = tpu.matmul %98, %42, %cst_41 {dimension_numbers = #tpu.dot_dimension_numbers<[1], [0], [0], [1], [0, 0, 1, 1], [], []>} : vector<56x32xf32>, vector<32x32xf32>, vector<56x32xf32> -> vector<56x32xf32>
    %100 = arith.addf %26, %99 : vector<56x32xf32>
    %101 = vector.broadcast %34 : vector<1x32xf32> to vector<56x32xf32>
    %102 = arith.addf %100, %101 : vector<56x32xf32>
    %cst_42 = arith.constant dense<0.000000e+00> : vector<56xf32>
    %103 = vector.multi_reduction <add>, %102, %cst_42 [1] : vector<56x32xf32> to vector<56xf32>
    %104 = vector.shape_cast %103 : vector<56xf32> to vector<56x1xf32>
    %cst_43 = arith.constant 3.200000e+01 : f32
    %105 = vector.broadcast %cst_43 : f32 to vector<56x1xf32>
    %106 = arith.divf %104, %105 : vector<56x1xf32>
    %107 = vector.broadcast %106 : vector<56x1xf32> to vector<56x32xf32>
    %108 = arith.subf %102, %107 : vector<56x32xf32>
    %109 = arith.mulf %108, %108 : vector<56x32xf32>
    %cst_44 = arith.constant dense<0.000000e+00> : vector<56xf32>
    %110 = vector.multi_reduction <add>, %109, %cst_44 [1] : vector<56x32xf32> to vector<56xf32>
    %111 = vector.shape_cast %110 : vector<56xf32> to vector<56x1xf32>
    %cst_45 = arith.constant 3.200000e+01 : f32
    %112 = vector.broadcast %cst_45 : f32 to vector<56x1xf32>
    %113 = arith.divf %111, %112 : vector<56x1xf32>
    %114 = vector.broadcast %106 : vector<56x1xf32> to vector<56x32xf32>
    %115 = arith.subf %102, %114 : vector<56x32xf32>
    %cst_46 = arith.constant 9.99999974E-6 : f32
    %116 = vector.broadcast %cst_46 : f32 to vector<56x1xf32>
    %117 = arith.addf %113, %116 : vector<56x1xf32>
    %118 = math.rsqrt %117 : vector<56x1xf32>
    %119 = vector.broadcast %118 : vector<56x1xf32> to vector<56x32xf32>
    %120 = arith.mulf %115, %119 : vector<56x32xf32>
    %121 = vector.broadcast %35 : vector<1x32xf32> to vector<56x32xf32>
    %122 = arith.mulf %120, %121 : vector<56x32xf32>
    %123 = vector.broadcast %36 : vector<1x32xf32> to vector<56x32xf32>
    %124 = arith.addf %122, %123 : vector<56x32xf32>
    %cst_47 = arith.constant dense<0.000000e+00> : vector<56x128xf32>
    %125 = tpu.matmul %124, %43, %cst_47 {dimension_numbers = #tpu.dot_dimension_numbers<[1], [0], [0], [1], [0, 0, 1, 1], [], []>} : vector<56x32xf32>, vector<32x128xf32>, vector<56x128xf32> -> vector<56x128xf32>
    %126 = vector.broadcast %37 : vector<1x128xf32> to vector<56x128xf32>
    %127 = arith.addf %125, %126 : vector<56x128xf32>
    %cst_48 = arith.constant 5.000000e-01 : f32
    %128 = vector.broadcast %cst_48 : f32 to vector<56x128xf32>
    %129 = arith.mulf %128, %127 : vector<56x128xf32>
    %cst_49 = arith.constant 4.471500e-02 : f32
    %130 = vector.broadcast %cst_49 : f32 to vector<56x128xf32>
    %131 = arith.mulf %130, %127 : vector<56x128xf32>
    %132 = arith.mulf %131, %127 : vector<56x128xf32>
    %133 = arith.mulf %132, %127 : vector<56x128xf32>
    %134 = arith.addf %127, %133 : vector<56x128xf32>
    %cst_50 = arith.constant 0.797884583 : f32
    %135 = vector.broadcast %cst_50 : f32 to vector<56x128xf32>
    %136 = arith.mulf %135, %134 : vector<56x128xf32>
    %137 = math.tanh %136 : vector<56x128xf32>
    %cst_51 = arith.constant 1.000000e+00 : f32
    %138 = vector.broadcast %cst_51 : f32 to vector<56x128xf32>
    %139 = arith.addf %138, %137 : vector<56x128xf32>
    %140 = arith.mulf %129, %139 : vector<56x128xf32>
    %cst_52 = arith.constant dense<0.000000e+00> : vector<56x32xf32>
    %141 = tpu.matmul %140, %44, %cst_52 {dimension_numbers = #tpu.dot_dimension_numbers<[1], [0], [0], [1], [0, 0, 1, 1], [], []>} : vector<56x128xf32>, vector<128x32xf32>, vector<56x32xf32> -> vector<56x32xf32>
    %142 = arith.addf %102, %141 : vector<56x32xf32>
    %143 = vector.broadcast %38 : vector<1x32xf32> to vector<56x32xf32>
    %144 = arith.addf %142, %143 : vector<56x32xf32>
    %c1104 = arith.constant 1104 : index
    %c0_53 = arith.constant 0 : index
    %145 = vector.load %arg2[%c1104, %c0_53] : memref<1360x128xf32, #tpu.memory_space<vmem>>, vector<1x32xf32>
    %c1105 = arith.constant 1105 : index
    %c0_54 = arith.constant 0 : index
    %146 = vector.load %arg2[%c1105, %c0_54] : memref<1360x128xf32, #tpu.memory_space<vmem>>, vector<1x32xf32>
    %c1106 = arith.constant 1106 : index
    %c0_55 = arith.constant 0 : index
    %147 = vector.load %arg2[%c1106, %c0_55] : memref<1360x128xf32, #tpu.memory_space<vmem>>, vector<1x32xf32>
    %c1107 = arith.constant 1107 : index
    %c0_56 = arith.constant 0 : index
    %148 = vector.load %arg2[%c1107, %c0_56] : memref<1360x128xf32, #tpu.memory_space<vmem>>, vector<1x32xf32>
    %c1108 = arith.constant 1108 : index
    %c0_57 = arith.constant 0 : index
    %149 = vector.load %arg2[%c1108, %c0_57] : memref<1360x128xf32, #tpu.memory_space<vmem>>, vector<1x32xf32>
    %c1109 = arith.constant 1109 : index
    %c0_58 = arith.constant 0 : index
    %150 = vector.load %arg2[%c1109, %c0_58] : memref<1360x128xf32, #tpu.memory_space<vmem>>, vector<1x32xf32>
    %c1110 = arith.constant 1110 : index
    %c0_59 = arith.constant 0 : index
    %151 = vector.load %arg2[%c1110, %c0_59] : memref<1360x128xf32, #tpu.memory_space<vmem>>, vector<1x32xf32>
    %c1111 = arith.constant 1111 : index
    %c0_60 = arith.constant 0 : index
    %152 = vector.load %arg2[%c1111, %c0_60] : memref<1360x128xf32, #tpu.memory_space<vmem>>, vector<1x32xf32>
    %c1112 = arith.constant 1112 : index
    %c0_61 = arith.constant 0 : index
    %153 = vector.load %arg2[%c1112, %c0_61] : memref<1360x128xf32, #tpu.memory_space<vmem>>, vector<1x128xf32>
    %c1113 = arith.constant 1113 : index
    %c0_62 = arith.constant 0 : index
    %154 = vector.load %arg2[%c1113, %c0_62] : memref<1360x128xf32, #tpu.memory_space<vmem>>, vector<1x32xf32>
    %c816 = arith.constant 816 : index
    %c0_63 = arith.constant 0 : index
    %155 = vector.load %arg2[%c816, %c0_63] : memref<1360x128xf32, #tpu.memory_space<vmem>>, vector<32x32xf32>
    %c848 = arith.constant 848 : index
    %c0_64 = arith.constant 0 : index
    %156 = vector.load %arg2[%c848, %c0_64] : memref<1360x128xf32, #tpu.memory_space<vmem>>, vector<32x32xf32>
    %c880 = arith.constant 880 : index
    %c0_65 = arith.constant 0 : index
    %157 = vector.load %arg2[%c880, %c0_65] : memref<1360x128xf32, #tpu.memory_space<vmem>>, vector<32x32xf32>
    %c912 = arith.constant 912 : index
    %c0_66 = arith.constant 0 : index
    %158 = vector.load %arg2[%c912, %c0_66] : memref<1360x128xf32, #tpu.memory_space<vmem>>, vector<32x32xf32>
    %c944 = arith.constant 944 : index
    %c0_67 = arith.constant 0 : index
    %159 = vector.load %arg2[%c944, %c0_67] : memref<1360x128xf32, #tpu.memory_space<vmem>>, vector<32x128xf32>
    %c976 = arith.constant 976 : index
    %c0_68 = arith.constant 0 : index
    %160 = vector.load %arg2[%c976, %c0_68] : memref<1360x128xf32, #tpu.memory_space<vmem>>, vector<128x32xf32>
    %cst_69 = arith.constant dense<0.000000e+00> : vector<56xf32>
    %161 = vector.multi_reduction <add>, %144, %cst_69 [1] : vector<56x32xf32> to vector<56xf32>
    %162 = vector.shape_cast %161 : vector<56xf32> to vector<56x1xf32>
    %cst_70 = arith.constant 3.200000e+01 : f32
    %163 = vector.broadcast %cst_70 : f32 to vector<56x1xf32>
    %164 = arith.divf %162, %163 : vector<56x1xf32>
    %165 = vector.broadcast %164 : vector<56x1xf32> to vector<56x32xf32>
    %166 = arith.subf %144, %165 : vector<56x32xf32>
    %167 = arith.mulf %166, %166 : vector<56x32xf32>
    %cst_71 = arith.constant dense<0.000000e+00> : vector<56xf32>
    %168 = vector.multi_reduction <add>, %167, %cst_71 [1] : vector<56x32xf32> to vector<56xf32>
    %169 = vector.shape_cast %168 : vector<56xf32> to vector<56x1xf32>
    %cst_72 = arith.constant 3.200000e+01 : f32
    %170 = vector.broadcast %cst_72 : f32 to vector<56x1xf32>
    %171 = arith.divf %169, %170 : vector<56x1xf32>
    %172 = vector.broadcast %164 : vector<56x1xf32> to vector<56x32xf32>
    %173 = arith.subf %144, %172 : vector<56x32xf32>
    %cst_73 = arith.constant 9.99999974E-6 : f32
    %174 = vector.broadcast %cst_73 : f32 to vector<56x1xf32>
    %175 = arith.addf %171, %174 : vector<56x1xf32>
    %176 = math.rsqrt %175 : vector<56x1xf32>
    %177 = vector.broadcast %176 : vector<56x1xf32> to vector<56x32xf32>
    %178 = arith.mulf %173, %177 : vector<56x32xf32>
    %179 = vector.broadcast %145 : vector<1x32xf32> to vector<56x32xf32>
    %180 = arith.mulf %178, %179 : vector<56x32xf32>
    %181 = vector.broadcast %146 : vector<1x32xf32> to vector<56x32xf32>
    %182 = arith.addf %180, %181 : vector<56x32xf32>
    %cst_74 = arith.constant dense<0.000000e+00> : vector<56x32xf32>
    %183 = tpu.matmul %182, %155, %cst_74 {dimension_numbers = #tpu.dot_dimension_numbers<[1], [0], [0], [1], [0, 0, 1, 1], [], []>} : vector<56x32xf32>, vector<32x32xf32>, vector<56x32xf32> -> vector<56x32xf32>
    %184 = vector.broadcast %147 : vector<1x32xf32> to vector<56x32xf32>
    %185 = arith.addf %183, %184 : vector<56x32xf32>
    %cst_75 = arith.constant dense<0.000000e+00> : vector<56x32xf32>
    %186 = tpu.matmul %182, %156, %cst_75 {dimension_numbers = #tpu.dot_dimension_numbers<[1], [0], [0], [1], [0, 0, 1, 1], [], []>} : vector<56x32xf32>, vector<32x32xf32>, vector<56x32xf32> -> vector<56x32xf32>
    %187 = vector.broadcast %148 : vector<1x32xf32> to vector<56x32xf32>
    %188 = arith.addf %186, %187 : vector<56x32xf32>
    %cst_76 = arith.constant dense<0.000000e+00> : vector<56x32xf32>
    %189 = tpu.matmul %182, %157, %cst_76 {dimension_numbers = #tpu.dot_dimension_numbers<[1], [0], [0], [1], [0, 0, 1, 1], [], []>} : vector<56x32xf32>, vector<32x32xf32>, vector<56x32xf32> -> vector<56x32xf32>
    %190 = vector.broadcast %149 : vector<1x32xf32> to vector<56x32xf32>
    %191 = arith.addf %189, %190 : vector<56x32xf32>
    %192 = tpu.concatenate %185, %185, %185, %185 in 0 : vector<56x32xf32>, vector<56x32xf32>, vector<56x32xf32>, vector<56x32xf32> -> vector<224x32xf32>
    %193 = arith.mulf %192, %28 : vector<224x32xf32>
    %cst_77 = arith.constant dense<0.000000e+00> : vector<224x56xf32>
    %194 = tpu.matmul %193, %188, %cst_77 {dimension_numbers = #tpu.dot_dimension_numbers<[1], [1], [0], [0], [0, 0, 1, 0], [], []>} : vector<224x32xf32>, vector<56x32xf32>, vector<224x56xf32> -> vector<224x56xf32>
    %195 = arith.addf %194, %27 : vector<224x56xf32>
    %cst_78 = arith.constant dense<0xFF800000> : vector<224xf32>
    %196 = vector.multi_reduction <maximumf>, %195, %cst_78 [1] : vector<224x56xf32> to vector<224xf32>
    %197 = vector.shape_cast %196 : vector<224xf32> to vector<224x1xf32>
    %198 = vector.broadcast %197 : vector<224x1xf32> to vector<224x56xf32>
    %199 = arith.subf %195, %198 : vector<224x56xf32>
    %200 = math.exp %199 : vector<224x56xf32>
    %cst_79 = arith.constant dense<0.000000e+00> : vector<224xf32>
    %201 = vector.multi_reduction <add>, %200, %cst_79 [1] : vector<224x56xf32> to vector<224xf32>
    %202 = vector.shape_cast %201 : vector<224xf32> to vector<224x1xf32>
    %203 = tpu.reciprocal %202 : vector<224x1xf32> -> vector<224x1xf32>
    %204 = vector.broadcast %203 : vector<224x1xf32> to vector<224x56xf32>
    %205 = arith.mulf %200, %204 : vector<224x56xf32>
    %cst_80 = arith.constant dense<0.000000e+00> : vector<224x32xf32>
    %206 = tpu.matmul %205, %191, %cst_80 {dimension_numbers = #tpu.dot_dimension_numbers<[1], [0], [0], [1], [0, 0, 1, 1], [], []>} : vector<224x56xf32>, vector<56x32xf32>, vector<224x32xf32> -> vector<224x32xf32>
    %207 = arith.mulf %206, %28 : vector<224x32xf32>
    %208 = vector.extract_strided_slice %207 {offsets = [0, 0], sizes = [56, 32], strides = [1, 1]} : vector<224x32xf32> to vector<56x32xf32>
    %209 = vector.extract_strided_slice %207 {offsets = [56, 0], sizes = [56, 32], strides = [1, 1]} : vector<224x32xf32> to vector<56x32xf32>
    %210 = arith.addf %208, %209 : vector<56x32xf32>
    %211 = vector.extract_strided_slice %207 {offsets = [112, 0], sizes = [56, 32], strides = [1, 1]} : vector<224x32xf32> to vector<56x32xf32>
    %212 = arith.addf %210, %211 : vector<56x32xf32>
    %213 = vector.extract_strided_slice %207 {offsets = [168, 0], sizes = [56, 32], strides = [1, 1]} : vector<224x32xf32> to vector<56x32xf32>
    %214 = arith.addf %212, %213 : vector<56x32xf32>
    %cst_81 = arith.constant dense<0.000000e+00> : vector<56x32xf32>
    %215 = tpu.matmul %214, %158, %cst_81 {dimension_numbers = #tpu.dot_dimension_numbers<[1], [0], [0], [1], [0, 0, 1, 1], [], []>} : vector<56x32xf32>, vector<32x32xf32>, vector<56x32xf32> -> vector<56x32xf32>
    %216 = arith.addf %144, %215 : vector<56x32xf32>
    %217 = vector.broadcast %150 : vector<1x32xf32> to vector<56x32xf32>
    %218 = arith.addf %216, %217 : vector<56x32xf32>
    %cst_82 = arith.constant dense<0.000000e+00> : vector<56xf32>
    %219 = vector.multi_reduction <add>, %218, %cst_82 [1] : vector<56x32xf32> to vector<56xf32>
    %220 = vector.shape_cast %219 : vector<56xf32> to vector<56x1xf32>
    %cst_83 = arith.constant 3.200000e+01 : f32
    %221 = vector.broadcast %cst_83 : f32 to vector<56x1xf32>
    %222 = arith.divf %220, %221 : vector<56x1xf32>
    %223 = vector.broadcast %222 : vector<56x1xf32> to vector<56x32xf32>
    %224 = arith.subf %218, %223 : vector<56x32xf32>
    %225 = arith.mulf %224, %224 : vector<56x32xf32>
    %cst_84 = arith.constant dense<0.000000e+00> : vector<56xf32>
    %226 = vector.multi_reduction <add>, %225, %cst_84 [1] : vector<56x32xf32> to vector<56xf32>
    %227 = vector.shape_cast %226 : vector<56xf32> to vector<56x1xf32>
    %cst_85 = arith.constant 3.200000e+01 : f32
    %228 = vector.broadcast %cst_85 : f32 to vector<56x1xf32>
    %229 = arith.divf %227, %228 : vector<56x1xf32>
    %230 = vector.broadcast %222 : vector<56x1xf32> to vector<56x32xf32>
    %231 = arith.subf %218, %230 : vector<56x32xf32>
    %cst_86 = arith.constant 9.99999974E-6 : f32
    %232 = vector.broadcast %cst_86 : f32 to vector<56x1xf32>
    %233 = arith.addf %229, %232 : vector<56x1xf32>
    %234 = math.rsqrt %233 : vector<56x1xf32>
    %235 = vector.broadcast %234 : vector<56x1xf32> to vector<56x32xf32>
    %236 = arith.mulf %231, %235 : vector<56x32xf32>
    %237 = vector.broadcast %151 : vector<1x32xf32> to vector<56x32xf32>
    %238 = arith.mulf %236, %237 : vector<56x32xf32>
    %239 = vector.broadcast %152 : vector<1x32xf32> to vector<56x32xf32>
    %240 = arith.addf %238, %239 : vector<56x32xf32>
    %cst_87 = arith.constant dense<0.000000e+00> : vector<56x128xf32>
    %241 = tpu.matmul %240, %159, %cst_87 {dimension_numbers = #tpu.dot_dimension_numbers<[1], [0], [0], [1], [0, 0, 1, 1], [], []>} : vector<56x32xf32>, vector<32x128xf32>, vector<56x128xf32> -> vector<56x128xf32>
    %242 = vector.broadcast %153 : vector<1x128xf32> to vector<56x128xf32>
    %243 = arith.addf %241, %242 : vector<56x128xf32>
    %cst_88 = arith.constant 5.000000e-01 : f32
    %244 = vector.broadcast %cst_88 : f32 to vector<56x128xf32>
    %245 = arith.mulf %244, %243 : vector<56x128xf32>
    %cst_89 = arith.constant 4.471500e-02 : f32
    %246 = vector.broadcast %cst_89 : f32 to vector<56x128xf32>
    %247 = arith.mulf %246, %243 : vector<56x128xf32>
    %248 = arith.mulf %247, %243 : vector<56x128xf32>
    %249 = arith.mulf %248, %243 : vector<56x128xf32>
    %250 = arith.addf %243, %249 : vector<56x128xf32>
    %cst_90 = arith.constant 0.797884583 : f32
    %251 = vector.broadcast %cst_90 : f32 to vector<56x128xf32>
    %252 = arith.mulf %251, %250 : vector<56x128xf32>
    %253 = math.tanh %252 : vector<56x128xf32>
    %cst_91 = arith.constant 1.000000e+00 : f32
    %254 = vector.broadcast %cst_91 : f32 to vector<56x128xf32>
    %255 = arith.addf %254, %253 : vector<56x128xf32>
    %256 = arith.mulf %245, %255 : vector<56x128xf32>
    %cst_92 = arith.constant dense<0.000000e+00> : vector<56x32xf32>
    %257 = tpu.matmul %256, %160, %cst_92 {dimension_numbers = #tpu.dot_dimension_numbers<[1], [0], [0], [1], [0, 0, 1, 1], [], []>} : vector<56x128xf32>, vector<128x32xf32>, vector<56x32xf32> -> vector<56x32xf32>
    %258 = arith.addf %218, %257 : vector<56x32xf32>
    %259 = vector.broadcast %154 : vector<1x32xf32> to vector<56x32xf32>
    %260 = arith.addf %258, %259 : vector<56x32xf32>
    %c1120 = arith.constant 1120 : index
    %c0_93 = arith.constant 0 : index
    %261 = vector.load %arg2[%c1120, %c0_93] : memref<1360x128xf32, #tpu.memory_space<vmem>>, vector<1x32xf32>
    %c1121 = arith.constant 1121 : index
    %c0_94 = arith.constant 0 : index
    %262 = vector.load %arg2[%c1121, %c0_94] : memref<1360x128xf32, #tpu.memory_space<vmem>>, vector<1x32xf32>
    %cst_95 = arith.constant dense<0.000000e+00> : vector<56xf32>
    %263 = vector.multi_reduction <add>, %260, %cst_95 [1] : vector<56x32xf32> to vector<56xf32>
    %264 = vector.shape_cast %263 : vector<56xf32> to vector<56x1xf32>
    %cst_96 = arith.constant 3.200000e+01 : f32
    %265 = vector.broadcast %cst_96 : f32 to vector<56x1xf32>
    %266 = arith.divf %264, %265 : vector<56x1xf32>
    %267 = vector.broadcast %266 : vector<56x1xf32> to vector<56x32xf32>
    %268 = arith.subf %260, %267 : vector<56x32xf32>
    %269 = arith.mulf %268, %268 : vector<56x32xf32>
    %cst_97 = arith.constant dense<0.000000e+00> : vector<56xf32>
    %270 = vector.multi_reduction <add>, %269, %cst_97 [1] : vector<56x32xf32> to vector<56xf32>
    %271 = vector.shape_cast %270 : vector<56xf32> to vector<56x1xf32>
    %cst_98 = arith.constant 3.200000e+01 : f32
    %272 = vector.broadcast %cst_98 : f32 to vector<56x1xf32>
    %273 = arith.divf %271, %272 : vector<56x1xf32>
    %274 = vector.broadcast %266 : vector<56x1xf32> to vector<56x32xf32>
    %275 = arith.subf %260, %274 : vector<56x32xf32>
    %cst_99 = arith.constant 9.99999974E-6 : f32
    %276 = vector.broadcast %cst_99 : f32 to vector<56x1xf32>
    %277 = arith.addf %273, %276 : vector<56x1xf32>
    %278 = math.rsqrt %277 : vector<56x1xf32>
    %279 = vector.broadcast %278 : vector<56x1xf32> to vector<56x32xf32>
    %280 = arith.mulf %275, %279 : vector<56x32xf32>
    %281 = vector.broadcast %261 : vector<1x32xf32> to vector<56x32xf32>
    %282 = arith.mulf %280, %281 : vector<56x32xf32>
    %283 = vector.broadcast %262 : vector<1x32xf32> to vector<56x32xf32>
    %284 = arith.addf %282, %283 : vector<56x32xf32>
    %c1352 = arith.constant 1352 : index
    %c0_100 = arith.constant 0 : index
    %285 = vector.load %arg2[%c1352, %c0_100] : memref<1360x128xf32, #tpu.memory_space<vmem>>, vector<1x128xf32>
    %286 = vector.shape_cast %285 : vector<1x128xf32> to vector<1x128xf32>
    %287 = vector.broadcast %286 : vector<1x128xf32> to vector<8x128xf32>
    %288 = vector.extract_strided_slice %284 {offsets = [0, 0], sizes = [8, 32], strides = [1, 1]} : vector<56x32xf32> to vector<8x32xf32>
    %c1128 = arith.constant 1128 : index
    %c0_101 = arith.constant 0 : index
    %289 = vector.load %arg2[%c1128, %c0_101] : memref<1360x128xf32, #tpu.memory_space<vmem>>, vector<32x128xf32>
    %cst_102 = arith.constant dense<0.000000e+00> : vector<8x128xf32>
    %290 = tpu.matmul %288, %289, %cst_102 {dimension_numbers = #tpu.dot_dimension_numbers<[1], [0], [0], [1], [0, 0, 1, 1], [], []>} : vector<8x32xf32>, vector<32x128xf32>, vector<8x128xf32> -> vector<8x128xf32>
    %291 = arith.addf %287, %290 : vector<8x128xf32>
    %292 = vector.extract_strided_slice %284 {offsets = [8, 0], sizes = [8, 32], strides = [1, 1]} : vector<56x32xf32> to vector<8x32xf32>
    %c1160 = arith.constant 1160 : index
    %c0_103 = arith.constant 0 : index
    %293 = vector.load %arg2[%c1160, %c0_103] : memref<1360x128xf32, #tpu.memory_space<vmem>>, vector<32x128xf32>
    %cst_104 = arith.constant dense<0.000000e+00> : vector<8x128xf32>
    %294 = tpu.matmul %292, %293, %cst_104 {dimension_numbers = #tpu.dot_dimension_numbers<[1], [0], [0], [1], [0, 0, 1, 1], [], []>} : vector<8x32xf32>, vector<32x128xf32>, vector<8x128xf32> -> vector<8x128xf32>
    %295 = arith.addf %291, %294 : vector<8x128xf32>
    %296 = vector.extract_strided_slice %284 {offsets = [16, 0], sizes = [8, 32], strides = [1, 1]} : vector<56x32xf32> to vector<8x32xf32>
    %c1192 = arith.constant 1192 : index
    %c0_105 = arith.constant 0 : index
    %297 = vector.load %arg2[%c1192, %c0_105] : memref<1360x128xf32, #tpu.memory_space<vmem>>, vector<32x128xf32>
    %cst_106 = arith.constant dense<0.000000e+00> : vector<8x128xf32>
    %298 = tpu.matmul %296, %297, %cst_106 {dimension_numbers = #tpu.dot_dimension_numbers<[1], [0], [0], [1], [0, 0, 1, 1], [], []>} : vector<8x32xf32>, vector<32x128xf32>, vector<8x128xf32> -> vector<8x128xf32>
    %299 = arith.addf %295, %298 : vector<8x128xf32>
    %300 = vector.extract_strided_slice %284 {offsets = [24, 0], sizes = [8, 32], strides = [1, 1]} : vector<56x32xf32> to vector<8x32xf32>
    %c1224 = arith.constant 1224 : index
    %c0_107 = arith.constant 0 : index
    %301 = vector.load %arg2[%c1224, %c0_107] : memref<1360x128xf32, #tpu.memory_space<vmem>>, vector<32x128xf32>
    %cst_108 = arith.constant dense<0.000000e+00> : vector<8x128xf32>
    %302 = tpu.matmul %300, %301, %cst_108 {dimension_numbers = #tpu.dot_dimension_numbers<[1], [0], [0], [1], [0, 0, 1, 1], [], []>} : vector<8x32xf32>, vector<32x128xf32>, vector<8x128xf32> -> vector<8x128xf32>
    %303 = arith.addf %299, %302 : vector<8x128xf32>
    %304 = vector.extract_strided_slice %284 {offsets = [32, 0], sizes = [8, 32], strides = [1, 1]} : vector<56x32xf32> to vector<8x32xf32>
    %c1256 = arith.constant 1256 : index
    %c0_109 = arith.constant 0 : index
    %305 = vector.load %arg2[%c1256, %c0_109] : memref<1360x128xf32, #tpu.memory_space<vmem>>, vector<32x128xf32>
    %cst_110 = arith.constant dense<0.000000e+00> : vector<8x128xf32>
    %306 = tpu.matmul %304, %305, %cst_110 {dimension_numbers = #tpu.dot_dimension_numbers<[1], [0], [0], [1], [0, 0, 1, 1], [], []>} : vector<8x32xf32>, vector<32x128xf32>, vector<8x128xf32> -> vector<8x128xf32>
    %307 = arith.addf %303, %306 : vector<8x128xf32>
    %308 = vector.extract_strided_slice %284 {offsets = [40, 0], sizes = [8, 32], strides = [1, 1]} : vector<56x32xf32> to vector<8x32xf32>
    %c1288 = arith.constant 1288 : index
    %c0_111 = arith.constant 0 : index
    %309 = vector.load %arg2[%c1288, %c0_111] : memref<1360x128xf32, #tpu.memory_space<vmem>>, vector<32x128xf32>
    %cst_112 = arith.constant dense<0.000000e+00> : vector<8x128xf32>
    %310 = tpu.matmul %308, %309, %cst_112 {dimension_numbers = #tpu.dot_dimension_numbers<[1], [0], [0], [1], [0, 0, 1, 1], [], []>} : vector<8x32xf32>, vector<32x128xf32>, vector<8x128xf32> -> vector<8x128xf32>
    %311 = arith.addf %307, %310 : vector<8x128xf32>
    %312 = vector.extract_strided_slice %284 {offsets = [48, 0], sizes = [8, 32], strides = [1, 1]} : vector<56x32xf32> to vector<8x32xf32>
    %c1320 = arith.constant 1320 : index
    %c0_113 = arith.constant 0 : index
    %313 = vector.load %arg2[%c1320, %c0_113] : memref<1360x128xf32, #tpu.memory_space<vmem>>, vector<32x128xf32>
    %cst_114 = arith.constant dense<0.000000e+00> : vector<8x128xf32>
    %314 = tpu.matmul %312, %313, %cst_114 {dimension_numbers = #tpu.dot_dimension_numbers<[1], [0], [0], [1], [0, 0, 1, 1], [], []>} : vector<8x32xf32>, vector<32x128xf32>, vector<8x128xf32> -> vector<8x128xf32>
    %315 = arith.addf %311, %314 : vector<8x128xf32>
    %316 = vector.broadcast %14 : vector<8x1xf32> to vector<8x128xf32>
    %317 = arith.mulf %315, %316 : vector<8x128xf32>
    %318 = vector.broadcast %4 : vector<8x1xf32> to vector<8x128xf32>
    %319 = arith.addf %317, %318 : vector<8x128xf32>
    %c0_115 = arith.constant 0 : index
    %c0_116 = arith.constant 0 : index
    %320 = vector.load %arg3[%c0_115, %c0_116] : memref<8x128xf32, #tpu.memory_space<vmem>>, vector<8x128xf32>
    tpu.vector_store %arg3[%c0_115, %c0_116], %319 {strides = array<i32>} : memref<8x128xf32, #tpu.memory_space<vmem>>, vector<8x128xf32>,
    return
  }
}

</mosaic_0001>

<llo_original>
// kernel: gpt4ts_forward_pallas.1
$region0: #{gpt4ts_forward_pallas.1}
  #allocation0 [shape = 'u32[]', space=smem, size = 0x4, offset = 0x4, fixed_abs, tag = 'smem constant byte address 0x4 - core index']
  #allocation1 [shape = 'u32[72,128]{1,0:T(1,128)}', space=vmem, size = 0x9000, scoped, tag = 'internal scratch']
  %s0 = inlined_call_operand.vmem [shape: f32[8,16], index: 0, kind: input, shape index: {}]
  %s1 = inlined_call_operand.vmem [shape: f32[56,4], index: 1, kind: input, shape index: {}]
  %s2 = inlined_call_operand.hbm [shape: f32[1360,128], index: 2, kind: input, shape index: {}]
  %s3 = inlined_call_operand.hbm [shape: f32[8,128], index: 3, kind: output, shape index: {}]
  %s4 = sld [smem:[#allocation0]]
  $region26: #{gpt4ts_forward_pallas.1} parent=0
    _
  %s6 = ssub.s32 1, %s4
  %s7 = scalar_select 0, %s6, %s4
  $region1: #{gpt4ts_forward_pallas.1} parent=0
    #allocation2 [shape = 'u8[696320]{0}', space=vmem, size = 0xaa000, scoped, tag = 'input window, operand 2, single buffered']
    #allocation3 [shape = 's32[1]{0}', space=sflag, size = 0x4, scoped, tag = 'scoped memory for gpt4ts_forward_pallas.1']
    #allocation4 [shape = 's32[1]{0}', space=sflag, size = 0x4, scoped, tag = 'scoped memory for gpt4ts_forward_pallas.1']
    #allocation5 [shape = 'u8[4096]{0}', space=vmem, size = 0x1000, scoped, tag = 'output window, operand 0, single buffered']
    %8 = vsyncpa [#allocation3], 0
    %9 = vsyncpa [#allocation4], 0
    // Predicated region
    $region2: #{gpt4ts_forward_pallas.1} parent=1 // pred_check
      _
    $region3: #{gpt4ts_forward_pallas.1} parent=1 // pred_check_branch
      %11 = sbr.rel (0) target = $region5
    $region4: #{gpt4ts_forward_pallas.1} parent=1 // pred_region
      _
    $region5: #{gpt4ts_forward_pallas.1} parent=1 // pred_fallthru
      _
    // Predicated region
    $region6: #{gpt4ts_forward_pallas.1} parent=1 // pred_check
      _
    $region7: #{gpt4ts_forward_pallas.1} parent=1 // pred_check_branch
      %13 = sbr.rel (0) target = $region9
    $region8: #{gpt4ts_forward_pallas.1} parent=1 // pred_region
      _
    $region9: #{gpt4ts_forward_pallas.1} parent=1 // pred_fallthru
      _
    // Predicated region
    $region10: #{gpt4ts_forward_pallas.1} parent=1 // pred_check
      _
    $region11: #{gpt4ts_forward_pallas.1} parent=1 // pred_check_branch
      %15 = sbr.rel (0) target = $region13
    $region12: #{gpt4ts_forward_pallas.1} parent=1 // pred_region
      %17 = vsyncadd [#allocation3], 0
      %s18 = sshll.u32 %s2, 4
      %s19 = int_to_ptr.hbm [resolvable:$true] %s18
      %s20 = sshll.u32 [#allocation2], 4
      %s21 = int_to_ptr.vmem [resolvable:$true] %s20
      %26 = dma.hbm_to_vmem [thread:$0]  %s19, 21760, %s21, [#allocation3], 128, 128, 8
    $region13: #{gpt4ts_forward_pallas.1} parent=1 // pred_fallthru
      _
    // Predicated region
    $region14: #{gpt4ts_forward_pallas.1} parent=1 // pred_check
      _
    $region15: #{gpt4ts_forward_pallas.1} parent=1 // pred_check_branch
      %28 = sbr.rel (0) target = $region17
    $region16: #{gpt4ts_forward_pallas.1} parent=1 // pred_region
      %30 = dma.done [#allocation3], 21760
    $region17: #{gpt4ts_forward_pallas.1} parent=1 // pred_fallthru
      _
    %v31 = vld [vmem:[%s0] sm:$0xff]
    %vm32 = vcmask 130048
    %v33 = vsel %vm32, %v31, 0.0
    %34 = vadd.xlane.f32.xlu0 %v33
    %v35 = vpop.xlane.xlu0 %34
    %v36 = vrcp.pop 16.0
    %v37 = vmul.f32 16.0, %v36
    %v38 = vsub.f32 1.0, %v37
    %v39 = vmul.f32 %v36, %v38
    %v40 = vadd.f32 %v36, %v39
    %vm41 = vweird.f32 %v36
    %v42 = vsel %vm41, %v36, %v40
    %v43 = vmul.f32 %v35, %v42
    %v44 = vsub.f32 %v31, %v43
    %v45 = vmul.f32 %v44, %v44
    %v46 = vsel %vm32, %v45, 0.0
    %47 = vadd.xlane.f32.xlu0 %v46
    %v48 = vpop.xlane.xlu0 %47
    %v49 = vmul.f32 %v48, %v42
    %v50 = vadd.f32 %v49, 1e-05
    %v51 = vrsqrt.pop %v50
    %v52 = vmul.f32 %v51, %v50
    %v53 = vmul.f32 %v52, %v51
    %v54 = vmul.f32 0.5, %v53
    %v55 = vsub.f32 1.5, %v54
    %v56 = vmul.f32 %v51, %v55
    %v57 = vmul.f32 %v50, %v56
    %vm58 = vcmp.eq.f32.partialorder %v50, inf
    %v59 = vsel %vm58, %v50, %v57
    %vm60 = vcmp.eq.f32.partialorder %v50, 0.0
    %v61 = vand.u32 %v50, 2147483648
    %v62 = vsel %vm60, %v61, %v59
    %v63 = vrcp.pop %v62
    %v64 = vmul.f32 %v62, %v63
    %v65 = vsub.f32 1.0, %v64
    %v66 = vmul.f32 %v63, %v65
    %v67 = vadd.f32 %v63, %v66
    %vm68 = vweird.f32 %v62
    %vm69 = vweird.f32 %v63
    %vm70 = vmor %vm68, %vm69
    %v71 = vsel %vm70, %v63, %v67
    %v72 = vand.u32 2147483647, %v62
    %vm73 = vcmp.eq.f32.partialorder %v72, 8.507059e+37
    %v74 = vand.u32 %v62, 2147483648
    %v75 = vor.u32 1.1754944e-38, %v74
    %v76 = vsel %vm73, %v75, %v71
    %v77 = vld [vmem:[%s1] sm:$0xff]
    %v78 = vld [vmem:[%s1 + $0x8] sm:$0xff]
    %v79 = vld [vmem:[%s1 + $0x10] sm:$0xff]
    %v80 = vld [vmem:[%s1 + $0x18] sm:$0xff]
    %v81 = vld [vmem:[%s1 + $0x20] sm:$0xff]
    %v82 = vld [vmem:[%s1 + $0x28] sm:$0xff]
    %v83 = vld [vmem:[%s1 + $0x30] sm:$0xff]
    %85 = vset.pattern.permute.xlu0 0
    %86 = vperm.xlu0 %85, %v43
    %v87 = vpop.permute.xlu0 %86
    %v89 = vsub.f32 %v77, %v87
    %v90 = vsub.f32 %v78, %v87
    %v91 = vsub.f32 %v79, %v87
    %v92 = vsub.f32 %v80, %v87
    %v93 = vsub.f32 %v81, %v87
    %v94 = vsub.f32 %v82, %v87
    %v95 = vsub.f32 %v83, %v87
    %97 = vset.pattern.permute.xlu0 0
    %98 = vperm.xlu0 %97, %v76
    %v99 = vpop.permute.xlu0 %98
    %v101 = vmul.f32 %v89, %v99
    %v102 = vmul.f32 %v90, %v99
    %v103 = vmul.f32 %v91, %v99
    %v104 = vmul.f32 %v92, %v99
    %v105 = vmul.f32 %v93, %v99
    %v106 = vmul.f32 %v94, %v99
    %v107 = vmul.f32 %v95, %v99
    %v108 = vld [vmem:[#allocation2 + $0x1f8] sm:$0xf]
    %v109 = vld [vmem:[#allocation2 + $0x1c0] sm:$0xff]
    %v110 = vld [vmem:[#allocation2 + $0x1c8] sm:$0xff]
    %v111 = vld [vmem:[#allocation2 + $0x1d0] sm:$0xff]
    %v112 = vld [vmem:[#allocation2 + $0x1d8] sm:$0xff]
    %v113 = vld [vmem:[#allocation2 + $0x1e0] sm:$0xff]
    %v114 = vld [vmem:[#allocation2 + $0x1e8] sm:$0xff]
    %v115 = vld [vmem:[#allocation2 + $0x1f0] sm:$0xff]
    %vm116 = vcmask 31744
    %v118 = vsel %vm116, %v101, 0
    %v121 = vsel %vm116, %v102, 0
    %v124 = vsel %vm116, %v103, 0
    %v127 = vsel %vm116, %v104, 0
    %v130 = vsel %vm116, %v105, 0
    %v133 = vsel %vm116, %v106, 0
    %v136 = vsel %vm116, %v107, 0
    %vm138 = vcmask 1043456
    %v140 = vsel %vm138, %v108, 0
    %142 = vmatpush.msra.mxu0 0.0
    %143 = vmatpush.msra.mxu0 0.0
    %144 = vmatpush.msra.mxu0 0.0
    %145 = vmatpush.msra.mxu0 0.0
    %146 = vmatpush.msra.mxu0 0.0
    %147 = vmatpush.msra.mxu0 0.0
    %148 = vmatpush.msra.mxu0 0.0
    %149 = vmatpush.msra.mxu0 0.0
    %150 = vmatpush.msra.mxu0 0.0
    %151 = vmatpush.msra.mxu0 0.0
    %152 = vmatpush.msra.mxu0 0.0
    %153 = vmatpush.msra.mxu0 0.0
    %154 = vmatpush.msra.mxu0 0.0
    %155 = vmatpush.msra.mxu0 0.0
    %156 = vmatpush.msra.mxu0 0.0
    %157 = vmatpush.msra.mxu0 %v140
    %158 = vmatmul.f32.gmra.mxu0 %v118
    %v159 = vpop.f32.mrf.mxu0
    %v160 = vadd.f32 %v109, %v159
    %161 = vmatmul.f32.gmra.mxu0 %v121
    %v162 = vpop.f32.mrf.mxu0
    %v163 = vadd.f32 %v110, %v162
    %164 = vmatmul.f32.gmra.mxu0 %v124
    %v165 = vpop.f32.mrf.mxu0
    %v166 = vadd.f32 %v111, %v165
    %167 = vmatmul.f32.gmra.mxu0 %v127
    %v168 = vpop.f32.mrf.mxu0
    %v169 = vadd.f32 %v112, %v168
    %170 = vmatmul.f32.gmra.mxu0 %v130
    %v171 = vpop.f32.mrf.mxu0
    %v172 = vadd.f32 %v113, %v171
    %173 = vmatmul.f32.gmra.mxu0 %v133
    %v174 = vpop.f32.mrf.mxu0
    %v175 = vadd.f32 %v114, %v174
    %176 = vmatmul.f32.gmra.mxu0 %v136
    %v177 = vpop.f32.mrf.mxu0
    %v178 = vadd.f32 %v115, %v177
    %179 = vdwg.mxu0
    %v180 = vld [vmem:[#allocation2] sm:$0xff]
    %v181 = vld [vmem:[#allocation2 + $0x8] sm:$0xff]
    %v182 = vld [vmem:[#allocation2 + $0x10] sm:$0xff]
    %v183 = vld [vmem:[#allocation2 + $0x18] sm:$0xff]
    %v184 = vld [vmem:[#allocation2 + $0x20] sm:$0xff]
    %v185 = vld [vmem:[#allocation2 + $0x28] sm:$0xff]
    %v186 = vld [vmem:[#allocation2 + $0x30] sm:$0xff]
    %v187 = vld [vmem:[#allocation2 + $0x38] sm:$0xff]
    %v188 = vld [vmem:[#allocation2 + $0x40] sm:$0xff]
    %v189 = vld [vmem:[#allocation2 + $0x48] sm:$0xff]
    %v190 = vld [vmem:[#allocation2 + $0x50] sm:$0xff]
    %v191 = vld [vmem:[#allocation2 + $0x58] sm:$0xff]
    %v192 = vld [vmem:[#allocation2 + $0x60] sm:$0xff]
    %v193 = vld [vmem:[#allocation2 + $0x68] sm:$0xff]
    %v194 = vld [vmem:[#allocation2 + $0x70] sm:$0xff]
    %v195 = vld [vmem:[#allocation2 + $0x78] sm:$0xff]
    %v196 = vld [vmem:[#allocation2 + $0x80] sm:$0xff]
    %v197 = vld [vmem:[#allocation2 + $0x88] sm:$0xff]
    %v198 = vld [vmem:[#allocation2 + $0x90] sm:$0xff]
    %v199 = vld [vmem:[#allocation2 + $0x98] sm:$0xff]
    %v200 = vld [vmem:[#allocation2 + $0xa0] sm:$0xff]
    %v201 = vld [vmem:[#allocation2 + $0xa8] sm:$0xff]
    %v202 = vld [vmem:[#allocation2 + $0xb0] sm:$0xff]
    %v203 = vld [vmem:[#allocation2 + $0xb8] sm:$0xff]
    %v204 = vld [vmem:[#allocation2 + $0xc0] sm:$0xff]
    %v205 = vld [vmem:[#allocation2 + $0xc8] sm:$0xff]
    %v206 = vld [vmem:[#allocation2 + $0xd0] sm:$0xff]
    %v207 = vld [vmem:[#allocation2 + $0xd8] sm:$0xff]
    %v208 = vld [vmem:[#allocation2 + $0xe0] sm:$0xff]
    %v209 = vld [vmem:[#allocation2 + $0xe8] sm:$0xff]
    %v210 = vld [vmem:[#allocation2 + $0xf0] sm:$0xff]
    %v211 = vld [vmem:[#allocation2 + $0xf8] sm:$0xff]
    %v212 = vld [vmem:[#allocation2 + $0x100] sm:$0xff]
    %v213 = vld [vmem:[#allocation2 + $0x108] sm:$0xff]
    %v214 = vld [vmem:[#allocation2 + $0x110] sm:$0xff]
    %v215 = vld [vmem:[#allocation2 + $0x118] sm:$0xff]
    %v216 = vld [vmem:[#allocation2 + $0x120] sm:$0xff]
    %v217 = vld [vmem:[#allocation2 + $0x128] sm:$0xff]
    %v218 = vld [vmem:[#allocation2 + $0x130] sm:$0xff]
    %v219 = vld [vmem:[#allocation2 + $0x138] sm:$0xff]
    %v220 = vld [vmem:[#allocation2 + $0x140] sm:$0xff]
    %v221 = vld [vmem:[#allocation2 + $0x148] sm:$0xff]
    %v222 = vld [vmem:[#allocation2 + $0x150] sm:$0xff]
    %v223 = vld [vmem:[#allocation2 + $0x158] sm:$0xff]
    %v224 = vld [vmem:[#allocation2 + $0x160] sm:$0xff]
    %v225 = vld [vmem:[#allocation2 + $0x168] sm:$0xff]
    %v226 = vld [vmem:[#allocation2 + $0x170] sm:$0xff]
    %v227 = vld [vmem:[#allocation2 + $0x178] sm:$0xff]
    %v228 = vld [vmem:[#allocation2 + $0x180] sm:$0xff]
    %v229 = vld [vmem:[#allocation2 + $0x188] sm:$0xff]
    %v230 = vld [vmem:[#allocation2 + $0x190] sm:$0xff]
    %v231 = vld [vmem:[#allocation2 + $0x198] sm:$0xff]
    %v232 = vld [vmem:[#allocation2 + $0x1a0] sm:$0xff]
    %v233 = vld [vmem:[#allocation2 + $0x1a8] sm:$0xff]
    %v234 = vld [vmem:[#allocation2 + $0x1b0] sm:$0xff]
    %v235 = vld [vmem:[#allocation2 + $0x1b8] sm:$0xff]
    %v236 = vld [vmem:[#allocation2 + $0x320] sm:$0x1]
    %v237 = vld [vmem:[#allocation2 + $0x321] sm:$0x1]
    %v238 = vld [vmem:[#allocation2 + $0x322] sm:$0x1]
    %v239 = vld [vmem:[#allocation2 + $0x323] sm:$0x1]
    %v240 = vld [vmem:[#allocation2 + $0x324] sm:$0x1]
    %v241 = vld [vmem:[#allocation2 + $0x325] sm:$0x1]
    %v242 = vld [vmem:[#allocation2 + $0x326] sm:$0x1]
    %v243 = vld [vmem:[#allocation2 + $0x327] sm:$0x1]
    %v244 = vld [vmem:[#allocation2 + $0x328] sm:$0x1]
    %v245 = vld [vmem:[#allocation2 + $0x329] sm:$0x1]
    %v246 = vld [vmem:[#allocation2 + $0x200] sm:$0xff]
    %v247 = vld [vmem:[#allocation2 + $0x208] sm:$0xff]
    %v248 = vld [vmem:[#allocation2 + $0x210] sm:$0xff]
    %v249 = vld [vmem:[#allocation2 + $0x218] sm:$0xff]
    %v250 = vld [vmem:[#allocation2 + $0x220] sm:$0xff]
    %v251 = vld [vmem:[#allocation2 + $0x228] sm:$0xff]
    %v252 = vld [vmem:[#allocation2 + $0x230] sm:$0xff]
    %v253 = vld [vmem:[#allocation2 + $0x238] sm:$0xff]
    %v254 = vld [vmem:[#allocation2 + $0x240] sm:$0xff]
    %v255 = vld [vmem:[#allocation2 + $0x248] sm:$0xff]
    %v256 = vld [vmem:[#allocation2 + $0x250] sm:$0xff]
    %v257 = vld [vmem:[#allocation2 + $0x258] sm:$0xff]
    %v258 = vld [vmem:[#allocation2 + $0x260] sm:$0xff]
    %v259 = vld [vmem:[#allocation2 + $0x268] sm:$0xff]
    %v260 = vld [vmem:[#allocation2 + $0x270] sm:$0xff]
    %v261 = vld [vmem:[#allocation2 + $0x278] sm:$0xff]
    %v262 = vld [vmem:[#allocation2 + $0x280] sm:$0xff]
    %v263 = vld [vmem:[#allocation2 + $0x288] sm:$0xff]
    %v264 = vld [vmem:[#allocation2 + $0x290] sm:$0xff]
    %v265 = vld [vmem:[#allocation2 + $0x298] sm:$0xff]
    %v266 = vld [vmem:[#allocation2 + $0x2a0] sm:$0xff]
    %v267 = vld [vmem:[#allocation2 + $0x2a8] sm:$0xff]
    %v268 = vld [vmem:[#allocation2 + $0x2b0] sm:$0xff]
    %v269 = vld [vmem:[#allocation2 + $0x2b8] sm:$0xff]
    %v270 = vld [vmem:[#allocation2 + $0x2c0] sm:$0xff]
    %v271 = vld [vmem:[#allocation2 + $0x2c8] sm:$0xff]
    %v272 = vld [vmem:[#allocation2 + $0x2d0] sm:$0xff]
    %v273 = vld [vmem:[#allocation2 + $0x2d8] sm:$0xff]
    %v274 = vld [vmem:[#allocation2 + $0x2e0] sm:$0xff]
    %v275 = vld [vmem:[#allocation2 + $0x2e8] sm:$0xff]
    %v276 = vld [vmem:[#allocation2 + $0x2f0] sm:$0xff]
    %v277 = vld [vmem:[#allocation2 + $0x2f8] sm:$0xff]
    %v278 = vld [vmem:[#allocation2 + $0x300] sm:$0xff]
    %v279 = vld [vmem:[#allocation2 + $0x308] sm:$0xff]
    %v280 = vld [vmem:[#allocation2 + $0x310] sm:$0xff]
    %v281 = vld [vmem:[#allocation2 + $0x318] sm:$0xff]
    %vm282 = vcmask 261120
    %v283 = vsel %vm282, %v160, 0.0
    %284 = vadd.xlane.f32.xlu0 %v283
    %v285 = vpop.xlane.xlu0 %284
    %v286 = vsel %vm282, %v163, 0.0
    %287 = vadd.xlane.f32.xlu0 %v286
    %v288 = vpop.xlane.xlu0 %287
    %v289 = vsel %vm282, %v166, 0.0
    %290 = vadd.xlane.f32.xlu0 %v289
    %v291 = vpop.xlane.xlu0 %290
    %v292 = vsel %vm282, %v169, 0.0
    %293 = vadd.xlane.f32.xlu0 %v292
    %v294 = vpop.xlane.xlu0 %293
    %v295 = vsel %vm282, %v172, 0.0
    %296 = vadd.xlane.f32.xlu0 %v295
    %v297 = vpop.xlane.xlu0 %296
    %v298 = vsel %vm282, %v175, 0.0
    %299 = vadd.xlane.f32.xlu0 %v298
    %v300 = vpop.xlane.xlu0 %299
    %v301 = vsel %vm282, %v178, 0.0
    %302 = vadd.xlane.f32.xlu0 %v301
    %v303 = vpop.xlane.xlu0 %302
    %v304 = vrcp.pop 32.0
    %v305 = vmul.f32 32.0, %v304
    %v306 = vsub.f32 1.0, %v305
    %v307 = vmul.f32 %v304, %v306
    %v308 = vadd.f32 %v304, %v307
    %vm309 = vweird.f32 %v304
    %v310 = vsel %vm309, %v304, %v308
    %v311 = vmul.f32 %v285, %v310
    %v312 = vmul.f32 %v288, %v310
    %v313 = vmul.f32 %v291, %v310
    %v314 = vmul.f32 %v294, %v310
    %v315 = vmul.f32 %v297, %v310
    %v316 = vmul.f32 %v300, %v310
    %v317 = vmul.f32 %v303, %v310
    %v318 = vsub.f32 %v160, %v311
    %v319 = vsub.f32 %v163, %v312
    %v320 = vsub.f32 %v166, %v313
    %v321 = vsub.f32 %v169, %v314
    %v322 = vsub.f32 %v172, %v315
    %v323 = vsub.f32 %v175, %v316
    %v324 = vsub.f32 %v178, %v317
    %v325 = vmul.f32 %v318, %v318
    %v326 = vmul.f32 %v319, %v319
    %v327 = vmul.f32 %v320, %v320
    %v328 = vmul.f32 %v321, %v321
    %v329 = vmul.f32 %v322, %v322
    %v330 = vmul.f32 %v323, %v323
    %v331 = vmul.f32 %v324, %v324
    %v332 = vsel %vm282, %v325, 0.0
    %333 = vadd.xlane.f32.xlu0 %v332
    %v334 = vpop.xlane.xlu0 %333
    %v335 = vsel %vm282, %v326, 0.0
    %336 = vadd.xlane.f32.xlu0 %v335
    %v337 = vpop.xlane.xlu0 %336
    %v338 = vsel %vm282, %v327, 0.0
    %339 = vadd.xlane.f32.xlu0 %v338
    %v340 = vpop.xlane.xlu0 %339
    %v341 = vsel %vm282, %v328, 0.0
    %342 = vadd.xlane.f32.xlu0 %v341
    %v343 = vpop.xlane.xlu0 %342
    %v344 = vsel %vm282, %v329, 0.0
    %345 = vadd.xlane.f32.xlu0 %v344
    %v346 = vpop.xlane.xlu0 %345
    %v347 = vsel %vm282, %v330, 0.0
    %348 = vadd.xlane.f32.xlu0 %v347
    %v349 = vpop.xlane.xlu0 %348
    %v350 = vsel %vm282, %v331, 0.0
    %351 = vadd.xlane.f32.xlu0 %v350
    %v352 = vpop.xlane.xlu0 %351
    %v353 = vmul.f32 %v334, %v310
    %v354 = vmul.f32 %v337, %v310
    %v355 = vmul.f32 %v340, %v310
    %v356 = vmul.f32 %v343, %v310
    %v357 = vmul.f32 %v346, %v310
    %v358 = vmul.f32 %v349, %v310
    %v359 = vmul.f32 %v352, %v310
    %v360 = vadd.f32 %v353, 1e-05
    %v361 = vadd.f32 %v354, 1e-05
    %v362 = vadd.f32 %v355, 1e-05
    %v363 = vadd.f32 %v356, 1e-05
    %v364 = vadd.f32 %v357, 1e-05
    %v365 = vadd.f32 %v358, 1e-05
    %v366 = vadd.f32 %v359, 1e-05
    %v367 = vrsqrt.pop %v360
    %v368 = vmul.f32 %v367, %v360
    %v369 = vmul.f32 %v368, %v367
    %v370 = vmul.f32 0.5, %v369
    %v371 = vsub.f32 1.5, %v370
    %v372 = vmul.f32 %v367, %v371
    %vm373 = vweird.f32 %v360
    %vm374 = vweird.f32 %v367
    %vm375 = vmor %vm373, %vm374
    %v376 = vsel %vm375, %v367, %v372
    %v377 = vrsqrt.pop %v361
    %v378 = vmul.f32 %v377, %v361
    %v379 = vmul.f32 %v378, %v377
    %v380 = vmul.f32 0.5, %v379
    %v381 = vsub.f32 1.5, %v380
    %v382 = vmul.f32 %v377, %v381
    %vm383 = vweird.f32 %v361
    %vm384 = vweird.f32 %v377
    %vm385 = vmor %vm383, %vm384
    %v386 = vsel %vm385, %v377, %v382
    %v387 = vrsqrt.pop %v362
    %v388 = vmul.f32 %v387, %v362
    %v389 = vmul.f32 %v388, %v387
    %v390 = vmul.f32 0.5, %v389
    %v391 = vsub.f32 1.5, %v390
    %v392 = vmul.f32 %v387, %v391
    %vm393 = vweird.f32 %v362
    %vm394 = vweird.f32 %v387
    %vm395 = vmor %vm393, %vm394
    %v396 = vsel %vm395, %v387, %v392
    %v397 = vrsqrt.pop %v363
    %v398 = vmul.f32 %v397, %v363
    %v399 = vmul.f32 %v398, %v397
    %v400 = vmul.f32 0.5, %v399
    %v401 = vsub.f32 1.5, %v400
    %v402 = vmul.f32 %v397, %v401
    %vm403 = vweird.f32 %v363
    %vm404 = vweird.f32 %v397
    %vm405 = vmor %vm403, %vm404
    %v406 = vsel %vm405, %v397, %v402
    %v407 = vrsqrt.pop %v364
    %v408 = vmul.f32 %v407, %v364
    %v409 = vmul.f32 %v408, %v407
    %v410 = vmul.f32 0.5, %v409
    %v411 = vsub.f32 1.5, %v410
    %v412 = vmul.f32 %v407, %v411
    %vm413 = vweird.f32 %v364
    %vm414 = vweird.f32 %v407
    %vm415 = vmor %vm413, %vm414
    %v416 = vsel %vm415, %v407, %v412
    %v417 = vrsqrt.pop %v365
    %v418 = vmul.f32 %v417, %v365
    %v419 = vmul.f32 %v418, %v417
    %v420 = vmul.f32 0.5, %v419
    %v421 = vsub.f32 1.5, %v420
    %v422 = vmul.f32 %v417, %v421
    %vm423 = vweird.f32 %v365
    %vm424 = vweird.f32 %v417
    %vm425 = vmor %vm423, %vm424
    %v426 = vsel %vm425, %v417, %v422
    %v427 = vrsqrt.pop %v366
    %v428 = vmul.f32 %v427, %v366
    %v429 = vmul.f32 %v428, %v427
    %v430 = vmul.f32 0.5, %v429
    %v431 = vsub.f32 1.5, %v430
    %v432 = vmul.f32 %v427, %v431
    %vm433 = vweird.f32 %v366
    %vm434 = vweird.f32 %v427
    %vm435 = vmor %vm433, %vm434
    %v436 = vsel %vm435, %v427, %v432
    %v437 = vmul.f32 %v318, %v376
    %v438 = vmul.f32 %v319, %v386
    %v439 = vmul.f32 %v320, %v396
    %v440 = vmul.f32 %v321, %v406
    %v441 = vmul.f32 %v322, %v416
    %v442 = vmul.f32 %v323, %v426
    %v443 = vmul.f32 %v324, %v436
    %v444 = vperm.slane %v236, 0
    %v445 = vmul.f32 %v437, %v444
    %v446 = vmul.f32 %v438, %v444
    %v447 = vmul.f32 %v439, %v444
    %v448 = vmul.f32 %v440, %v444
    %v449 = vmul.f32 %v441, %v444
    %v450 = vmul.f32 %v442, %v444
    %v451 = vmul.f32 %v443, %v444
    %v452 = vperm.slane %v237, 0
    %v453 = vadd.f32 %v445, %v452
    %v454 = vadd.f32 %v446, %v452
    %v455 = vadd.f32 %v447, %v452
    %v456 = vadd.f32 %v448, %v452
    %v457 = vadd.f32 %v449, %v452
    %v458 = vadd.f32 %v450, %v452
    %v459 = vadd.f32 %v451, %v452
    %v460 = vperm.slane %v238, 0
    %v462 = vsel %vm282, %v453, 0
    %v465 = vsel %vm282, %v454, 0
    %v468 = vsel %vm282, %v455, 0
    %v471 = vsel %vm282, %v456, 0
    %v474 = vsel %vm282, %v457, 0
    %v477 = vsel %vm282, %v458, 0
    %v480 = vsel %vm282, %v459, 0
    %482 = vmatpush.msra.mxu0 0.0
    %483 = vmatpush.msra.mxu0 0.0
    %484 = vmatpush.msra.mxu0 0.0
    %485 = vmatpush.msra.mxu0 0.0
    %486 = vmatpush.msra.mxu0 0.0
    %487 = vmatpush.msra.mxu0 0.0
    %488 = vmatpush.msra.mxu0 0.0
    %489 = vmatpush.msra.mxu0 0.0
    %490 = vmatpush.msra.mxu0 0.0
    %491 = vmatpush.msra.mxu0 0.0
    %492 = vmatpush.msra.mxu0 0.0
    %493 = vmatpush.msra.mxu0 0.0
    %494 = vmatpush.msra.mxu0 %v249
    %495 = vmatpush.msra.mxu0 %v248
    %496 = vmatpush.msra.mxu0 %v247
    %497 = vmatpush.msra.mxu0 %v246
    %498 = vmatmul.f32.gmra.mxu0 %v462
    %v499 = vpop.f32.mrf.mxu0
    %v500 = vadd.f32 %v460, %v499
    %501 = vmatmul.f32.gmra.mxu0 %v465
    %v502 = vpop.f32.mrf.mxu0
    %v503 = vadd.f32 %v460, %v502
    %504 = vmatmul.f32.gmra.mxu0 %v468
    %v505 = vpop.f32.mrf.mxu0
    %v506 = vadd.f32 %v460, %v505
    %507 = vmatmul.f32.gmra.mxu0 %v471
    %v508 = vpop.f32.mrf.mxu0
    %v509 = vadd.f32 %v460, %v508
    %510 = vmatmul.f32.gmra.mxu0 %v474
    %v511 = vpop.f32.mrf.mxu0
    %v512 = vadd.f32 %v460, %v511
    %513 = vmatmul.f32.gmra.mxu0 %v477
    %v514 = vpop.f32.mrf.mxu0
    %v515 = vadd.f32 %v460, %v514
    %516 = vmatmul.f32.gmra.mxu0 %v480
    %v517 = vpop.f32.mrf.mxu0
    %v518 = vadd.f32 %v460, %v517
    %519 = vdwg.mxu0
    %v520 = vperm.slane %v239, 0
    %521 = vmatpush.msra.mxu0 0.0
    %522 = vmatpush.msra.mxu0 0.0
    %523 = vmatpush.msra.mxu0 0.0
    %524 = vmatpush.msra.mxu0 0.0
    %525 = vmatpush.msra.mxu0 0.0
    %526 = vmatpush.msra.mxu0 0.0
    %527 = vmatpush.msra.mxu0 0.0
    %528 = vmatpush.msra.mxu0 0.0
    %529 = vmatpush.msra.mxu0 0.0
    %530 = vmatpush.msra.mxu0 0.0
    %531 = vmatpush.msra.mxu0 0.0
    %532 = vmatpush.msra.mxu0 0.0
    %533 = vmatpush.msra.mxu0 %v253
    %534 = vmatpush.msra.mxu0 %v252
    %535 = vmatpush.msra.mxu0 %v251
    %536 = vmatpush.msra.mxu0 %v250
    %537 = vmatmul.f32.gmra.mxu0 %v462
    %v538 = vpop.f32.mrf.mxu0
    %v539 = vadd.f32 %v520, %v538
    %540 = vmatmul.f32.gmra.mxu0 %v465
    %v541 = vpop.f32.mrf.mxu0
    %v542 = vadd.f32 %v520, %v541
    %543 = vmatmul.f32.gmra.mxu0 %v468
    %v544 = vpop.f32.mrf.mxu0
    %v545 = vadd.f32 %v520, %v544
    %546 = vmatmul.f32.gmra.mxu0 %v471
    %v547 = vpop.f32.mrf.mxu0
    %v548 = vadd.f32 %v520, %v547
    %549 = vmatmul.f32.gmra.mxu0 %v474
    %v550 = vpop.f32.mrf.mxu0
    %v551 = vadd.f32 %v520, %v550
    %552 = vmatmul.f32.gmra.mxu0 %v477
    %v553 = vpop.f32.mrf.mxu0
    %v554 = vadd.f32 %v520, %v553
    %555 = vmatmul.f32.gmra.mxu0 %v480
    %v556 = vpop.f32.mrf.mxu0
    %v557 = vadd.f32 %v520, %v556
    %558 = vdwg.mxu0
    %v559 = vperm.slane %v240, 0
    %560 = vmatpush.msra.mxu0 0.0
    %561 = vmatpush.msra.mxu0 0.0
    %562 = vmatpush.msra.mxu0 0.0
    %563 = vmatpush.msra.mxu0 0.0
    %564 = vmatpush.msra.mxu0 0.0
    %565 = vmatpush.msra.mxu0 0.0
    %566 = vmatpush.msra.mxu0 0.0
    %567 = vmatpush.msra.mxu0 0.0
    %568 = vmatpush.msra.mxu0 0.0
    %569 = vmatpush.msra.mxu0 0.0
    %570 = vmatpush.msra.mxu0 0.0
    %571 = vmatpush.msra.mxu0 0.0
    %572 = vmatpush.msra.mxu0 %v257
    %573 = vmatpush.msra.mxu0 %v256
    %574 = vmatpush.msra.mxu0 %v255
    %575 = vmatpush.msra.mxu0 %v254
    %576 = vmatmul.f32.gmra.mxu0 %v462
    %v577 = vpop.f32.mrf.mxu0
    %v578 = vadd.f32 %v559, %v577
    %579 = vmatmul.f32.gmra.mxu0 %v465
    %v580 = vpop.f32.mrf.mxu0
    %v581 = vadd.f32 %v559, %v580
    %582 = vmatmul.f32.gmra.mxu0 %v468
    %v583 = vpop.f32.mrf.mxu0
    %v584 = vadd.f32 %v559, %v583
    %585 = vmatmul.f32.gmra.mxu0 %v471
    %v586 = vpop.f32.mrf.mxu0
    %v587 = vadd.f32 %v559, %v586
    %588 = vmatmul.f32.gmra.mxu0 %v474
    %v589 = vpop.f32.mrf.mxu0
    %v590 = vadd.f32 %v559, %v589
    %591 = vmatmul.f32.gmra.mxu0 %v477
    %v592 = vpop.f32.mrf.mxu0
    %v593 = vadd.f32 %v559, %v592
    %594 = vmatmul.f32.gmra.mxu0 %v480
    %v595 = vpop.f32.mrf.mxu0
    %v596 = vadd.f32 %v559, %v595
    %597 = vdwg.mxu0
    %v598 = vmul.f32 %v500, %v208
    %v599 = vmul.f32 %v503, %v209
    %v600 = vmul.f32 %v506, %v210
    %v601 = vmul.f32 %v509, %v211
    %v602 = vmul.f32 %v512, %v212
    %v603 = vmul.f32 %v515, %v213
    %v604 = vmul.f32 %v518, %v214
    %v605 = vmul.f32 %v500, %v215
    %v606 = vmul.f32 %v503, %v216
    %v607 = vmul.f32 %v506, %v217
    %v608 = vmul.f32 %v509, %v218
    %v609 = vmul.f32 %v512, %v219
    %v610 = vmul.f32 %v515, %v220
    %v611 = vmul.f32 %v518, %v221
    %v612 = vmul.f32 %v500, %v222
    %v613 = vmul.f32 %v503, %v223
    %v614 = vmul.f32 %v506, %v224
    %v615 = vmul.f32 %v509, %v225
    %v616 = vmul.f32 %v512, %v226
    %v617 = vmul.f32 %v515, %v227
    %v618 = vmul.f32 %v518, %v228
    %v619 = vmul.f32 %v500, %v229
    %v620 = vmul.f32 %v503, %v230
    %v621 = vmul.f32 %v506, %v231
    %v622 = vmul.f32 %v509, %v232
    %v623 = vmul.f32 %v512, %v233
    %v624 = vmul.f32 %v515, %v234
    %v625 = vmul.f32 %v518, %v235
    %v627 = vsel %vm282, %v598, 0
    %v630 = vsel %vm282, %v599, 0
    %v633 = vsel %vm282, %v600, 0
    %v636 = vsel %vm282, %v601, 0
    %v639 = vsel %vm282, %v602, 0
    %v642 = vsel %vm282, %v603, 0
    %v645 = vsel %vm282, %v604, 0
    %v648 = vsel %vm282, %v605, 0
    %v651 = vsel %vm282, %v606, 0
    %v654 = vsel %vm282, %v607, 0
    %v657 = vsel %vm282, %v608, 0
    %v660 = vsel %vm282, %v609, 0
    %v663 = vsel %vm282, %v610, 0
    %v666 = vsel %vm282, %v611, 0
    %v669 = vsel %vm282, %v612, 0
    %v672 = vsel %vm282, %v613, 0
    %v675 = vsel %vm282, %v614, 0
    %v678 = vsel %vm282, %v615, 0
    %v681 = vsel %vm282, %v616, 0
    %v684 = vsel %vm282, %v617, 0
    %v687 = vsel %vm282, %v618, 0
    %v690 = vsel %vm282, %v619, 0
    %v693 = vsel %vm282, %v620, 0
    %v696 = vsel %vm282, %v621, 0
    %v699 = vsel %vm282, %v622, 0
    %v702 = vsel %vm282, %v623, 0
    %v705 = vsel %vm282, %v624, 0
    %v708 = vsel %vm282, %v625, 0
    %v711 = vsel %vm282, %v539, 0
    %v714 = vsel %vm282, %v542, 0
    %v717 = vsel %vm282, %v545, 0
    %v720 = vsel %vm282, %v548, 0
    %v723 = vsel %vm282, %v551, 0
    %v726 = vsel %vm282, %v554, 0
    %v729 = vsel %vm282, %v557, 0
    %731 = vmatpush.xpose.msra.mxu0 0.0
    %732 = vmatpush.xpose.msra.mxu0 0.0
    %733 = vmatpush.xpose.msra.mxu0 0.0
    %734 = vmatpush.xpose.msra.mxu0 0.0
    %735 = vmatpush.xpose.msra.mxu0 0.0
    %736 = vmatpush.xpose.msra.mxu0 0.0
    %737 = vmatpush.xpose.msra.mxu0 0.0
    %738 = vmatpush.xpose.msra.mxu0 0.0
    %739 = vmatpush.xpose.msra.mxu0 0.0
    %740 = vmatpush.xpose.msra.mxu0 %v729
    %741 = vmatpush.xpose.msra.mxu0 %v726
    %742 = vmatpush.xpose.msra.mxu0 %v723
    %743 = vmatpush.xpose.msra.mxu0 %v720
    %744 = vmatpush.xpose.msra.mxu0 %v717
    %745 = vmatpush.xpose.msra.mxu0 %v714
    %746 = vmatpush.xpose.msra.mxu0 %v711
    %747 = vmatmul.f32.gmra.mxu0 %v627
    %v748 = vpop.f32.mrf.mxu0
    %v749 = vadd.f32 %v180, %v748
    %750 = vmatmul.f32.gmra.mxu0 %v630
    %v751 = vpop.f32.mrf.mxu0
    %v752 = vadd.f32 %v181, %v751
    %753 = vmatmul.f32.gmra.mxu0 %v633
    %v754 = vpop.f32.mrf.mxu0
    %v755 = vadd.f32 %v182, %v754
    %756 = vmatmul.f32.gmra.mxu0 %v636
    %v757 = vpop.f32.mrf.mxu0
    %v758 = vadd.f32 %v183, %v757
    %759 = vmatmul.f32.gmra.mxu0 %v639
    %v760 = vpop.f32.mrf.mxu0
    %v761 = vadd.f32 %v184, %v760
    %762 = vmatmul.f32.gmra.mxu0 %v642
    %v763 = vpop.f32.mrf.mxu0
    %v764 = vadd.f32 %v185, %v763
    %765 = vmatmul.f32.gmra.mxu0 %v645
    %v766 = vpop.f32.mrf.mxu0
    %v767 = vadd.f32 %v186, %v766
    %768 = vmatmul.f32.gmra.mxu0 %v648
    %v769 = vpop.f32.mrf.mxu0
    %v770 = vadd.f32 %v187, %v769
    %771 = vmatmul.f32.gmra.mxu0 %v651
    %v772 = vpop.f32.mrf.mxu0
    %v773 = vadd.f32 %v188, %v772
    %774 = vmatmul.f32.gmra.mxu0 %v654
    %v775 = vpop.f32.mrf.mxu0
    %v776 = vadd.f32 %v189, %v775
    %777 = vmatmul.f32.gmra.mxu0 %v657
    %v778 = vpop.f32.mrf.mxu0
    %v779 = vadd.f32 %v190, %v778
    %780 = vmatmul.f32.gmra.mxu0 %v660
    %v781 = vpop.f32.mrf.mxu0
    %v782 = vadd.f32 %v191, %v781
    %783 = vmatmul.f32.gmra.mxu0 %v663
    %v784 = vpop.f32.mrf.mxu0
    %v785 = vadd.f32 %v192, %v784
    %786 = vmatmul.f32.gmra.mxu0 %v666
    %v787 = vpop.f32.mrf.mxu0
    %v788 = vadd.f32 %v193, %v787
    %789 = vmatmul.f32.gmra.mxu0 %v669
    %v790 = vpop.f32.mrf.mxu0
    %v791 = vadd.f32 %v194, %v790
    %792 = vmatmul.f32.gmra.mxu0 %v672
    %v793 = vpop.f32.mrf.mxu0
    %v794 = vadd.f32 %v195, %v793
    %795 = vmatmul.f32.gmra.mxu0 %v675
    %v796 = vpop.f32.mrf.mxu0
    %v797 = vadd.f32 %v196, %v796
    %798 = vmatmul.f32.gmra.mxu0 %v678
    %v799 = vpop.f32.mrf.mxu0
    %v800 = vadd.f32 %v197, %v799
    %801 = vmatmul.f32.gmra.mxu0 %v681
    %v802 = vpop.f32.mrf.mxu0
    %v803 = vadd.f32 %v198, %v802
    %804 = vmatmul.f32.gmra.mxu0 %v684
    %v805 = vpop.f32.mrf.mxu0
    %v806 = vadd.f32 %v199, %v805
    %807 = vmatmul.f32.gmra.mxu0 %v687
    %v808 = vpop.f32.mrf.mxu0
    %v809 = vadd.f32 %v200, %v808
    %810 = vmatmul.f32.gmra.mxu0 %v690
    %v811 = vpop.f32.mrf.mxu0
    %v812 = vadd.f32 %v201, %v811
    %813 = vmatmul.f32.gmra.mxu0 %v693
    %v814 = vpop.f32.mrf.mxu0
    %v815 = vadd.f32 %v202, %v814
    %816 = vmatmul.f32.gmra.mxu0 %v696
    %v817 = vpop.f32.mrf.mxu0
    %v818 = vadd.f32 %v203, %v817
    %819 = vmatmul.f32.gmra.mxu0 %v699
    %v820 = vpop.f32.mrf.mxu0
    %v821 = vadd.f32 %v204, %v820
    %822 = vmatmul.f32.gmra.mxu0 %v702
    %v823 = vpop.f32.mrf.mxu0
    %v824 = vadd.f32 %v205, %v823
    %825 = vmatmul.f32.gmra.mxu0 %v705
    %v826 = vpop.f32.mrf.mxu0
    %v827 = vadd.f32 %v206, %v826
    %828 = vmatmul.f32.gmra.mxu0 %v708
    %v829 = vpop.f32.mrf.mxu0
    %v830 = vadd.f32 %v207, %v829
    %831 = vdwg.mxu0
    %vm832 = vcmask 457728
    %v833 = vsel %vm832, %v749, -inf
    %834 = vmax.xlane.f32.xlu0 %v833
    %v835 = vpop.xlane.xlu0 %834
    %v836 = vsel %vm832, %v752, -inf
    %837 = vmax.xlane.f32.xlu0 %v836
    %v838 = vpop.xlane.xlu0 %837
    %v839 = vsel %vm832, %v755, -inf
    %840 = vmax.xlane.f32.xlu0 %v839
    %v841 = vpop.xlane.xlu0 %840
    %v842 = vsel %vm832, %v758, -inf
    %843 = vmax.xlane.f32.xlu0 %v842
    %v844 = vpop.xlane.xlu0 %843
    %v845 = vsel %vm832, %v761, -inf
    %846 = vmax.xlane.f32.xlu0 %v845
    %v847 = vpop.xlane.xlu0 %846
    %v848 = vsel %vm832, %v764, -inf
    %849 = vmax.xlane.f32.xlu0 %v848
    %v850 = vpop.xlane.xlu0 %849
    %v851 = vsel %vm832, %v767, -inf
    %852 = vmax.xlane.f32.xlu0 %v851
    %v853 = vpop.xlane.xlu0 %852
    %v854 = vsel %vm832, %v770, -inf
    %855 = vmax.xlane.f32.xlu0 %v854
    %v856 = vpop.xlane.xlu0 %855
    %v857 = vsel %vm832, %v773, -inf
    %858 = vmax.xlane.f32.xlu0 %v857
    %v859 = vpop.xlane.xlu0 %858
    %v860 = vsel %vm832, %v776, -inf
    %861 = vmax.xlane.f32.xlu0 %v860
    %v862 = vpop.xlane.xlu0 %861
    %v863 = vsel %vm832, %v779, -inf
    %864 = vmax.xlane.f32.xlu0 %v863
    %v865 = vpop.xlane.xlu0 %864
    %v866 = vsel %vm832, %v782, -inf
    %867 = vmax.xlane.f32.xlu0 %v866
    %v868 = vpop.xlane.xlu0 %867
    %v869 = vsel %vm832, %v785, -inf
    %870 = vmax.xlane.f32.xlu0 %v869
    %v871 = vpop.xlane.xlu0 %870
    %v872 = vsel %vm832, %v788, -inf
    %873 = vmax.xlane.f32.xlu0 %v872
    %v874 = vpop.xlane.xlu0 %873
    %v875 = vsel %vm832, %v791, -inf
    %876 = vmax.xlane.f32.xlu0 %v875
    %v877 = vpop.xlane.xlu0 %876
    %v878 = vsel %vm832, %v794, -inf
    %879 = vmax.xlane.f32.xlu0 %v878
    %v880 = vpop.xlane.xlu0 %879
    %v881 = vsel %vm832, %v797, -inf
    %882 = vmax.xlane.f32.xlu0 %v881
    %v883 = vpop.xlane.xlu0 %882
    %v884 = vsel %vm832, %v800, -inf
    %885 = vmax.xlane.f32.xlu0 %v884
    %v886 = vpop.xlane.xlu0 %885
    %v887 = vsel %vm832, %v803, -inf
    %888 = vmax.xlane.f32.xlu0 %v887
    %v889 = vpop.xlane.xlu0 %888
    %v890 = vsel %vm832, %v806, -inf
    %891 = vmax.xlane.f32.xlu0 %v890
    %v892 = vpop.xlane.xlu0 %891
    %v893 = vsel %vm832, %v809, -inf
    %894 = vmax.xlane.f32.xlu0 %v893
    %v895 = vpop.xlane.xlu0 %894
    %v896 = vsel %vm832, %v812, -inf
    %897 = vmax.xlane.f32.xlu0 %v896
    %v898 = vpop.xlane.xlu0 %897
    %v899 = vsel %vm832, %v815, -inf
    %900 = vmax.xlane.f32.xlu0 %v899
    %v901 = vpop.xlane.xlu0 %900
    %v902 = vsel %vm832, %v818, -inf
    %903 = vmax.xlane.f32.xlu0 %v902
    %v904 = vpop.xlane.xlu0 %903
    %v905 = vsel %vm832, %v821, -inf
    %906 = vmax.xlane.f32.xlu0 %v905
    %v907 = vpop.xlane.xlu0 %906
    %v908 = vsel %vm832, %v824, -inf
    %909 = vmax.xlane.f32.xlu0 %v908
    %v910 = vpop.xlane.xlu0 %909
    %v911 = vsel %vm832, %v827, -inf
    %912 = vmax.xlane.f32.xlu0 %v911
    %v913 = vpop.xlane.xlu0 %912
    %v914 = vsel %vm832, %v830, -inf
    %915 = vmax.xlane.f32.xlu0 %v914
    %v916 = vpop.xlane.xlu0 %915
    %v917 = vsub.f32 %v749, %v835
    %v918 = vsub.f32 %v752, %v838
    %v919 = vsub.f32 %v755, %v841
    %v920 = vsub.f32 %v758, %v844
    %v921 = vsub.f32 %v761, %v847
    %v922 = vsub.f32 %v764, %v850
    %v923 = vsub.f32 %v767, %v853
    %v924 = vsub.f32 %v770, %v856
    %v925 = vsub.f32 %v773, %v859
    %v926 = vsub.f32 %v776, %v862
    %v927 = vsub.f32 %v779, %v865
    %v928 = vsub.f32 %v782, %v868
    %v929 = vsub.f32 %v785, %v871
    %v930 = vsub.f32 %v788, %v874
    %v931 = vsub.f32 %v791, %v877
    %v932 = vsub.f32 %v794, %v880
    %v933 = vsub.f32 %v797, %v883
    %v934 = vsub.f32 %v800, %v886
    %v935 = vsub.f32 %v803, %v889
    %v936 = vsub.f32 %v806, %v892
    %v937 = vsub.f32 %v809, %v895
    %v938 = vsub.f32 %v812, %v898
    %v939 = vsub.f32 %v815, %v901
    %v940 = vsub.f32 %v818, %v904
    %v941 = vsub.f32 %v821, %v907
    %v942 = vsub.f32 %v824, %v910
    %v943 = vsub.f32 %v827, %v913
    %v944 = vsub.f32 %v830, %v916
    %v945 = vmul.f32 %v917, 1.442695
    %v946 = vpow.pop %v945
    %v947 = vmul.f32 %v918, 1.442695
    %v948 = vpow.pop %v947
    %v949 = vmul.f32 %v919, 1.442695
    %v950 = vpow.pop %v949
    %v951 = vmul.f32 %v920, 1.442695
    %v952 = vpow.pop %v951
    %v953 = vmul.f32 %v921, 1.442695
    %v954 = vpow.pop %v953
    %v955 = vmul.f32 %v922, 1.442695
    %v956 = vpow.pop %v955
    %v957 = vmul.f32 %v923, 1.442695
    %v958 = vpow.pop %v957
    %v959 = vmul.f32 %v924, 1.442695
    %v960 = vpow.pop %v959
    %v961 = vmul.f32 %v925, 1.442695
    %v962 = vpow.pop %v961
    %v963 = vmul.f32 %v926, 1.442695
    %v964 = vpow.pop %v963
    %v965 = vmul.f32 %v927, 1.442695
    %v966 = vpow.pop %v965
    %v967 = vmul.f32 %v928, 1.442695
    %v968 = vpow.pop %v967
    %v969 = vmul.f32 %v929, 1.442695
    %v970 = vpow.pop %v969
    %v971 = vmul.f32 %v930, 1.442695
    %v972 = vpow.pop %v971
    %v973 = vmul.f32 %v931, 1.442695
    %v974 = vpow.pop %v973
    %v975 = vmul.f32 %v932, 1.442695
    %v976 = vpow.pop %v975
    %v977 = vmul.f32 %v933, 1.442695
    %v978 = vpow.pop %v977
    %v979 = vmul.f32 %v934, 1.442695
    %v980 = vpow.pop %v979
    %v981 = vmul.f32 %v935, 1.442695
    %v982 = vpow.pop %v981
    %v983 = vmul.f32 %v936, 1.442695
    %v984 = vpow.pop %v983
    %v985 = vmul.f32 %v937, 1.442695
    %v986 = vpow.pop %v985
    %v987 = vmul.f32 %v938, 1.442695
    %v988 = vpow.pop %v987
    %v989 = vmul.f32 %v939, 1.442695
    %v990 = vpow.pop %v989
    %v991 = vmul.f32 %v940, 1.442695
    %v992 = vpow.pop %v991
    %v993 = vmul.f32 %v941, 1.442695
    %v994 = vpow.pop %v993
    %v995 = vmul.f32 %v942, 1.442695
    %v996 = vpow.pop %v995
    %v997 = vmul.f32 %v943, 1.442695
    %v998 = vpow.pop %v997
    %v999 = vmul.f32 %v944, 1.442695
    %v1000 = vpow.pop %v999
    %v1001 = vsel %vm832, %v946, 0.0
    %1002 = vadd.xlane.f32.xlu0 %v1001
    %v1003 = vpop.xlane.xlu0 %1002
    %v1004 = vsel %vm832, %v948, 0.0
    %1005 = vadd.xlane.f32.xlu0 %v1004
    %v1006 = vpop.xlane.xlu0 %1005
    %v1007 = vsel %vm832, %v950, 0.0
    %1008 = vadd.xlane.f32.xlu0 %v1007
    %v1009 = vpop.xlane.xlu0 %1008
    %v1010 = vsel %vm832, %v952, 0.0
    %1011 = vadd.xlane.f32.xlu0 %v1010
    %v1012 = vpop.xlane.xlu0 %1011
    %v1013 = vsel %vm832, %v954, 0.0
    %1014 = vadd.xlane.f32.xlu0 %v1013
    %v1015 = vpop.xlane.xlu0 %1014
    %v1016 = vsel %vm832, %v956, 0.0
    %1017 = vadd.xlane.f32.xlu0 %v1016
    %v1018 = vpop.xlane.xlu0 %1017
    %v1019 = vsel %vm832, %v958, 0.0
    %1020 = vadd.xlane.f32.xlu0 %v1019
    %v1021 = vpop.xlane.xlu0 %1020
    %v1022 = vsel %vm832, %v960, 0.0
    %1023 = vadd.xlane.f32.xlu0 %v1022
    %v1024 = vpop.xlane.xlu0 %1023
    %v1025 = vsel %vm832, %v962, 0.0
    %1026 = vadd.xlane.f32.xlu0 %v1025
    %v1027 = vpop.xlane.xlu0 %1026
    %v1028 = vsel %vm832, %v964, 0.0
    %1029 = vadd.xlane.f32.xlu0 %v1028
    %v1030 = vpop.xlane.xlu0 %1029
    %v1031 = vsel %vm832, %v966, 0.0
    %1032 = vadd.xlane.f32.xlu0 %v1031
    %v1033 = vpop.xlane.xlu0 %1032
    %v1034 = vsel %vm832, %v968, 0.0
    %1035 = vadd.xlane.f32.xlu0 %v1034
    %v1036 = vpop.xlane.xlu0 %1035
    %v1037 = vsel %vm832, %v970, 0.0
    %1038 = vadd.xlane.f32.xlu0 %v1037
    %v1039 = vpop.xlane.xlu0 %1038
    %v1040 = vsel %vm832, %v972, 0.0
    %1041 = vadd.xlane.f32.xlu0 %v1040
    %v1042 = vpop.xlane.xlu0 %1041
    %v1043 = vsel %vm832, %v974, 0.0
    %1044 = vadd.xlane.f32.xlu0 %v1043
    %v1045 = vpop.xlane.xlu0 %1044
    %v1046 = vsel %vm832, %v976, 0.0
    %1047 = vadd.xlane.f32.xlu0 %v1046
    %v1048 = vpop.xlane.xlu0 %1047
    %v1049 = vsel %vm832, %v978, 0.0
    %1050 = vadd.xlane.f32.xlu0 %v1049
    %v1051 = vpop.xlane.xlu0 %1050
    %v1052 = vsel %vm832, %v980, 0.0
    %1053 = vadd.xlane.f32.xlu0 %v1052
    %v1054 = vpop.xlane.xlu0 %1053
    %v1055 = vsel %vm832, %v982, 0.0
    %1056 = vadd.xlane.f32.xlu0 %v1055
    %v1057 = vpop.xlane.xlu0 %1056
    %v1058 = vsel %vm832, %v984, 0.0
    %1059 = vadd.xlane.f32.xlu0 %v1058
    %v1060 = vpop.xlane.xlu0 %1059
    %v1061 = vsel %vm832, %v986, 0.0
    %1062 = vadd.xlane.f32.xlu0 %v1061
    %v1063 = vpop.xlane.xlu0 %1062
    %v1064 = vsel %vm832, %v988, 0.0
    %1065 = vadd.xlane.f32.xlu0 %v1064
    %v1066 = vpop.xlane.xlu0 %1065
    %v1067 = vsel %vm832, %v990, 0.0
    %1068 = vadd.xlane.f32.xlu0 %v1067
    %v1069 = vpop.xlane.xlu0 %1068
    %v1070 = vsel %vm832, %v992, 0.0
    %1071 = vadd.xlane.f32.xlu0 %v1070
    %v1072 = vpop.xlane.xlu0 %1071
    %v1073 = vsel %vm832, %v994, 0.0
    %1074 = vadd.xlane.f32.xlu0 %v1073
    %v1075 = vpop.xlane.xlu0 %1074
    %v1076 = vsel %vm832, %v996, 0.0
    %1077 = vadd.xlane.f32.xlu0 %v1076
    %v1078 = vpop.xlane.xlu0 %1077
    %v1079 = vsel %vm832, %v998, 0.0
    %1080 = vadd.xlane.f32.xlu0 %v1079
    %v1081 = vpop.xlane.xlu0 %1080
    %v1082 = vsel %vm832, %v1000, 0.0
    %1083 = vadd.xlane.f32.xlu0 %v1082
    %v1084 = vpop.xlane.xlu0 %1083
    %v1085 = vrcp.pop %v1003
    %v1086 = vmul.f32 %v1003, %v1085
    %v1087 = vsub.f32 1.0, %v1086
    %v1088 = vmul.f32 %v1085, %v1087
    %v1089 = vadd.f32 %v1085, %v1088
    %vm1090 = vweird.f32 %v1003
    %vm1091 = vweird.f32 %v1085
    %vm1092 = vmor %vm1090, %vm1091
    %v1093 = vsel %vm1092, %v1085, %v1089
    %v1094 = vand.u32 2147483647, %v1003
    %vm1095 = vcmp.eq.f32.partialorder %v1094, 8.507059e+37
    %v1096 = vand.u32 %v1003, 2147483648
    %v1097 = vor.u32 1.1754944e-38, %v1096
    %v1098 = vsel %vm1095, %v1097, %v1093
    %v1099 = vrcp.pop %v1006
    %v1100 = vmul.f32 %v1006, %v1099
    %v1101 = vsub.f32 1.0, %v1100
    %v1102 = vmul.f32 %v1099, %v1101
    %v1103 = vadd.f32 %v1099, %v1102
    %vm1104 = vweird.f32 %v1006
    %vm1105 = vweird.f32 %v1099
    %vm1106 = vmor %vm1104, %vm1105
    %v1107 = vsel %vm1106, %v1099, %v1103
    %v1108 = vand.u32 2147483647, %v1006
    %vm1109 = vcmp.eq.f32.partialorder %v1108, 8.507059e+37
    %v1110 = vand.u32 %v1006, 2147483648
    %v1111 = vor.u32 1.1754944e-38, %v1110
    %v1112 = vsel %vm1109, %v1111, %v1107
    %v1113 = vrcp.pop %v1009
    %v1114 = vmul.f32 %v1009, %v1113
    %v1115 = vsub.f32 1.0, %v1114
    %v1116 = vmul.f32 %v1113, %v1115
    %v1117 = vadd.f32 %v1113, %v1116
    %vm1118 = vweird.f32 %v1009
    %vm1119 = vweird.f32 %v1113
    %vm1120 = vmor %vm1118, %vm1119
    %v1121 = vsel %vm1120, %v1113, %v1117
    %v1122 = vand.u32 2147483647, %v1009
    %vm1123 = vcmp.eq.f32.partialorder %v1122, 8.507059e+37
    %v1124 = vand.u32 %v1009, 2147483648
    %v1125 = vor.u32 1.1754944e-38, %v1124
    %v1126 = vsel %vm1123, %v1125, %v1121
    %v1127 = vrcp.pop %v1012
    %v1128 = vmul.f32 %v1012, %v1127
    %v1129 = vsub.f32 1.0, %v1128
    %v1130 = vmul.f32 %v1127, %v1129
    %v1131 = vadd.f32 %v1127, %v1130
    %vm1132 = vweird.f32 %v1012
    %vm1133 = vweird.f32 %v1127
    %vm1134 = vmor %vm1132, %vm1133
    %v1135 = vsel %vm1134, %v1127, %v1131
    %v1136 = vand.u32 2147483647, %v1012
    %vm1137 = vcmp.eq.f32.partialorder %v1136, 8.507059e+37
    %v1138 = vand.u32 %v1012, 2147483648
    %v1139 = vor.u32 1.1754944e-38, %v1138
    %v1140 = vsel %vm1137, %v1139, %v1135
    %v1141 = vrcp.pop %v1015
    %v1142 = vmul.f32 %v1015, %v1141
    %v1143 = vsub.f32 1.0, %v1142
    %v1144 = vmul.f32 %v1141, %v1143
    %v1145 = vadd.f32 %v1141, %v1144
    %vm1146 = vweird.f32 %v1015
    %vm1147 = vweird.f32 %v1141
    %vm1148 = vmor %vm1146, %vm1147
    %v1149 = vsel %vm1148, %v1141, %v1145
    %v1150 = vand.u32 2147483647, %v1015
    %vm1151 = vcmp.eq.f32.partialorder %v1150, 8.507059e+37
    %v1152 = vand.u32 %v1015, 2147483648
    %v1153 = vor.u32 1.1754944e-38, %v1152
    %v1154 = vsel %vm1151, %v1153, %v1149
    %v1155 = vrcp.pop %v1018
    %v1156 = vmul.f32 %v1018, %v1155
    %v1157 = vsub.f32 1.0, %v1156
    %v1158 = vmul.f32 %v1155, %v1157
    %v1159 = vadd.f32 %v1155, %v1158
    %vm1160 = vweird.f32 %v1018
    %vm1161 = vweird.f32 %v1155
    %vm1162 = vmor %vm1160, %vm1161
    %v1163 = vsel %vm1162, %v1155, %v1159
    %v1164 = vand.u32 2147483647, %v1018
    %vm1165 = vcmp.eq.f32.partialorder %v1164, 8.507059e+37
    %v1166 = vand.u32 %v1018, 2147483648
    %v1167 = vor.u32 1.1754944e-38, %v1166
    %v1168 = vsel %vm1165, %v1167, %v1163
    %v1169 = vrcp.pop %v1021
    %v1170 = vmul.f32 %v1021, %v1169
    %v1171 = vsub.f32 1.0, %v1170
    %v1172 = vmul.f32 %v1169, %v1171
    %v1173 = vadd.f32 %v1169, %v1172
    %vm1174 = vweird.f32 %v1021
    %vm1175 = vweird.f32 %v1169
    %vm1176 = vmor %vm1174, %vm1175
    %v1177 = vsel %vm1176, %v1169, %v1173
    %v1178 = vand.u32 2147483647, %v1021
    %vm1179 = vcmp.eq.f32.partialorder %v1178, 8.507059e+37
    %v1180 = vand.u32 %v1021, 2147483648
    %v1181 = vor.u32 1.1754944e-38, %v1180
    %v1182 = vsel %vm1179, %v1181, %v1177
    %v1183 = vrcp.pop %v1024
    %v1184 = vmul.f32 %v1024, %v1183
    %v1185 = vsub.f32 1.0, %v1184
    %v1186 = vmul.f32 %v1183, %v1185
    %v1187 = vadd.f32 %v1183, %v1186
    %vm1188 = vweird.f32 %v1024
    %vm1189 = vweird.f32 %v1183
    %vm1190 = vmor %vm1188, %vm1189
    %v1191 = vsel %vm1190, %v1183, %v1187
    %v1192 = vand.u32 2147483647, %v1024
    %vm1193 = vcmp.eq.f32.partialorder %v1192, 8.507059e+37
    %v1194 = vand.u32 %v1024, 2147483648
    %v1195 = vor.u32 1.1754944e-38, %v1194
    %v1196 = vsel %vm1193, %v1195, %v1191
    %v1197 = vrcp.pop %v1027
    %v1198 = vmul.f32 %v1027, %v1197
    %v1199 = vsub.f32 1.0, %v1198
    %v1200 = vmul.f32 %v1197, %v1199
    %v1201 = vadd.f32 %v1197, %v1200
    %vm1202 = vweird.f32 %v1027
    %vm1203 = vweird.f32 %v1197
    %vm1204 = vmor %vm1202, %vm1203
    %v1205 = vsel %vm1204, %v1197, %v1201
    %v1206 = vand.u32 2147483647, %v1027
    %vm1207 = vcmp.eq.f32.partialorder %v1206, 8.507059e+37
    %v1208 = vand.u32 %v1027, 2147483648
    %v1209 = vor.u32 1.1754944e-38, %v1208
    %v1210 = vsel %vm1207, %v1209, %v1205
    %v1211 = vrcp.pop %v1030
    %v1212 = vmul.f32 %v1030, %v1211
    %v1213 = vsub.f32 1.0, %v1212
    %v1214 = vmul.f32 %v1211, %v1213
    %v1215 = vadd.f32 %v1211, %v1214
    %vm1216 = vweird.f32 %v1030
    %vm1217 = vweird.f32 %v1211
    %vm1218 = vmor %vm1216, %vm1217
    %v1219 = vsel %vm1218, %v1211, %v1215
    %v1220 = vand.u32 2147483647, %v1030
    %vm1221 = vcmp.eq.f32.partialorder %v1220, 8.507059e+37
    %v1222 = vand.u32 %v1030, 2147483648
    %v1223 = vor.u32 1.1754944e-38, %v1222
    %v1224 = vsel %vm1221, %v1223, %v1219
    %v1225 = vrcp.pop %v1033
    %v1226 = vmul.f32 %v1033, %v1225
    %v1227 = vsub.f32 1.0, %v1226
    %v1228 = vmul.f32 %v1225, %v1227
    %v1229 = vadd.f32 %v1225, %v1228
    %vm1230 = vweird.f32 %v1033
    %vm1231 = vweird.f32 %v1225
    %vm1232 = vmor %vm1230, %vm1231
    %v1233 = vsel %vm1232, %v1225, %v1229
    %v1234 = vand.u32 2147483647, %v1033
    %vm1235 = vcmp.eq.f32.partialorder %v1234, 8.507059e+37
    %v1236 = vand.u32 %v1033, 2147483648
    %v1237 = vor.u32 1.1754944e-38, %v1236
    %v1238 = vsel %vm1235, %v1237, %v1233
    %v1239 = vrcp.pop %v1036
    %v1240 = vmul.f32 %v1036, %v1239
    %v1241 = vsub.f32 1.0, %v1240
    %v1242 = vmul.f32 %v1239, %v1241
    %v1243 = vadd.f32 %v1239, %v1242
    %vm1244 = vweird.f32 %v1036
    %vm1245 = vweird.f32 %v1239
    %vm1246 = vmor %vm1244, %vm1245
    %v1247 = vsel %vm1246, %v1239, %v1243
    %v1248 = vand.u32 2147483647, %v1036
    %vm1249 = vcmp.eq.f32.partialorder %v1248, 8.507059e+37
    %v1250 = vand.u32 %v1036, 2147483648
    %v1251 = vor.u32 1.1754944e-38, %v1250
    %v1252 = vsel %vm1249, %v1251, %v1247
    %v1253 = vrcp.pop %v1039
    %v1254 = vmul.f32 %v1039, %v1253
    %v1255 = vsub.f32 1.0, %v1254
    %v1256 = vmul.f32 %v1253, %v1255
    %v1257 = vadd.f32 %v1253, %v1256
    %vm1258 = vweird.f32 %v1039
    %vm1259 = vweird.f32 %v1253
    %vm1260 = vmor %vm1258, %vm1259
    %v1261 = vsel %vm1260, %v1253, %v1257
    %v1262 = vand.u32 2147483647, %v1039
    %vm1263 = vcmp.eq.f32.partialorder %v1262, 8.507059e+37
    %v1264 = vand.u32 %v1039, 2147483648
    %v1265 = vor.u32 1.1754944e-38, %v1264
    %v1266 = vsel %vm1263, %v1265, %v1261
    %v1267 = vrcp.pop %v1042
    %v1268 = vmul.f32 %v1042, %v1267
    %v1269 = vsub.f32 1.0, %v1268
    %v1270 = vmul.f32 %v1267, %v1269
    %v1271 = vadd.f32 %v1267, %v1270
    %vm1272 = vweird.f32 %v1042
    %vm1273 = vweird.f32 %v1267
    %vm1274 = vmor %vm1272, %vm1273
    %v1275 = vsel %vm1274, %v1267, %v1271
    %v1276 = vand.u32 2147483647, %v1042
    %vm1277 = vcmp.eq.f32.partialorder %v1276, 8.507059e+37
    %v1278 = vand.u32 %v1042, 2147483648
    %v1279 = vor.u32 1.1754944e-38, %v1278
    %v1280 = vsel %vm1277, %v1279, %v1275
    %v1281 = vrcp.pop %v1045
    %v1282 = vmul.f32 %v1045, %v1281
    %v1283 = vsub.f32 1.0, %v1282
    %v1284 = vmul.f32 %v1281, %v1283
    %v1285 = vadd.f32 %v1281, %v1284
    %vm1286 = vweird.f32 %v1045
    %vm1287 = vweird.f32 %v1281
    %vm1288 = vmor %vm1286, %vm1287
    %v1289 = vsel %vm1288, %v1281, %v1285
    %v1290 = vand.u32 2147483647, %v1045
    %vm1291 = vcmp.eq.f32.partialorder %v1290, 8.507059e+37
    %v1292 = vand.u32 %v1045, 2147483648
    %v1293 = vor.u32 1.1754944e-38, %v1292
    %v1294 = vsel %vm1291, %v1293, %v1289
    %v1295 = vrcp.pop %v1048
    %v1296 = vmul.f32 %v1048, %v1295
    %v1297 = vsub.f32 1.0, %v1296
    %v1298 = vmul.f32 %v1295, %v1297
    %v1299 = vadd.f32 %v1295, %v1298
    %vm1300 = vweird.f32 %v1048
    %vm1301 = vweird.f32 %v1295
    %vm1302 = vmor %vm1300, %vm1301
    %v1303 = vsel %vm1302, %v1295, %v1299
    %v1304 = vand.u32 2147483647, %v1048
    %vm1305 = vcmp.eq.f32.partialorder %v1304, 8.507059e+37
    %v1306 = vand.u32 %v1048, 2147483648
    %v1307 = vor.u32 1.1754944e-38, %v1306
    %v1308 = vsel %vm1305, %v1307, %v1303
    %v1309 = vrcp.pop %v1051
    %v1310 = vmul.f32 %v1051, %v1309
    %v1311 = vsub.f32 1.0, %v1310
    %v1312 = vmul.f32 %v1309, %v1311
    %v1313 = vadd.f32 %v1309, %v1312
    %vm1314 = vweird.f32 %v1051
    %vm1315 = vweird.f32 %v1309
    %vm1316 = vmor %vm1314, %vm1315
    %v1317 = vsel %vm1316, %v1309, %v1313
    %v1318 = vand.u32 2147483647, %v1051
    %vm1319 = vcmp.eq.f32.partialorder %v1318, 8.507059e+37
    %v1320 = vand.u32 %v1051, 2147483648
    %v1321 = vor.u32 1.1754944e-38, %v1320
    %v1322 = vsel %vm1319, %v1321, %v1317
    %v1323 = vrcp.pop %v1054
    %v1324 = vmul.f32 %v1054, %v1323
    %v1325 = vsub.f32 1.0, %v1324
    %v1326 = vmul.f32 %v1323, %v1325
    %v1327 = vadd.f32 %v1323, %v1326
    %vm1328 = vweird.f32 %v1054
    %vm1329 = vweird.f32 %v1323
    %vm1330 = vmor %vm1328, %vm1329
    %v1331 = vsel %vm1330, %v1323, %v1327
    %v1332 = vand.u32 2147483647, %v1054
    %vm1333 = vcmp.eq.f32.partialorder %v1332, 8.507059e+37
    %v1334 = vand.u32 %v1054, 2147483648
    %v1335 = vor.u32 1.1754944e-38, %v1334
    %v1336 = vsel %vm1333, %v1335, %v1331
    %v1337 = vrcp.pop %v1057
    %v1338 = vmul.f32 %v1057, %v1337
    %v1339 = vsub.f32 1.0, %v1338
    %v1340 = vmul.f32 %v1337, %v1339
    %v1341 = vadd.f32 %v1337, %v1340
    %vm1342 = vweird.f32 %v1057
    %vm1343 = vweird.f32 %v1337
    %vm1344 = vmor %vm1342, %vm1343
    %v1345 = vsel %vm1344, %v1337, %v1341
    %v1346 = vand.u32 2147483647, %v1057
    %vm1347 = vcmp.eq.f32.partialorder %v1346, 8.507059e+37
    %v1348 = vand.u32 %v1057, 2147483648
    %v1349 = vor.u32 1.1754944e-38, %v1348
    %v1350 = vsel %vm1347, %v1349, %v1345
    %v1351 = vrcp.pop %v1060
    %v1352 = vmul.f32 %v1060, %v1351
    %v1353 = vsub.f32 1.0, %v1352
    %v1354 = vmul.f32 %v1351, %v1353
    %v1355 = vadd.f32 %v1351, %v1354
    %vm1356 = vweird.f32 %v1060
    %vm1357 = vweird.f32 %v1351
    %vm1358 = vmor %vm1356, %vm1357
    %v1359 = vsel %vm1358, %v1351, %v1355
    %v1360 = vand.u32 2147483647, %v1060
    %vm1361 = vcmp.eq.f32.partialorder %v1360, 8.507059e+37
    %v1362 = vand.u32 %v1060, 2147483648
    %v1363 = vor.u32 1.1754944e-38, %v1362
    %v1364 = vsel %vm1361, %v1363, %v1359
    %v1365 = vrcp.pop %v1063
    %v1366 = vmul.f32 %v1063, %v1365
    %v1367 = vsub.f32 1.0, %v1366
    %v1368 = vmul.f32 %v1365, %v1367
    %v1369 = vadd.f32 %v1365, %v1368
    %vm1370 = vweird.f32 %v1063
    %vm1371 = vweird.f32 %v1365
    %vm1372 = vmor %vm1370, %vm1371
    %v1373 = vsel %vm1372, %v1365, %v1369
    %v1374 = vand.u32 2147483647, %v1063
    %vm1375 = vcmp.eq.f32.partialorder %v1374, 8.507059e+37
    %v1376 = vand.u32 %v1063, 2147483648
    %v1377 = vor.u32 1.1754944e-38, %v1376
    %v1378 = vsel %vm1375, %v1377, %v1373
    %v1379 = vrcp.pop %v1066
    %v1380 = vmul.f32 %v1066, %v1379
    %v1381 = vsub.f32 1.0, %v1380
    %v1382 = vmul.f32 %v1379, %v1381
    %v1383 = vadd.f32 %v1379, %v1382
    %vm1384 = vweird.f32 %v1066
    %vm1385 = vweird.f32 %v1379
    %vm1386 = vmor %vm1384, %vm1385
    %v1387 = vsel %vm1386, %v1379, %v1383
    %v1388 = vand.u32 2147483647, %v1066
    %vm1389 = vcmp.eq.f32.partialorder %v1388, 8.507059e+37
    %v1390 = vand.u32 %v1066, 2147483648
    %v1391 = vor.u32 1.1754944e-38, %v1390
    %v1392 = vsel %vm1389, %v1391, %v1387
    %v1393 = vrcp.pop %v1069
    %v1394 = vmul.f32 %v1069, %v1393
    %v1395 = vsub.f32 1.0, %v1394
    %v1396 = vmul.f32 %v1393, %v1395
    %v1397 = vadd.f32 %v1393, %v1396
    %vm1398 = vweird.f32 %v1069
    %vm1399 = vweird.f32 %v1393
    %vm1400 = vmor %vm1398, %vm1399
    %v1401 = vsel %vm1400, %v1393, %v1397
    %v1402 = vand.u32 2147483647, %v1069
    %vm1403 = vcmp.eq.f32.partialorder %v1402, 8.507059e+37
    %v1404 = vand.u32 %v1069, 2147483648
    %v1405 = vor.u32 1.1754944e-38, %v1404
    %v1406 = vsel %vm1403, %v1405, %v1401
    %v1407 = vrcp.pop %v1072
    %v1408 = vmul.f32 %v1072, %v1407
    %v1409 = vsub.f32 1.0, %v1408
    %v1410 = vmul.f32 %v1407, %v1409
    %v1411 = vadd.f32 %v1407, %v1410
    %vm1412 = vweird.f32 %v1072
    %vm1413 = vweird.f32 %v1407
    %vm1414 = vmor %vm1412, %vm1413
    %v1415 = vsel %vm1414, %v1407, %v1411
    %v1416 = vand.u32 2147483647, %v1072
    %vm1417 = vcmp.eq.f32.partialorder %v1416, 8.507059e+37
    %v1418 = vand.u32 %v1072, 2147483648
    %v1419 = vor.u32 1.1754944e-38, %v1418
    %v1420 = vsel %vm1417, %v1419, %v1415
    %v1421 = vrcp.pop %v1075
    %v1422 = vmul.f32 %v1075, %v1421
    %v1423 = vsub.f32 1.0, %v1422
    %v1424 = vmul.f32 %v1421, %v1423
    %v1425 = vadd.f32 %v1421, %v1424
    %vm1426 = vweird.f32 %v1075
    %vm1427 = vweird.f32 %v1421
    %vm1428 = vmor %vm1426, %vm1427
    %v1429 = vsel %vm1428, %v1421, %v1425
    %v1430 = vand.u32 2147483647, %v1075
    %vm1431 = vcmp.eq.f32.partialorder %v1430, 8.507059e+37
    %v1432 = vand.u32 %v1075, 2147483648
    %v1433 = vor.u32 1.1754944e-38, %v1432
    %v1434 = vsel %vm1431, %v1433, %v1429
    %v1435 = vrcp.pop %v1078
    %v1436 = vmul.f32 %v1078, %v1435
    %v1437 = vsub.f32 1.0, %v1436
    %v1438 = vmul.f32 %v1435, %v1437
    %v1439 = vadd.f32 %v1435, %v1438
    %vm1440 = vweird.f32 %v1078
    %vm1441 = vweird.f32 %v1435
    %vm1442 = vmor %vm1440, %vm1441
    %v1443 = vsel %vm1442, %v1435, %v1439
    %v1444 = vand.u32 2147483647, %v1078
    %vm1445 = vcmp.eq.f32.partialorder %v1444, 8.507059e+37
    %v1446 = vand.u32 %v1078, 2147483648
    %v1447 = vor.u32 1.1754944e-38, %v1446
    %v1448 = vsel %vm1445, %v1447, %v1443
    %v1449 = vrcp.pop %v1081
    %v1450 = vmul.f32 %v1081, %v1449
    %v1451 = vsub.f32 1.0, %v1450
    %v1452 = vmul.f32 %v1449, %v1451
    %v1453 = vadd.f32 %v1449, %v1452
    %vm1454 = vweird.f32 %v1081
    %vm1455 = vweird.f32 %v1449
    %vm1456 = vmor %vm1454, %vm1455
    %v1457 = vsel %vm1456, %v1449, %v1453
    %v1458 = vand.u32 2147483647, %v1081
    %vm1459 = vcmp.eq.f32.partialorder %v1458, 8.507059e+37
    %v1460 = vand.u32 %v1081, 2147483648
    %v1461 = vor.u32 1.1754944e-38, %v1460
    %v1462 = vsel %vm1459, %v1461, %v1457
    %v1463 = vrcp.pop %v1084
    %v1464 = vmul.f32 %v1084, %v1463
    %v1465 = vsub.f32 1.0, %v1464
    %v1466 = vmul.f32 %v1463, %v1465
    %v1467 = vadd.f32 %v1463, %v1466
    %vm1468 = vweird.f32 %v1084
    %vm1469 = vweird.f32 %v1463
    %vm1470 = vmor %vm1468, %vm1469
    %v1471 = vsel %vm1470, %v1463, %v1467
    %v1472 = vand.u32 2147483647, %v1084
    %vm1473 = vcmp.eq.f32.partialorder %v1472, 8.507059e+37
    %v1474 = vand.u32 %v1084, 2147483648
    %v1475 = vor.u32 1.1754944e-38, %v1474
    %v1476 = vsel %vm1473, %v1475, %v1471
    %v1477 = vmul.f32 %v946, %v1098
    %v1478 = vmul.f32 %v948, %v1112
    %v1479 = vmul.f32 %v950, %v1126
    %v1480 = vmul.f32 %v952, %v1140
    %v1481 = vmul.f32 %v954, %v1154
    %v1482 = vmul.f32 %v956, %v1168
    %v1483 = vmul.f32 %v958, %v1182
    %v1484 = vmul.f32 %v960, %v1196
    %v1485 = vmul.f32 %v962, %v1210
    %v1486 = vmul.f32 %v964, %v1224
    %v1487 = vmul.f32 %v966, %v1238
    %v1488 = vmul.f32 %v968, %v1252
    %v1489 = vmul.f32 %v970, %v1266
    %v1490 = vmul.f32 %v972, %v1280
    %v1491 = vmul.f32 %v974, %v1294
    %v1492 = vmul.f32 %v976, %v1308
    %v1493 = vmul.f32 %v978, %v1322
    %v1494 = vmul.f32 %v980, %v1336
    %v1495 = vmul.f32 %v982, %v1350
    %v1496 = vmul.f32 %v984, %v1364
    %v1497 = vmul.f32 %v986, %v1378
    %v1498 = vmul.f32 %v988, %v1392
    %v1499 = vmul.f32 %v990, %v1406
    %v1500 = vmul.f32 %v992, %v1420
    %v1501 = vmul.f32 %v994, %v1434
    %v1502 = vmul.f32 %v996, %v1448
    %v1503 = vmul.f32 %v998, %v1462
    %v1504 = vmul.f32 %v1000, %v1476
    %v1506 = vsel %vm832, %v1477, 0
    %v1509 = vsel %vm832, %v1478, 0
    %v1512 = vsel %vm832, %v1479, 0
    %v1515 = vsel %vm832, %v1480, 0
    %v1518 = vsel %vm832, %v1481, 0
    %v1521 = vsel %vm832, %v1482, 0
    %v1524 = vsel %vm832, %v1483, 0
    %v1527 = vsel %vm832, %v1484, 0
    %v1530 = vsel %vm832, %v1485, 0
    %v1533 = vsel %vm832, %v1486, 0
    %v1536 = vsel %vm832, %v1487, 0
    %v1539 = vsel %vm832, %v1488, 0
    %v1542 = vsel %vm832, %v1489, 0
    %v1545 = vsel %vm832, %v1490, 0
    %v1548 = vsel %vm832, %v1491, 0
    %v1551 = vsel %vm832, %v1492, 0
    %v1554 = vsel %vm832, %v1493, 0
    %v1557 = vsel %vm832, %v1494, 0
    %v1560 = vsel %vm832, %v1495, 0
    %v1563 = vsel %vm832, %v1496, 0
    %v1566 = vsel %vm832, %v1497, 0
    %v1569 = vsel %vm832, %v1498, 0
    %v1572 = vsel %vm832, %v1499, 0
    %v1575 = vsel %vm832, %v1500, 0
    %v1578 = vsel %vm832, %v1501, 0
    %v1581 = vsel %vm832, %v1502, 0
    %v1584 = vsel %vm832, %v1503, 0
    %v1587 = vsel %vm832, %v1504, 0
    %1589 = vmatpush.msra.mxu0 0.0
    %1590 = vmatpush.msra.mxu0 0.0
    %1591 = vmatpush.msra.mxu0 0.0
    %1592 = vmatpush.msra.mxu0 0.0
    %1593 = vmatpush.msra.mxu0 0.0
    %1594 = vmatpush.msra.mxu0 0.0
    %1595 = vmatpush.msra.mxu0 0.0
    %1596 = vmatpush.msra.mxu0 0.0
    %1597 = vmatpush.msra.mxu0 0.0
    %1598 = vmatpush.msra.mxu0 %v596
    %1599 = vmatpush.msra.mxu0 %v593
    %1600 = vmatpush.msra.mxu0 %v590
    %1601 = vmatpush.msra.mxu0 %v587
    %1602 = vmatpush.msra.mxu0 %v584
    %1603 = vmatpush.msra.mxu0 %v581
    %1604 = vmatpush.msra.mxu0 %v578
    %1605 = vmatmul.f32.gmra.mxu0 %v1506
    %v1606 = vpop.f32.mrf.mxu0
    %v1607 = vadd.f32 0.0, %v1606
    %1608 = vmatmul.f32.gmra.mxu0 %v1509
    %v1609 = vpop.f32.mrf.mxu0
    %v1610 = vadd.f32 0.0, %v1609
    %1611 = vmatmul.f32.gmra.mxu0 %v1512
    %v1612 = vpop.f32.mrf.mxu0
    %v1613 = vadd.f32 0.0, %v1612
    %1614 = vmatmul.f32.gmra.mxu0 %v1515
    %v1615 = vpop.f32.mrf.mxu0
    %v1616 = vadd.f32 0.0, %v1615
    %1617 = vmatmul.f32.gmra.mxu0 %v1518
    %v1618 = vpop.f32.mrf.mxu0
    %v1619 = vadd.f32 0.0, %v1618
    %1620 = vmatmul.f32.gmra.mxu0 %v1521
    %v1621 = vpop.f32.mrf.mxu0
    %v1622 = vadd.f32 0.0, %v1621
    %1623 = vmatmul.f32.gmra.mxu0 %v1524
    %v1624 = vpop.f32.mrf.mxu0
    %v1625 = vadd.f32 0.0, %v1624
    %1626 = vmatmul.f32.gmra.mxu0 %v1527
    %v1627 = vpop.f32.mrf.mxu0
    %v1628 = vadd.f32 0.0, %v1627
    %1629 = vmatmul.f32.gmra.mxu0 %v1530
    %v1630 = vpop.f32.mrf.mxu0
    %v1631 = vadd.f32 0.0, %v1630
    %1632 = vmatmul.f32.gmra.mxu0 %v1533
    %v1633 = vpop.f32.mrf.mxu0
    %v1634 = vadd.f32 0.0, %v1633
    %1635 = vmatmul.f32.gmra.mxu0 %v1536
    %v1636 = vpop.f32.mrf.mxu0
    %v1637 = vadd.f32 0.0, %v1636
    %1638 = vmatmul.f32.gmra.mxu0 %v1539
    %v1639 = vpop.f32.mrf.mxu0
    %v1640 = vadd.f32 0.0, %v1639
    %1641 = vmatmul.f32.gmra.mxu0 %v1542
    %v1642 = vpop.f32.mrf.mxu0
    %v1643 = vadd.f32 0.0, %v1642
    %1644 = vmatmul.f32.gmra.mxu0 %v1545
    %v1645 = vpop.f32.mrf.mxu0
    %v1646 = vadd.f32 0.0, %v1645
    %1647 = vmatmul.f32.gmra.mxu0 %v1548
    %v1648 = vpop.f32.mrf.mxu0
    %v1649 = vadd.f32 0.0, %v1648
    %1650 = vmatmul.f32.gmra.mxu0 %v1551
    %v1651 = vpop.f32.mrf.mxu0
    %v1652 = vadd.f32 0.0, %v1651
    %1653 = vmatmul.f32.gmra.mxu0 %v1554
    %v1654 = vpop.f32.mrf.mxu0
    %v1655 = vadd.f32 0.0, %v1654
    %1656 = vmatmul.f32.gmra.mxu0 %v1557
    %v1657 = vpop.f32.mrf.mxu0
    %v1658 = vadd.f32 0.0, %v1657
    %1659 = vmatmul.f32.gmra.mxu0 %v1560
    %v1660 = vpop.f32.mrf.mxu0
    %v1661 = vadd.f32 0.0, %v1660
    %1662 = vmatmul.f32.gmra.mxu0 %v1563
    %v1663 = vpop.f32.mrf.mxu0
    %v1664 = vadd.f32 0.0, %v1663
    %1665 = vmatmul.f32.gmra.mxu0 %v1566
    %v1666 = vpop.f32.mrf.mxu0
    %v1667 = vadd.f32 0.0, %v1666
    %1668 = vmatmul.f32.gmra.mxu0 %v1569
    %v1669 = vpop.f32.mrf.mxu0
    %v1670 = vadd.f32 0.0, %v1669
    %1671 = vmatmul.f32.gmra.mxu0 %v1572
    %v1672 = vpop.f32.mrf.mxu0
    %v1673 = vadd.f32 0.0, %v1672
    %1674 = vmatmul.f32.gmra.mxu0 %v1575
    %v1675 = vpop.f32.mrf.mxu0
    %v1676 = vadd.f32 0.0, %v1675
    %1677 = vmatmul.f32.gmra.mxu0 %v1578
    %v1678 = vpop.f32.mrf.mxu0
    %v1679 = vadd.f32 0.0, %v1678
    %1680 = vmatmul.f32.gmra.mxu0 %v1581
    %v1681 = vpop.f32.mrf.mxu0
    %v1682 = vadd.f32 0.0, %v1681
    %1683 = vmatmul.f32.gmra.mxu0 %v1584
    %v1684 = vpop.f32.mrf.mxu0
    %v1685 = vadd.f32 0.0, %v1684
    %1686 = vmatmul.f32.gmra.mxu0 %v1587
    %v1687 = vpop.f32.mrf.mxu0
    %v1688 = vadd.f32 0.0, %v1687
    %1689 = vdwg.mxu0
    %v1690 = vmul.f32 %v1607, %v208
    %v1691 = vmul.f32 %v1610, %v209
    %v1692 = vmul.f32 %v1613, %v210
    %v1693 = vmul.f32 %v1616, %v211
    %v1694 = vmul.f32 %v1619, %v212
    %v1695 = vmul.f32 %v1622, %v213
    %v1696 = vmul.f32 %v1625, %v214
    %v1697 = vmul.f32 %v1628, %v215
    %v1698 = vmul.f32 %v1631, %v216
    %v1699 = vmul.f32 %v1634, %v217
    %v1700 = vmul.f32 %v1637, %v218
    %v1701 = vmul.f32 %v1640, %v219
    %v1702 = vmul.f32 %v1643, %v220
    %v1703 = vmul.f32 %v1646, %v221
    %v1704 = vmul.f32 %v1649, %v222
    %v1705 = vmul.f32 %v1652, %v223
    %v1706 = vmul.f32 %v1655, %v224
    %v1707 = vmul.f32 %v1658, %v225
    %v1708 = vmul.f32 %v1661, %v226
    %v1709 = vmul.f32 %v1664, %v227
    %v1710 = vmul.f32 %v1667, %v228
    %v1711 = vmul.f32 %v1670, %v229
    %v1712 = vmul.f32 %v1673, %v230
    %v1713 = vmul.f32 %v1676, %v231
    %v1714 = vmul.f32 %v1679, %v232
    %v1715 = vmul.f32 %v1682, %v233
    %v1716 = vmul.f32 %v1685, %v234
    %v1717 = vmul.f32 %v1688, %v235
    %v1718 = vadd.f32 %v1690, %v1697
    %v1719 = vadd.f32 %v1691, %v1698
    %v1720 = vadd.f32 %v1692, %v1699
    %v1721 = vadd.f32 %v1693, %v1700
    %v1722 = vadd.f32 %v1694, %v1701
    %v1723 = vadd.f32 %v1695, %v1702
    %v1724 = vadd.f32 %v1696, %v1703
    %v1725 = vadd.f32 %v1718, %v1704
    %v1726 = vadd.f32 %v1719, %v1705
    %v1727 = vadd.f32 %v1720, %v1706
    %v1728 = vadd.f32 %v1721, %v1707
    %v1729 = vadd.f32 %v1722, %v1708
    %v1730 = vadd.f32 %v1723, %v1709
    %v1731 = vadd.f32 %v1724, %v1710
    %v1732 = vadd.f32 %v1725, %v1711
    %v1733 = vadd.f32 %v1726, %v1712
    %v1734 = vadd.f32 %v1727, %v1713
    %v1735 = vadd.f32 %v1728, %v1714
    %v1736 = vadd.f32 %v1729, %v1715
    %v1737 = vadd.f32 %v1730, %v1716
    %v1738 = vadd.f32 %v1731, %v1717
    %v1740 = vsel %vm282, %v1732, 0
    %v1743 = vsel %vm282, %v1733, 0
    %v1746 = vsel %vm282, %v1734, 0
    %v1749 = vsel %vm282, %v1735, 0
    %v1752 = vsel %vm282, %v1736, 0
    %v1755 = vsel %vm282, %v1737, 0
    %v1758 = vsel %vm282, %v1738, 0
    %1760 = vmatpush.msra.mxu0 0.0
    %1761 = vmatpush.msra.mxu0 0.0
    %1762 = vmatpush.msra.mxu0 0.0
    %1763 = vmatpush.msra.mxu0 0.0
    %1764 = vmatpush.msra.mxu0 0.0
    %1765 = vmatpush.msra.mxu0 0.0
    %1766 = vmatpush.msra.mxu0 0.0
    %1767 = vmatpush.msra.mxu0 0.0
    %1768 = vmatpush.msra.mxu0 0.0
    %1769 = vmatpush.msra.mxu0 0.0
    %1770 = vmatpush.msra.mxu0 0.0
    %1771 = vmatpush.msra.mxu0 0.0
    %1772 = vmatpush.msra.mxu0 %v261
    %1773 = vmatpush.msra.mxu0 %v260
    %1774 = vmatpush.msra.mxu0 %v259
    %1775 = vmatpush.msra.mxu0 %v258
    %1776 = vmatmul.f32.gmra.mxu0 %v1740
    %v1777 = vpop.f32.mrf.mxu0
    %v1778 = vadd.f32 0.0, %v1777
    %1779 = vmatmul.f32.gmra.mxu0 %v1743
    %v1780 = vpop.f32.mrf.mxu0
    %v1781 = vadd.f32 0.0, %v1780
    %1782 = vmatmul.f32.gmra.mxu0 %v1746
    %v1783 = vpop.f32.mrf.mxu0
    %v1784 = vadd.f32 0.0, %v1783
    %1785 = vmatmul.f32.gmra.mxu0 %v1749
    %v1786 = vpop.f32.mrf.mxu0
    %v1787 = vadd.f32 0.0, %v1786
    %1788 = vmatmul.f32.gmra.mxu0 %v1752
    %v1789 = vpop.f32.mrf.mxu0
    %v1790 = vadd.f32 0.0, %v1789
    %1791 = vmatmul.f32.gmra.mxu0 %v1755
    %v1792 = vpop.f32.mrf.mxu0
    %v1793 = vadd.f32 0.0, %v1792
    %1794 = vmatmul.f32.gmra.mxu0 %v1758
    %v1795 = vpop.f32.mrf.mxu0
    %v1796 = vadd.f32 0.0, %v1795
    %1797 = vdwg.mxu0
    %v1798 = vadd.f32 %v160, %v1778
    %v1799 = vadd.f32 %v163, %v1781
    %v1800 = vadd.f32 %v166, %v1784
    %v1801 = vadd.f32 %v169, %v1787
    %v1802 = vadd.f32 %v172, %v1790
    %v1803 = vadd.f32 %v175, %v1793
    %v1804 = vadd.f32 %v178, %v1796
    %v1805 = vperm.slane %v241, 0
    %v1806 = vadd.f32 %v1798, %v1805
    %v1807 = vadd.f32 %v1799, %v1805
    %v1808 = vadd.f32 %v1800, %v1805
    %v1809 = vadd.f32 %v1801, %v1805
    %v1810 = vadd.f32 %v1802, %v1805
    %v1811 = vadd.f32 %v1803, %v1805
    %v1812 = vadd.f32 %v1804, %v1805
    %v1813 = vsel %vm282, %v1806, 0.0
    %1814 = vadd.xlane.f32.xlu0 %v1813
    %v1815 = vpop.xlane.xlu0 %1814
    %v1816 = vsel %vm282, %v1807, 0.0
    %1817 = vadd.xlane.f32.xlu0 %v1816
    %v1818 = vpop.xlane.xlu0 %1817
    %v1819 = vsel %vm282, %v1808, 0.0
    %1820 = vadd.xlane.f32.xlu0 %v1819
    %v1821 = vpop.xlane.xlu0 %1820
    %v1822 = vsel %vm282, %v1809, 0.0
    %1823 = vadd.xlane.f32.xlu0 %v1822
    %v1824 = vpop.xlane.xlu0 %1823
    %v1825 = vsel %vm282, %v1810, 0.0
    %1826 = vadd.xlane.f32.xlu0 %v1825
    %v1827 = vpop.xlane.xlu0 %1826
    %v1828 = vsel %vm282, %v1811, 0.0
    %1829 = vadd.xlane.f32.xlu0 %v1828
    %v1830 = vpop.xlane.xlu0 %1829
    %v1831 = vsel %vm282, %v1812, 0.0
    %1832 = vadd.xlane.f32.xlu0 %v1831
    %v1833 = vpop.xlane.xlu0 %1832
    %v1834 = vmul.f32 %v1815, %v310
    %v1835 = vmul.f32 %v1818, %v310
    %v1836 = vmul.f32 %v1821, %v310
    %v1837 = vmul.f32 %v1824, %v310
    %v1838 = vmul.f32 %v1827, %v310
    %v1839 = vmul.f32 %v1830, %v310
    %v1840 = vmul.f32 %v1833, %v310
    %v1841 = vsub.f32 %v1806, %v1834
    %v1842 = vsub.f32 %v1807, %v1835
    %v1843 = vsub.f32 %v1808, %v1836
    %v1844 = vsub.f32 %v1809, %v1837
    %v1845 = vsub.f32 %v1810, %v1838
    %v1846 = vsub.f32 %v1811, %v1839
    %v1847 = vsub.f32 %v1812, %v1840
    %v1848 = vmul.f32 %v1841, %v1841
    %v1849 = vmul.f32 %v1842, %v1842
    %v1850 = vmul.f32 %v1843, %v1843
    %v1851 = vmul.f32 %v1844, %v1844
    %v1852 = vmul.f32 %v1845, %v1845
    %v1853 = vmul.f32 %v1846, %v1846
    %v1854 = vmul.f32 %v1847, %v1847
    %v1855 = vsel %vm282, %v1848, 0.0
    %1856 = vadd.xlane.f32.xlu0 %v1855
    %v1857 = vpop.xlane.xlu0 %1856
    %v1858 = vsel %vm282, %v1849, 0.0
    %1859 = vadd.xlane.f32.xlu0 %v1858
    %v1860 = vpop.xlane.xlu0 %1859
    %v1861 = vsel %vm282, %v1850, 0.0
    %1862 = vadd.xlane.f32.xlu0 %v1861
    %v1863 = vpop.xlane.xlu0 %1862
    %v1864 = vsel %vm282, %v1851, 0.0
    %1865 = vadd.xlane.f32.xlu0 %v1864
    %v1866 = vpop.xlane.xlu0 %1865
    %v1867 = vsel %vm282, %v1852, 0.0
    %1868 = vadd.xlane.f32.xlu0 %v1867
    %v1869 = vpop.xlane.xlu0 %1868
    %v1870 = vsel %vm282, %v1853, 0.0
    %1871 = vadd.xlane.f32.xlu0 %v1870
    %v1872 = vpop.xlane.xlu0 %1871
    %v1873 = vsel %vm282, %v1854, 0.0
    %1874 = vadd.xlane.f32.xlu0 %v1873
    %v1875 = vpop.xlane.xlu0 %1874
    %v1876 = vmul.f32 %v1857, %v310
    %v1877 = vmul.f32 %v1860, %v310
    %v1878 = vmul.f32 %v1863, %v310
    %v1879 = vmul.f32 %v1866, %v310
    %v1880 = vmul.f32 %v1869, %v310
    %v1881 = vmul.f32 %v1872, %v310
    %v1882 = vmul.f32 %v1875, %v310
    %v1883 = vadd.f32 %v1876, 1e-05
    %v1884 = vadd.f32 %v1877, 1e-05
    %v1885 = vadd.f32 %v1878, 1e-05
    %v1886 = vadd.f32 %v1879, 1e-05
    %v1887 = vadd.f32 %v1880, 1e-05
    %v1888 = vadd.f32 %v1881, 1e-05
    %v1889 = vadd.f32 %v1882, 1e-05
    %v1890 = vrsqrt.pop %v1883
    %v1891 = vmul.f32 %v1890, %v1883
    %v1892 = vmul.f32 %v1891, %v1890
    %v1893 = vmul.f32 0.5, %v1892
    %v1894 = vsub.f32 1.5, %v1893
    %v1895 = vmul.f32 %v1890, %v1894
    %vm1896 = vweird.f32 %v1883
    %vm1897 = vweird.f32 %v1890
    %vm1898 = vmor %vm1896, %vm1897
    %v1899 = vsel %vm1898, %v1890, %v1895
    %v1900 = vrsqrt.pop %v1884
    %v1901 = vmul.f32 %v1900, %v1884
    %v1902 = vmul.f32 %v1901, %v1900
    %v1903 = vmul.f32 0.5, %v1902
    %v1904 = vsub.f32 1.5, %v1903
    %v1905 = vmul.f32 %v1900, %v1904
    %vm1906 = vweird.f32 %v1884
    %vm1907 = vweird.f32 %v1900
    %vm1908 = vmor %vm1906, %vm1907
    %v1909 = vsel %vm1908, %v1900, %v1905
    %v1910 = vrsqrt.pop %v1885
    %v1911 = vmul.f32 %v1910, %v1885
    %v1912 = vmul.f32 %v1911, %v1910
    %v1913 = vmul.f32 0.5, %v1912
    %v1914 = vsub.f32 1.5, %v1913
    %v1915 = vmul.f32 %v1910, %v1914
    %vm1916 = vweird.f32 %v1885
    %vm1917 = vweird.f32 %v1910
    %vm1918 = vmor %vm1916, %vm1917
    %v1919 = vsel %vm1918, %v1910, %v1915
    %v1920 = vrsqrt.pop %v1886
    %v1921 = vmul.f32 %v1920, %v1886
    %v1922 = vmul.f32 %v1921, %v1920
    %v1923 = vmul.f32 0.5, %v1922
    %v1924 = vsub.f32 1.5, %v1923
    %v1925 = vmul.f32 %v1920, %v1924
    %vm1926 = vweird.f32 %v1886
    %vm1927 = vweird.f32 %v1920
    %vm1928 = vmor %vm1926, %vm1927
    %v1929 = vsel %vm1928, %v1920, %v1925
    %v1930 = vrsqrt.pop %v1887
    %v1931 = vmul.f32 %v1930, %v1887
    %v1932 = vmul.f32 %v1931, %v1930
    %v1933 = vmul.f32 0.5, %v1932
    %v1934 = vsub.f32 1.5, %v1933
    %v1935 = vmul.f32 %v1930, %v1934
    %vm1936 = vweird.f32 %v1887
    %vm1937 = vweird.f32 %v1930
    %vm1938 = vmor %vm1936, %vm1937
    %v1939 = vsel %vm1938, %v1930, %v1935
    %v1940 = vrsqrt.pop %v1888
    %v1941 = vmul.f32 %v1940, %v1888
    %v1942 = vmul.f32 %v1941, %v1940
    %v1943 = vmul.f32 0.5, %v1942
    %v1944 = vsub.f32 1.5, %v1943
    %v1945 = vmul.f32 %v1940, %v1944
    %vm1946 = vweird.f32 %v1888
    %vm1947 = vweird.f32 %v1940
    %vm1948 = vmor %vm1946, %vm1947
    %v1949 = vsel %vm1948, %v1940, %v1945
    %v1950 = vrsqrt.pop %v1889
    %v1951 = vmul.f32 %v1950, %v1889
    %v1952 = vmul.f32 %v1951, %v1950
    %v1953 = vmul.f32 0.5, %v1952
    %v1954 = vsub.f32 1.5, %v1953
    %v1955 = vmul.f32 %v1950, %v1954
    %vm1956 = vweird.f32 %v1889
    %vm1957 = vweird.f32 %v1950
    %vm1958 = vmor %vm1956, %vm1957
    %v1959 = vsel %vm1958, %v1950, %v1955
    %v1960 = vmul.f32 %v1841, %v1899
    %v1961 = vmul.f32 %v1842, %v1909
    %v1962 = vmul.f32 %v1843, %v1919
    %v1963 = vmul.f32 %v1844, %v1929
    %v1964 = vmul.f32 %v1845, %v1939
    %v1965 = vmul.f32 %v1846, %v1949
    %v1966 = vmul.f32 %v1847, %v1959
    %v1967 = vperm.slane %v242, 0
    %v1968 = vmul.f32 %v1960, %v1967
    %v1969 = vmul.f32 %v1961, %v1967
    %v1970 = vmul.f32 %v1962, %v1967
    %v1971 = vmul.f32 %v1963, %v1967
    %v1972 = vmul.f32 %v1964, %v1967
    %v1973 = vmul.f32 %v1965, %v1967
    %v1974 = vmul.f32 %v1966, %v1967
    %v1975 = vperm.slane %v243, 0
    %v1976 = vadd.f32 %v1968, %v1975
    %v1977 = vadd.f32 %v1969, %v1975
    %v1978 = vadd.f32 %v1970, %v1975
    %v1979 = vadd.f32 %v1971, %v1975
    %v1980 = vadd.f32 %v1972, %v1975
    %v1981 = vadd.f32 %v1973, %v1975
    %v1982 = vadd.f32 %v1974, %v1975
    %v1983 = vperm.slane %v244, 0
    %v1985 = vsel %vm282, %v1976, 0
    %v1988 = vsel %vm282, %v1977, 0
    %v1991 = vsel %vm282, %v1978, 0
    %v1994 = vsel %vm282, %v1979, 0
    %v1997 = vsel %vm282, %v1980, 0
    %v2000 = vsel %vm282, %v1981, 0
    %v2003 = vsel %vm282, %v1982, 0
    %2005 = vmatpush.msra.mxu0 0.0
    %2006 = vmatpush.msra.mxu0 0.0
    %2007 = vmatpush.msra.mxu0 0.0
    %2008 = vmatpush.msra.mxu0 0.0
    %2009 = vmatpush.msra.mxu0 0.0
    %2010 = vmatpush.msra.mxu0 0.0
    %2011 = vmatpush.msra.mxu0 0.0
    %2012 = vmatpush.msra.mxu0 0.0
    %2013 = vmatpush.msra.mxu0 0.0
    %2014 = vmatpush.msra.mxu0 0.0
    %2015 = vmatpush.msra.mxu0 0.0
    %2016 = vmatpush.msra.mxu0 0.0
    %2017 = vmatpush.msra.mxu0 %v265
    %2018 = vmatpush.msra.mxu0 %v264
    %2019 = vmatpush.msra.mxu0 %v263
    %2020 = vmatpush.msra.mxu0 %v262
    %2021 = vmatmul.f32.gmra.mxu0 %v1985
    %v2022 = vpop.f32.mrf.mxu0
    %v2023 = vadd.f32 %v1983, %v2022
    %2024 = vmatmul.f32.gmra.mxu0 %v1988
    %v2025 = vpop.f32.mrf.mxu0
    %v2026 = vadd.f32 %v1983, %v2025
    %2027 = vmatmul.f32.gmra.mxu0 %v1991
    %v2028 = vpop.f32.mrf.mxu0
    %v2029 = vadd.f32 %v1983, %v2028
    %2030 = vmatmul.f32.gmra.mxu0 %v1994
    %v2031 = vpop.f32.mrf.mxu0
    %v2032 = vadd.f32 %v1983, %v2031
    %2033 = vmatmul.f32.gmra.mxu0 %v1997
    %v2034 = vpop.f32.mrf.mxu0
    %v2035 = vadd.f32 %v1983, %v2034
    %2036 = vmatmul.f32.gmra.mxu0 %v2000
    %v2037 = vpop.f32.mrf.mxu0
    %v2038 = vadd.f32 %v1983, %v2037
    %2039 = vmatmul.f32.gmra.mxu0 %v2003
    %v2040 = vpop.f32.mrf.mxu0
    %v2041 = vadd.f32 %v1983, %v2040
    %2042 = vdwg.mxu0
    %v2043 = vmul.f32 %v2023, 0.5
    %v2044 = vmul.f32 %v2026, 0.5
    %v2045 = vmul.f32 %v2029, 0.5
    %v2046 = vmul.f32 %v2032, 0.5
    %v2047 = vmul.f32 %v2035, 0.5
    %v2048 = vmul.f32 %v2038, 0.5
    %v2049 = vmul.f32 %v2041, 0.5
    %v2050 = vmul.f32 %v2023, 0.044715
    %v2051 = vmul.f32 %v2026, 0.044715
    %v2052 = vmul.f32 %v2029, 0.044715
    %v2053 = vmul.f32 %v2032, 0.044715
    %v2054 = vmul.f32 %v2035, 0.044715
    %v2055 = vmul.f32 %v2038, 0.044715
    %v2056 = vmul.f32 %v2041, 0.044715
    %v2057 = vmul.f32 %v2050, %v2023
    %v2058 = vmul.f32 %v2051, %v2026
    %v2059 = vmul.f32 %v2052, %v2029
    %v2060 = vmul.f32 %v2053, %v2032
    %v2061 = vmul.f32 %v2054, %v2035
    %v2062 = vmul.f32 %v2055, %v2038
    %v2063 = vmul.f32 %v2056, %v2041
    %v2064 = vmul.f32 %v2057, %v2023
    %v2065 = vmul.f32 %v2058, %v2026
    %v2066 = vmul.f32 %v2059, %v2029
    %v2067 = vmul.f32 %v2060, %v2032
    %v2068 = vmul.f32 %v2061, %v2035
    %v2069 = vmul.f32 %v2062, %v2038
    %v2070 = vmul.f32 %v2063, %v2041
    %v2071 = vadd.f32 %v2023, %v2064
    %v2072 = vadd.f32 %v2026, %v2065
    %v2073 = vadd.f32 %v2029, %v2066
    %v2074 = vadd.f32 %v2032, %v2067
    %v2075 = vadd.f32 %v2035, %v2068
    %v2076 = vadd.f32 %v2038, %v2069
    %v2077 = vadd.f32 %v2041, %v2070
    %v2078 = vmul.f32 %v2071, 0.7978846
    %v2079 = vmul.f32 %v2072, 0.7978846
    %v2080 = vmul.f32 %v2073, 0.7978846
    %v2081 = vmul.f32 %v2074, 0.7978846
    %v2082 = vmul.f32 %v2075, 0.7978846
    %v2083 = vmul.f32 %v2076, 0.7978846
    %v2084 = vmul.f32 %v2077, 0.7978846
    %v2085 = vtanh.pop %v2078
    %v2086 = vtanh.pop %v2079
    %v2087 = vtanh.pop %v2080
    %v2088 = vtanh.pop %v2081
    %v2089 = vtanh.pop %v2082
    %v2090 = vtanh.pop %v2083
    %v2091 = vtanh.pop %v2084
    %v2092 = vadd.f32 %v2085, 1.0
    %v2093 = vadd.f32 %v2086, 1.0
    %v2094 = vadd.f32 %v2087, 1.0
    %v2095 = vadd.f32 %v2088, 1.0
    %v2096 = vadd.f32 %v2089, 1.0
    %v2097 = vadd.f32 %v2090, 1.0
    %v2098 = vadd.f32 %v2091, 1.0
    %v2099 = vmul.f32 %v2043, %v2092
    %v2100 = vmul.f32 %v2044, %v2093
    %v2101 = vmul.f32 %v2045, %v2094
    %v2102 = vmul.f32 %v2046, %v2095
    %v2103 = vmul.f32 %v2047, %v2096
    %v2104 = vmul.f32 %v2048, %v2097
    %v2105 = vmul.f32 %v2049, %v2098
    %2106 = vmatpush.msra.mxu0 %v281
    %2107 = vmatpush.msra.mxu0 %v280
    %2108 = vmatpush.msra.mxu0 %v279
    %2109 = vmatpush.msra.mxu0 %v278
    %2110 = vmatpush.msra.mxu0 %v277
    %2111 = vmatpush.msra.mxu0 %v276
    %2112 = vmatpush.msra.mxu0 %v275
    %2113 = vmatpush.msra.mxu0 %v274
    %2114 = vmatpush.msra.mxu0 %v273
    %2115 = vmatpush.msra.mxu0 %v272
    %2116 = vmatpush.msra.mxu0 %v271
    %2117 = vmatpush.msra.mxu0 %v270
    %2118 = vmatpush.msra.mxu0 %v269
    %2119 = vmatpush.msra.mxu0 %v268
    %2120 = vmatpush.msra.mxu0 %v267
    %2121 = vmatpush.msra.mxu0 %v266
    %2122 = vmatmul.f32.gmra.mxu0 %v2099
    %v2123 = vpop.f32.mrf.mxu0
    %v2124 = vadd.f32 0.0, %v2123
    %2125 = vmatmul.f32.gmra.mxu0 %v2100
    %v2126 = vpop.f32.mrf.mxu0
    %v2127 = vadd.f32 0.0, %v2126
    %2128 = vmatmul.f32.gmra.mxu0 %v2101
    %v2129 = vpop.f32.mrf.mxu0
    %v2130 = vadd.f32 0.0, %v2129
    %2131 = vmatmul.f32.gmra.mxu0 %v2102
    %v2132 = vpop.f32.mrf.mxu0
    %v2133 = vadd.f32 0.0, %v2132
    %2134 = vmatmul.f32.gmra.mxu0 %v2103
    %v2135 = vpop.f32.mrf.mxu0
    %v2136 = vadd.f32 0.0, %v2135
    %2137 = vmatmul.f32.gmra.mxu0 %v2104
    %v2138 = vpop.f32.mrf.mxu0
    %v2139 = vadd.f32 0.0, %v2138
    %2140 = vmatmul.f32.gmra.mxu0 %v2105
    %v2141 = vpop.f32.mrf.mxu0
    %v2142 = vadd.f32 0.0, %v2141
    %2143 = vdwg.mxu0
    %v2144 = vadd.f32 %v1806, %v2124
    %v2145 = vadd.f32 %v1807, %v2127
    %v2146 = vadd.f32 %v1808, %v2130
    %v2147 = vadd.f32 %v1809, %v2133
    %v2148 = vadd.f32 %v1810, %v2136
    %v2149 = vadd.f32 %v1811, %v2139
    %v2150 = vadd.f32 %v1812, %v2142
    %v2151 = vperm.slane %v245, 0
    %v2152 = vadd.f32 %v2144, %v2151
    %v2153 = vadd.f32 %v2145, %v2151
    %v2154 = vadd.f32 %v2146, %v2151
    %v2155 = vadd.f32 %v2147, %v2151
    %v2156 = vadd.f32 %v2148, %v2151
    %v2157 = vadd.f32 %v2149, %v2151
    %v2158 = vadd.f32 %v2150, %v2151
    %v2159 = vld [vmem:[#allocation2 + $0x450] sm:$0x1]
    %v2160 = vld [vmem:[#allocation2 + $0x451] sm:$0x1]
    %v2161 = vld [vmem:[#allocation2 + $0x452] sm:$0x1]
    %v2162 = vld [vmem:[#allocation2 + $0x453] sm:$0x1]
    %v2163 = vld [vmem:[#allocation2 + $0x454] sm:$0x1]
    %v2164 = vld [vmem:[#allocation2 + $0x455] sm:$0x1]
    %v2165 = vld [vmem:[#allocation2 + $0x456] sm:$0x1]
    %v2166 = vld [vmem:[#allocation2 + $0x457] sm:$0x1]
    %v2167 = vld [vmem:[#allocation2 + $0x458] sm:$0x1]
    %v2168 = vld [vmem:[#allocation2 + $0x459] sm:$0x1]
    %v2169 = vld [vmem:[#allocation2 + $0x330] sm:$0xff]
    %v2170 = vld [vmem:[#allocation2 + $0x338] sm:$0xff]
    %v2171 = vld [vmem:[#allocation2 + $0x340] sm:$0xff]
    %v2172 = vld [vmem:[#allocation2 + $0x348] sm:$0xff]
    %v2173 = vld [vmem:[#allocation2 + $0x350] sm:$0xff]
    %v2174 = vld [vmem:[#allocation2 + $0x358] sm:$0xff]
    %v2175 = vld [vmem:[#allocation2 + $0x360] sm:$0xff]
    %v2176 = vld [vmem:[#allocation2 + $0x368] sm:$0xff]
    %v2177 = vld [vmem:[#allocation2 + $0x370] sm:$0xff]
    %v2178 = vld [vmem:[#allocation2 + $0x378] sm:$0xff]
    %v2179 = vld [vmem:[#allocation2 + $0x380] sm:$0xff]
    %v2180 = vld [vmem:[#allocation2 + $0x388] sm:$0xff]
    %v2181 = vld [vmem:[#allocation2 + $0x390] sm:$0xff]
    %v2182 = vld [vmem:[#allocation2 + $0x398] sm:$0xff]
    %v2183 = vld [vmem:[#allocation2 + $0x3a0] sm:$0xff]
    %v2184 = vld [vmem:[#allocation2 + $0x3a8] sm:$0xff]
    %v2185 = vld [vmem:[#allocation2 + $0x3b0] sm:$0xff]
    %v2186 = vld [vmem:[#allocation2 + $0x3b8] sm:$0xff]
    %v2187 = vld [vmem:[#allocation2 + $0x3c0] sm:$0xff]
    %v2188 = vld [vmem:[#allocation2 + $0x3c8] sm:$0xff]
    %v2189 = vld [vmem:[#allocation2 + $0x3d0] sm:$0xff]
    %v2190 = vld [vmem:[#allocation2 + $0x3d8] sm:$0xff]
    %v2191 = vld [vmem:[#allocation2 + $0x3e0] sm:$0xff]
    %v2192 = vld [vmem:[#allocation2 + $0x3e8] sm:$0xff]
    %v2193 = vld [vmem:[#allocation2 + $0x3f0] sm:$0xff]
    %v2194 = vld [vmem:[#allocation2 + $0x3f8] sm:$0xff]
    %v2195 = vld [vmem:[#allocation2 + $0x400] sm:$0xff]
    %v2196 = vld [vmem:[#allocation2 + $0x408] sm:$0xff]
    %v2197 = vld [vmem:[#allocation2 + $0x410] sm:$0xff]
    %v2198 = vld [vmem:[#allocation2 + $0x418] sm:$0xff]
    %v2199 = vld [vmem:[#allocation2 + $0x420] sm:$0xff]
    %v2200 = vld [vmem:[#allocation2 + $0x428] sm:$0xff]
    %v2201 = vld [vmem:[#allocation2 + $0x430] sm:$0xff]
    %v2202 = vld [vmem:[#allocation2 + $0x438] sm:$0xff]
    %v2203 = vld [vmem:[#allocation2 + $0x440] sm:$0xff]
    %v2204 = vld [vmem:[#allocation2 + $0x448] sm:$0xff]
    %v2205 = vsel %vm282, %v2152, 0.0
    %2206 = vadd.xlane.f32.xlu0 %v2205
    %v2207 = vpop.xlane.xlu0 %2206
    %v2208 = vsel %vm282, %v2153, 0.0
    %2209 = vadd.xlane.f32.xlu0 %v2208
    %v2210 = vpop.xlane.xlu0 %2209
    %v2211 = vsel %vm282, %v2154, 0.0
    %2212 = vadd.xlane.f32.xlu0 %v2211
    %v2213 = vpop.xlane.xlu0 %2212
    %v2214 = vsel %vm282, %v2155, 0.0
    %2215 = vadd.xlane.f32.xlu0 %v2214
    %v2216 = vpop.xlane.xlu0 %2215
    %v2217 = vsel %vm282, %v2156, 0.0
    %2218 = vadd.xlane.f32.xlu0 %v2217
    %v2219 = vpop.xlane.xlu0 %2218
    %v2220 = vsel %vm282, %v2157, 0.0
    %2221 = vadd.xlane.f32.xlu0 %v2220
    %v2222 = vpop.xlane.xlu0 %2221
    %v2223 = vsel %vm282, %v2158, 0.0
    %2224 = vadd.xlane.f32.xlu0 %v2223
    %v2225 = vpop.xlane.xlu0 %2224
    %v2226 = vmul.f32 %v2207, %v310
    %v2227 = vmul.f32 %v2210, %v310
    %v2228 = vmul.f32 %v2213, %v310
    %v2229 = vmul.f32 %v2216, %v310
    %v2230 = vmul.f32 %v2219, %v310
    %v2231 = vmul.f32 %v2222, %v310
    %v2232 = vmul.f32 %v2225, %v310
    %v2233 = vsub.f32 %v2152, %v2226
    %v2234 = vsub.f32 %v2153, %v2227
    %v2235 = vsub.f32 %v2154, %v2228
    %v2236 = vsub.f32 %v2155, %v2229
    %v2237 = vsub.f32 %v2156, %v2230
    %v2238 = vsub.f32 %v2157, %v2231
    %v2239 = vsub.f32 %v2158, %v2232
    %v2240 = vmul.f32 %v2233, %v2233
    %v2241 = vmul.f32 %v2234, %v2234
    %v2242 = vmul.f32 %v2235, %v2235
    %v2243 = vmul.f32 %v2236, %v2236
    %v2244 = vmul.f32 %v2237, %v2237
    %v2245 = vmul.f32 %v2238, %v2238
    %v2246 = vmul.f32 %v2239, %v2239
    %v2247 = vsel %vm282, %v2240, 0.0
    %2248 = vadd.xlane.f32.xlu0 %v2247
    %v2249 = vpop.xlane.xlu0 %2248
    %v2250 = vsel %vm282, %v2241, 0.0
    %2251 = vadd.xlane.f32.xlu0 %v2250
    %v2252 = vpop.xlane.xlu0 %2251
    %v2253 = vsel %vm282, %v2242, 0.0
    %2254 = vadd.xlane.f32.xlu0 %v2253
    %v2255 = vpop.xlane.xlu0 %2254
    %v2256 = vsel %vm282, %v2243, 0.0
    %2257 = vadd.xlane.f32.xlu0 %v2256
    %v2258 = vpop.xlane.xlu0 %2257
    %v2259 = vsel %vm282, %v2244, 0.0
    %2260 = vadd.xlane.f32.xlu0 %v2259
    %v2261 = vpop.xlane.xlu0 %2260
    %v2262 = vsel %vm282, %v2245, 0.0
    %2263 = vadd.xlane.f32.xlu0 %v2262
    %v2264 = vpop.xlane.xlu0 %2263
    %v2265 = vsel %vm282, %v2246, 0.0
    %2266 = vadd.xlane.f32.xlu0 %v2265
    %v2267 = vpop.xlane.xlu0 %2266
    %v2268 = vmul.f32 %v2249, %v310
    %v2269 = vmul.f32 %v2252, %v310
    %v2270 = vmul.f32 %v2255, %v310
    %v2271 = vmul.f32 %v2258, %v310
    %v2272 = vmul.f32 %v2261, %v310
    %v2273 = vmul.f32 %v2264, %v310
    %v2274 = vmul.f32 %v2267, %v310
    %v2275 = vadd.f32 %v2268, 1e-05
    %v2276 = vadd.f32 %v2269, 1e-05
    %v2277 = vadd.f32 %v2270, 1e-05
    %v2278 = vadd.f32 %v2271, 1e-05
    %v2279 = vadd.f32 %v2272, 1e-05
    %v2280 = vadd.f32 %v2273, 1e-05
    %v2281 = vadd.f32 %v2274, 1e-05
    %v2282 = vrsqrt.pop %v2275
    %v2283 = vmul.f32 %v2282, %v2275
    %v2284 = vmul.f32 %v2283, %v2282
    %v2285 = vmul.f32 0.5, %v2284
    %v2286 = vsub.f32 1.5, %v2285
    %v2287 = vmul.f32 %v2282, %v2286
    %vm2288 = vweird.f32 %v2275
    %vm2289 = vweird.f32 %v2282
    %vm2290 = vmor %vm2288, %vm2289
    %v2291 = vsel %vm2290, %v2282, %v2287
    %v2292 = vrsqrt.pop %v2276
    %v2293 = vmul.f32 %v2292, %v2276
    %v2294 = vmul.f32 %v2293, %v2292
    %v2295 = vmul.f32 0.5, %v2294
    %v2296 = vsub.f32 1.5, %v2295
    %v2297 = vmul.f32 %v2292, %v2296
    %vm2298 = vweird.f32 %v2276
    %vm2299 = vweird.f32 %v2292
    %vm2300 = vmor %vm2298, %vm2299
    %v2301 = vsel %vm2300, %v2292, %v2297
    %v2302 = vrsqrt.pop %v2277
    %v2303 = vmul.f32 %v2302, %v2277
    %v2304 = vmul.f32 %v2303, %v2302
    %v2305 = vmul.f32 0.5, %v2304
    %v2306 = vsub.f32 1.5, %v2305
    %v2307 = vmul.f32 %v2302, %v2306
    %vm2308 = vweird.f32 %v2277
    %vm2309 = vweird.f32 %v2302
    %vm2310 = vmor %vm2308, %vm2309
    %v2311 = vsel %vm2310, %v2302, %v2307
    %v2312 = vrsqrt.pop %v2278
    %v2313 = vmul.f32 %v2312, %v2278
    %v2314 = vmul.f32 %v2313, %v2312
    %v2315 = vmul.f32 0.5, %v2314
    %v2316 = vsub.f32 1.5, %v2315
    %v2317 = vmul.f32 %v2312, %v2316
    %vm2318 = vweird.f32 %v2278
    %vm2319 = vweird.f32 %v2312
    %vm2320 = vmor %vm2318, %vm2319
    %v2321 = vsel %vm2320, %v2312, %v2317
    %v2322 = vrsqrt.pop %v2279
    %v2323 = vmul.f32 %v2322, %v2279
    %v2324 = vmul.f32 %v2323, %v2322
    %v2325 = vmul.f32 0.5, %v2324
    %v2326 = vsub.f32 1.5, %v2325
    %v2327 = vmul.f32 %v2322, %v2326
    %vm2328 = vweird.f32 %v2279
    %vm2329 = vweird.f32 %v2322
    %vm2330 = vmor %vm2328, %vm2329
    %v2331 = vsel %vm2330, %v2322, %v2327
    %v2332 = vrsqrt.pop %v2280
    %v2333 = vmul.f32 %v2332, %v2280
    %v2334 = vmul.f32 %v2333, %v2332
    %v2335 = vmul.f32 0.5, %v2334
    %v2336 = vsub.f32 1.5, %v2335
    %v2337 = vmul.f32 %v2332, %v2336
    %vm2338 = vweird.f32 %v2280
    %vm2339 = vweird.f32 %v2332
    %vm2340 = vmor %vm2338, %vm2339
    %v2341 = vsel %vm2340, %v2332, %v2337
    %v2342 = vrsqrt.pop %v2281
    %v2343 = vmul.f32 %v2342, %v2281
    %v2344 = vmul.f32 %v2343, %v2342
    %v2345 = vmul.f32 0.5, %v2344
    %v2346 = vsub.f32 1.5, %v2345
    %v2347 = vmul.f32 %v2342, %v2346
    %vm2348 = vweird.f32 %v2281
    %vm2349 = vweird.f32 %v2342
    %vm2350 = vmor %vm2348, %vm2349
    %v2351 = vsel %vm2350, %v2342, %v2347
    %v2352 = vmul.f32 %v2233, %v2291
    %v2353 = vmul.f32 %v2234, %v2301
    %v2354 = vmul.f32 %v2235, %v2311
    %v2355 = vmul.f32 %v2236, %v2321
    %v2356 = vmul.f32 %v2237, %v2331
    %v2357 = vmul.f32 %v2238, %v2341
    %v2358 = vmul.f32 %v2239, %v2351
    %v2359 = vperm.slane %v2159, 0
    %v2360 = vmul.f32 %v2352, %v2359
    %v2361 = vmul.f32 %v2353, %v2359
    %v2362 = vmul.f32 %v2354, %v2359
    %v2363 = vmul.f32 %v2355, %v2359
    %v2364 = vmul.f32 %v2356, %v2359
    %v2365 = vmul.f32 %v2357, %v2359
    %v2366 = vmul.f32 %v2358, %v2359
    %v2367 = vperm.slane %v2160, 0
    %v2368 = vadd.f32 %v2360, %v2367
    %v2369 = vadd.f32 %v2361, %v2367
    %v2370 = vadd.f32 %v2362, %v2367
    %v2371 = vadd.f32 %v2363, %v2367
    %v2372 = vadd.f32 %v2364, %v2367
    %v2373 = vadd.f32 %v2365, %v2367
    %v2374 = vadd.f32 %v2366, %v2367
    %v2375 = vperm.slane %v2161, 0
    %v2377 = vsel %vm282, %v2368, 0
    %v2380 = vsel %vm282, %v2369, 0
    %v2383 = vsel %vm282, %v2370, 0
    %v2386 = vsel %vm282, %v2371, 0
    %v2389 = vsel %vm282, %v2372, 0
    %v2392 = vsel %vm282, %v2373, 0
    %v2395 = vsel %vm282, %v2374, 0
    %2397 = vmatpush.msra.mxu0 0.0
    %2398 = vmatpush.msra.mxu0 0.0
    %2399 = vmatpush.msra.mxu0 0.0
    %2400 = vmatpush.msra.mxu0 0.0
    %2401 = vmatpush.msra.mxu0 0.0
    %2402 = vmatpush.msra.mxu0 0.0
    %2403 = vmatpush.msra.mxu0 0.0
    %2404 = vmatpush.msra.mxu0 0.0
    %2405 = vmatpush.msra.mxu0 0.0
    %2406 = vmatpush.msra.mxu0 0.0
    %2407 = vmatpush.msra.mxu0 0.0
    %2408 = vmatpush.msra.mxu0 0.0
    %2409 = vmatpush.msra.mxu0 %v2172
    %2410 = vmatpush.msra.mxu0 %v2171
    %2411 = vmatpush.msra.mxu0 %v2170
    %2412 = vmatpush.msra.mxu0 %v2169
    %2413 = vmatmul.f32.gmra.mxu0 %v2377
    %v2414 = vpop.f32.mrf.mxu0
    %v2415 = vadd.f32 %v2375, %v2414
    %2416 = vmatmul.f32.gmra.mxu0 %v2380
    %v2417 = vpop.f32.mrf.mxu0
    %v2418 = vadd.f32 %v2375, %v2417
    %2419 = vmatmul.f32.gmra.mxu0 %v2383
    %v2420 = vpop.f32.mrf.mxu0
    %v2421 = vadd.f32 %v2375, %v2420
    %2422 = vmatmul.f32.gmra.mxu0 %v2386
    %v2423 = vpop.f32.mrf.mxu0
    %v2424 = vadd.f32 %v2375, %v2423
    %2425 = vmatmul.f32.gmra.mxu0 %v2389
    %v2426 = vpop.f32.mrf.mxu0
    %v2427 = vadd.f32 %v2375, %v2426
    %2428 = vmatmul.f32.gmra.mxu0 %v2392
    %v2429 = vpop.f32.mrf.mxu0
    %v2430 = vadd.f32 %v2375, %v2429
    %2431 = vmatmul.f32.gmra.mxu0 %v2395
    %v2432 = vpop.f32.mrf.mxu0
    %v2433 = vadd.f32 %v2375, %v2432
    %2434 = vdwg.mxu0
    %v2435 = vperm.slane %v2162, 0
    %2436 = vmatpush.msra.mxu0 0.0
    %2437 = vmatpush.msra.mxu0 0.0
    %2438 = vmatpush.msra.mxu0 0.0
    %2439 = vmatpush.msra.mxu0 0.0
    %2440 = vmatpush.msra.mxu0 0.0
    %2441 = vmatpush.msra.mxu0 0.0
    %2442 = vmatpush.msra.mxu0 0.0
    %2443 = vmatpush.msra.mxu0 0.0
    %2444 = vmatpush.msra.mxu0 0.0
    %2445 = vmatpush.msra.mxu0 0.0
    %2446 = vmatpush.msra.mxu0 0.0
    %2447 = vmatpush.msra.mxu0 0.0
    %2448 = vmatpush.msra.mxu0 %v2176
    %2449 = vmatpush.msra.mxu0 %v2175
    %2450 = vmatpush.msra.mxu0 %v2174
    %2451 = vmatpush.msra.mxu0 %v2173
    %2452 = vmatmul.f32.gmra.mxu0 %v2377
    %v2453 = vpop.f32.mrf.mxu0
    %v2454 = vadd.f32 %v2435, %v2453
    %2455 = vmatmul.f32.gmra.mxu0 %v2380
    %v2456 = vpop.f32.mrf.mxu0
    %v2457 = vadd.f32 %v2435, %v2456
    %2458 = vmatmul.f32.gmra.mxu0 %v2383
    %v2459 = vpop.f32.mrf.mxu0
    %v2460 = vadd.f32 %v2435, %v2459
    %2461 = vmatmul.f32.gmra.mxu0 %v2386
    %v2462 = vpop.f32.mrf.mxu0
    %v2463 = vadd.f32 %v2435, %v2462
    %2464 = vmatmul.f32.gmra.mxu0 %v2389
    %v2465 = vpop.f32.mrf.mxu0
    %v2466 = vadd.f32 %v2435, %v2465
    %2467 = vmatmul.f32.gmra.mxu0 %v2392
    %v2468 = vpop.f32.mrf.mxu0
    %v2469 = vadd.f32 %v2435, %v2468
    %2470 = vmatmul.f32.gmra.mxu0 %v2395
    %v2471 = vpop.f32.mrf.mxu0
    %v2472 = vadd.f32 %v2435, %v2471
    %2473 = vdwg.mxu0
    %v2474 = vperm.slane %v2163, 0
    %2475 = vmatpush.msra.mxu0 0.0
    %2476 = vmatpush.msra.mxu0 0.0
    %2477 = vmatpush.msra.mxu0 0.0
    %2478 = vmatpush.msra.mxu0 0.0
    %2479 = vmatpush.msra.mxu0 0.0
    %2480 = vmatpush.msra.mxu0 0.0
    %2481 = vmatpush.msra.mxu0 0.0
    %2482 = vmatpush.msra.mxu0 0.0
    %2483 = vmatpush.msra.mxu0 0.0
    %2484 = vmatpush.msra.mxu0 0.0
    %2485 = vmatpush.msra.mxu0 0.0
    %2486 = vmatpush.msra.mxu0 0.0
    %2487 = vmatpush.msra.mxu0 %v2180
    %2488 = vmatpush.msra.mxu0 %v2179
    %2489 = vmatpush.msra.mxu0 %v2178
    %2490 = vmatpush.msra.mxu0 %v2177
    %2491 = vmatmul.f32.gmra.mxu0 %v2377
    %v2492 = vpop.f32.mrf.mxu0
    %v2493 = vadd.f32 %v2474, %v2492
    %2494 = vmatmul.f32.gmra.mxu0 %v2380
    %v2495 = vpop.f32.mrf.mxu0
    %v2496 = vadd.f32 %v2474, %v2495
    %2497 = vmatmul.f32.gmra.mxu0 %v2383
    %v2498 = vpop.f32.mrf.mxu0
    %v2499 = vadd.f32 %v2474, %v2498
    %2500 = vmatmul.f32.gmra.mxu0 %v2386
    %v2501 = vpop.f32.mrf.mxu0
    %v2502 = vadd.f32 %v2474, %v2501
    %2503 = vmatmul.f32.gmra.mxu0 %v2389
    %v2504 = vpop.f32.mrf.mxu0
    %v2505 = vadd.f32 %v2474, %v2504
    %2506 = vmatmul.f32.gmra.mxu0 %v2392
    %v2507 = vpop.f32.mrf.mxu0
    %v2508 = vadd.f32 %v2474, %v2507
    %2509 = vmatmul.f32.gmra.mxu0 %v2395
    %v2510 = vpop.f32.mrf.mxu0
    %v2511 = vadd.f32 %v2474, %v2510
    %2512 = vdwg.mxu0
    %v2513 = vmul.f32 %v2415, %v208
    %v2514 = vmul.f32 %v2418, %v209
    %v2515 = vmul.f32 %v2421, %v210
    %v2516 = vmul.f32 %v2424, %v211
    %v2517 = vmul.f32 %v2427, %v212
    %v2518 = vmul.f32 %v2430, %v213
    %v2519 = vmul.f32 %v2433, %v214
    %v2520 = vmul.f32 %v2415, %v215
    %v2521 = vmul.f32 %v2418, %v216
    %v2522 = vmul.f32 %v2421, %v217
    %v2523 = vmul.f32 %v2424, %v218
    %v2524 = vmul.f32 %v2427, %v219
    %v2525 = vmul.f32 %v2430, %v220
    %v2526 = vmul.f32 %v2433, %v221
    %v2527 = vmul.f32 %v2415, %v222
    %v2528 = vmul.f32 %v2418, %v223
    %v2529 = vmul.f32 %v2421, %v224
    %v2530 = vmul.f32 %v2424, %v225
    %v2531 = vmul.f32 %v2427, %v226
    %v2532 = vmul.f32 %v2430, %v227
    %v2533 = vmul.f32 %v2433, %v228
    %v2534 = vmul.f32 %v2415, %v229
    %v2535 = vmul.f32 %v2418, %v230
    %v2536 = vmul.f32 %v2421, %v231
    %v2537 = vmul.f32 %v2424, %v232
    %v2538 = vmul.f32 %v2427, %v233
    %v2539 = vmul.f32 %v2430, %v234
    %v2540 = vmul.f32 %v2433, %v235
    %v2542 = vsel %vm282, %v2513, 0
    %v2545 = vsel %vm282, %v2514, 0
    %v2548 = vsel %vm282, %v2515, 0
    %v2551 = vsel %vm282, %v2516, 0
    %v2554 = vsel %vm282, %v2517, 0
    %v2557 = vsel %vm282, %v2518, 0
    %v2560 = vsel %vm282, %v2519, 0
    %v2563 = vsel %vm282, %v2520, 0
    %v2566 = vsel %vm282, %v2521, 0
    %v2569 = vsel %vm282, %v2522, 0
    %v2572 = vsel %vm282, %v2523, 0
    %v2575 = vsel %vm282, %v2524, 0
    %v2578 = vsel %vm282, %v2525, 0
    %v2581 = vsel %vm282, %v2526, 0
    %v2584 = vsel %vm282, %v2527, 0
    %v2587 = vsel %vm282, %v2528, 0
    %v2590 = vsel %vm282, %v2529, 0
    %v2593 = vsel %vm282, %v2530, 0
    %v2596 = vsel %vm282, %v2531, 0
    %v2599 = vsel %vm282, %v2532, 0
    %v2602 = vsel %vm282, %v2533, 0
    %v2605 = vsel %vm282, %v2534, 0
    %v2608 = vsel %vm282, %v2535, 0
    %v2611 = vsel %vm282, %v2536, 0
    %v2614 = vsel %vm282, %v2537, 0
    %v2617 = vsel %vm282, %v2538, 0
    %v2620 = vsel %vm282, %v2539, 0
    %v2623 = vsel %vm282, %v2540, 0
    %v2626 = vsel %vm282, %v2454, 0
    %v2629 = vsel %vm282, %v2457, 0
    %v2632 = vsel %vm282, %v2460, 0
    %v2635 = vsel %vm282, %v2463, 0
    %v2638 = vsel %vm282, %v2466, 0
    %v2641 = vsel %vm282, %v2469, 0
    %v2644 = vsel %vm282, %v2472, 0
    %2646 = vmatpush.xpose.msra.mxu0 0.0
    %2647 = vmatpush.xpose.msra.mxu0 0.0
    %2648 = vmatpush.xpose.msra.mxu0 0.0
    %2649 = vmatpush.xpose.msra.mxu0 0.0
    %2650 = vmatpush.xpose.msra.mxu0 0.0
    %2651 = vmatpush.xpose.msra.mxu0 0.0
    %2652 = vmatpush.xpose.msra.mxu0 0.0
    %2653 = vmatpush.xpose.msra.mxu0 0.0
    %2654 = vmatpush.xpose.msra.mxu0 0.0
    %2655 = vmatpush.xpose.msra.mxu0 %v2644
    %2656 = vmatpush.xpose.msra.mxu0 %v2641
    %2657 = vmatpush.xpose.msra.mxu0 %v2638
    %2658 = vmatpush.xpose.msra.mxu0 %v2635
    %2659 = vmatpush.xpose.msra.mxu0 %v2632
    %2660 = vmatpush.xpose.msra.mxu0 %v2629
    %2661 = vmatpush.xpose.msra.mxu0 %v2626
    %2662 = vmatmul.f32.gmra.mxu0 %v2542
    %v2663 = vpop.f32.mrf.mxu0
    %v2664 = vadd.f32 %v180, %v2663
    %2665 = vmatmul.f32.gmra.mxu0 %v2545
    %v2666 = vpop.f32.mrf.mxu0
    %v2667 = vadd.f32 %v181, %v2666
    %2668 = vmatmul.f32.gmra.mxu0 %v2548
    %v2669 = vpop.f32.mrf.mxu0
    %v2670 = vadd.f32 %v182, %v2669
    %2671 = vmatmul.f32.gmra.mxu0 %v2551
    %v2672 = vpop.f32.mrf.mxu0
    %v2673 = vadd.f32 %v183, %v2672
    %2674 = vmatmul.f32.gmra.mxu0 %v2554
    %v2675 = vpop.f32.mrf.mxu0
    %v2676 = vadd.f32 %v184, %v2675
    %2677 = vmatmul.f32.gmra.mxu0 %v2557
    %v2678 = vpop.f32.mrf.mxu0
    %v2679 = vadd.f32 %v185, %v2678
    %2680 = vmatmul.f32.gmra.mxu0 %v2560
    %v2681 = vpop.f32.mrf.mxu0
    %v2682 = vadd.f32 %v186, %v2681
    %2683 = vmatmul.f32.gmra.mxu0 %v2563
    %v2684 = vpop.f32.mrf.mxu0
    %v2685 = vadd.f32 %v187, %v2684
    %2686 = vmatmul.f32.gmra.mxu0 %v2566
    %v2687 = vpop.f32.mrf.mxu0
    %v2688 = vadd.f32 %v188, %v2687
    %2689 = vmatmul.f32.gmra.mxu0 %v2569
    %v2690 = vpop.f32.mrf.mxu0
    %v2691 = vadd.f32 %v189, %v2690
    %2692 = vmatmul.f32.gmra.mxu0 %v2572
    %v2693 = vpop.f32.mrf.mxu0
    %v2694 = vadd.f32 %v190, %v2693
    %2695 = vmatmul.f32.gmra.mxu0 %v2575
    %v2696 = vpop.f32.mrf.mxu0
    %v2697 = vadd.f32 %v191, %v2696
    %2698 = vmatmul.f32.gmra.mxu0 %v2578
    %v2699 = vpop.f32.mrf.mxu0
    %v2700 = vadd.f32 %v192, %v2699
    %2701 = vmatmul.f32.gmra.mxu0 %v2581
    %v2702 = vpop.f32.mrf.mxu0
    %v2703 = vadd.f32 %v193, %v2702
    %2704 = vmatmul.f32.gmra.mxu0 %v2584
    %v2705 = vpop.f32.mrf.mxu0
    %v2706 = vadd.f32 %v194, %v2705
    %2707 = vmatmul.f32.gmra.mxu0 %v2587
    %v2708 = vpop.f32.mrf.mxu0
    %v2709 = vadd.f32 %v195, %v2708
    %2710 = vmatmul.f32.gmra.mxu0 %v2590
    %v2711 = vpop.f32.mrf.mxu0
    %v2712 = vadd.f32 %v196, %v2711
    %2713 = vmatmul.f32.gmra.mxu0 %v2593
    %v2714 = vpop.f32.mrf.mxu0
    %v2715 = vadd.f32 %v197, %v2714
    %2716 = vmatmul.f32.gmra.mxu0 %v2596
    %v2717 = vpop.f32.mrf.mxu0
    %v2718 = vadd.f32 %v198, %v2717
    %2719 = vmatmul.f32.gmra.mxu0 %v2599
    %v2720 = vpop.f32.mrf.mxu0
    %v2721 = vadd.f32 %v199, %v2720
    %2722 = vmatmul.f32.gmra.mxu0 %v2602
    %v2723 = vpop.f32.mrf.mxu0
    %v2724 = vadd.f32 %v200, %v2723
    %2725 = vmatmul.f32.gmra.mxu0 %v2605
    %v2726 = vpop.f32.mrf.mxu0
    %v2727 = vadd.f32 %v201, %v2726
    %2728 = vmatmul.f32.gmra.mxu0 %v2608
    %v2729 = vpop.f32.mrf.mxu0
    %v2730 = vadd.f32 %v202, %v2729
    %2731 = vmatmul.f32.gmra.mxu0 %v2611
    %v2732 = vpop.f32.mrf.mxu0
    %v2733 = vadd.f32 %v203, %v2732
    %2734 = vmatmul.f32.gmra.mxu0 %v2614
    %v2735 = vpop.f32.mrf.mxu0
    %v2736 = vadd.f32 %v204, %v2735
    %2737 = vmatmul.f32.gmra.mxu0 %v2617
    %v2738 = vpop.f32.mrf.mxu0
    %v2739 = vadd.f32 %v205, %v2738
    %2740 = vmatmul.f32.gmra.mxu0 %v2620
    %v2741 = vpop.f32.mrf.mxu0
    %v2742 = vadd.f32 %v206, %v2741
    %2743 = vmatmul.f32.gmra.mxu0 %v2623
    %v2744 = vpop.f32.mrf.mxu0
    %v2745 = vadd.f32 %v207, %v2744
    %2746 = vdwg.mxu0
    %v2747 = vsel %vm832, %v2664, -inf
    %2748 = vmax.xlane.f32.xlu0 %v2747
    %v2749 = vpop.xlane.xlu0 %2748
    %v2750 = vsel %vm832, %v2667, -inf
    %2751 = vmax.xlane.f32.xlu0 %v2750
    %v2752 = vpop.xlane.xlu0 %2751
    %v2753 = vsel %vm832, %v2670, -inf
    %2754 = vmax.xlane.f32.xlu0 %v2753
    %v2755 = vpop.xlane.xlu0 %2754
    %v2756 = vsel %vm832, %v2673, -inf
    %2757 = vmax.xlane.f32.xlu0 %v2756
    %v2758 = vpop.xlane.xlu0 %2757
    %v2759 = vsel %vm832, %v2676, -inf
    %2760 = vmax.xlane.f32.xlu0 %v2759
    %v2761 = vpop.xlane.xlu0 %2760
    %v2762 = vsel %vm832, %v2679, -inf
    %2763 = vmax.xlane.f32.xlu0 %v2762
    %v2764 = vpop.xlane.xlu0 %2763
    %v2765 = vsel %vm832, %v2682, -inf
    %2766 = vmax.xlane.f32.xlu0 %v2765
    %v2767 = vpop.xlane.xlu0 %2766
    %v2768 = vsel %vm832, %v2685, -inf
    %2769 = vmax.xlane.f32.xlu0 %v2768
    %v2770 = vpop.xlane.xlu0 %2769
    %v2771 = vsel %vm832, %v2688, -inf
    %2772 = vmax.xlane.f32.xlu0 %v2771
    %v2773 = vpop.xlane.xlu0 %2772
    %v2774 = vsel %vm832, %v2691, -inf
    %2775 = vmax.xlane.f32.xlu0 %v2774
    %v2776 = vpop.xlane.xlu0 %2775
    %v2777 = vsel %vm832, %v2694, -inf
    %2778 = vmax.xlane.f32.xlu0 %v2777
    %v2779 = vpop.xlane.xlu0 %2778
    %v2780 = vsel %vm832, %v2697, -inf
    %2781 = vmax.xlane.f32.xlu0 %v2780
    %v2782 = vpop.xlane.xlu0 %2781
    %v2783 = vsel %vm832, %v2700, -inf
    %2784 = vmax.xlane.f32.xlu0 %v2783
    %v2785 = vpop.xlane.xlu0 %2784
    %v2786 = vsel %vm832, %v2703, -inf
    %2787 = vmax.xlane.f32.xlu0 %v2786
    %v2788 = vpop.xlane.xlu0 %2787
    %v2789 = vsel %vm832, %v2706, -inf
    %2790 = vmax.xlane.f32.xlu0 %v2789
    %v2791 = vpop.xlane.xlu0 %2790
    %v2792 = vsel %vm832, %v2709, -inf
    %2793 = vmax.xlane.f32.xlu0 %v2792
    %v2794 = vpop.xlane.xlu0 %2793
    %v2795 = vsel %vm832, %v2712, -inf
    %2796 = vmax.xlane.f32.xlu0 %v2795
    %v2797 = vpop.xlane.xlu0 %2796
    %v2798 = vsel %vm832, %v2715, -inf
    %2799 = vmax.xlane.f32.xlu0 %v2798
    %v2800 = vpop.xlane.xlu0 %2799
    %v2801 = vsel %vm832, %v2718, -inf
    %2802 = vmax.xlane.f32.xlu0 %v2801
    %v2803 = vpop.xlane.xlu0 %2802
    %v2804 = vsel %vm832, %v2721, -inf
    %2805 = vmax.xlane.f32.xlu0 %v2804
    %v2806 = vpop.xlane.xlu0 %2805
    %v2807 = vsel %vm832, %v2724, -inf
    %2808 = vmax.xlane.f32.xlu0 %v2807
    %v2809 = vpop.xlane.xlu0 %2808
    %v2810 = vsel %vm832, %v2727, -inf
    %2811 = vmax.xlane.f32.xlu0 %v2810
    %v2812 = vpop.xlane.xlu0 %2811
    %v2813 = vsel %vm832, %v2730, -inf
    %2814 = vmax.xlane.f32.xlu0 %v2813
    %v2815 = vpop.xlane.xlu0 %2814
    %v2816 = vsel %vm832, %v2733, -inf
    %2817 = vmax.xlane.f32.xlu0 %v2816
    %v2818 = vpop.xlane.xlu0 %2817
    %v2819 = vsel %vm832, %v2736, -inf
    %2820 = vmax.xlane.f32.xlu0 %v2819
    %v2821 = vpop.xlane.xlu0 %2820
    %v2822 = vsel %vm832, %v2739, -inf
    %2823 = vmax.xlane.f32.xlu0 %v2822
    %v2824 = vpop.xlane.xlu0 %2823
    %v2825 = vsel %vm832, %v2742, -inf
    %2826 = vmax.xlane.f32.xlu0 %v2825
    %v2827 = vpop.xlane.xlu0 %2826
    %v2828 = vsel %vm832, %v2745, -inf
    %2829 = vmax.xlane.f32.xlu0 %v2828
    %v2830 = vpop.xlane.xlu0 %2829
    %v2831 = vsub.f32 %v2664, %v2749
    %v2832 = vsub.f32 %v2667, %v2752
    %v2833 = vsub.f32 %v2670, %v2755
    %v2834 = vsub.f32 %v2673, %v2758
    %v2835 = vsub.f32 %v2676, %v2761
    %v2836 = vsub.f32 %v2679, %v2764
    %v2837 = vsub.f32 %v2682, %v2767
    %v2838 = vsub.f32 %v2685, %v2770
    %v2839 = vsub.f32 %v2688, %v2773
    %v2840 = vsub.f32 %v2691, %v2776
    %v2841 = vsub.f32 %v2694, %v2779
    %v2842 = vsub.f32 %v2697, %v2782
    %v2843 = vsub.f32 %v2700, %v2785
    %v2844 = vsub.f32 %v2703, %v2788
    %v2845 = vsub.f32 %v2706, %v2791
    %v2846 = vsub.f32 %v2709, %v2794
    %v2847 = vsub.f32 %v2712, %v2797
    %v2848 = vsub.f32 %v2715, %v2800
    %v2849 = vsub.f32 %v2718, %v2803
    %v2850 = vsub.f32 %v2721, %v2806
    %v2851 = vsub.f32 %v2724, %v2809
    %v2852 = vsub.f32 %v2727, %v2812
    %v2853 = vsub.f32 %v2730, %v2815
    %v2854 = vsub.f32 %v2733, %v2818
    %v2855 = vsub.f32 %v2736, %v2821
    %v2856 = vsub.f32 %v2739, %v2824
    %v2857 = vsub.f32 %v2742, %v2827
    %v2858 = vsub.f32 %v2745, %v2830
    %v2859 = vmul.f32 %v2831, 1.442695
    %v2860 = vpow.pop %v2859
    %v2861 = vmul.f32 %v2832, 1.442695
    %v2862 = vpow.pop %v2861
    %v2863 = vmul.f32 %v2833, 1.442695
    %v2864 = vpow.pop %v2863
    %v2865 = vmul.f32 %v2834, 1.442695
    %v2866 = vpow.pop %v2865
    %v2867 = vmul.f32 %v2835, 1.442695
    %v2868 = vpow.pop %v2867
    %v2869 = vmul.f32 %v2836, 1.442695
    %v2870 = vpow.pop %v2869
    %v2871 = vmul.f32 %v2837, 1.442695
    %v2872 = vpow.pop %v2871
    %v2873 = vmul.f32 %v2838, 1.442695
    %v2874 = vpow.pop %v2873
    %v2875 = vmul.f32 %v2839, 1.442695
    %v2876 = vpow.pop %v2875
    %v2877 = vmul.f32 %v2840, 1.442695
    %v2878 = vpow.pop %v2877
    %v2879 = vmul.f32 %v2841, 1.442695
    %v2880 = vpow.pop %v2879
    %v2881 = vmul.f32 %v2842, 1.442695
    %v2882 = vpow.pop %v2881
    %v2883 = vmul.f32 %v2843, 1.442695
    %v2884 = vpow.pop %v2883
    %v2885 = vmul.f32 %v2844, 1.442695
    %v2886 = vpow.pop %v2885
    %v2887 = vmul.f32 %v2845, 1.442695
    %v2888 = vpow.pop %v2887
    %v2889 = vmul.f32 %v2846, 1.442695
    %v2890 = vpow.pop %v2889
    %v2891 = vmul.f32 %v2847, 1.442695
    %v2892 = vpow.pop %v2891
    %v2893 = vmul.f32 %v2848, 1.442695
    %v2894 = vpow.pop %v2893
    %v2895 = vmul.f32 %v2849, 1.442695
    %v2896 = vpow.pop %v2895
    %v2897 = vmul.f32 %v2850, 1.442695
    %v2898 = vpow.pop %v2897
    %v2899 = vmul.f32 %v2851, 1.442695
    %v2900 = vpow.pop %v2899
    %v2901 = vmul.f32 %v2852, 1.442695
    %v2902 = vpow.pop %v2901
    %v2903 = vmul.f32 %v2853, 1.442695
    %v2904 = vpow.pop %v2903
    %v2905 = vmul.f32 %v2854, 1.442695
    %v2906 = vpow.pop %v2905
    %v2907 = vmul.f32 %v2855, 1.442695
    %v2908 = vpow.pop %v2907
    %v2909 = vmul.f32 %v2856, 1.442695
    %v2910 = vpow.pop %v2909
    %v2911 = vmul.f32 %v2857, 1.442695
    %v2912 = vpow.pop %v2911
    %v2913 = vmul.f32 %v2858, 1.442695
    %v2914 = vpow.pop %v2913
    %v2915 = vsel %vm832, %v2860, 0.0
    %2916 = vadd.xlane.f32.xlu0 %v2915
    %v2917 = vpop.xlane.xlu0 %2916
    %v2918 = vsel %vm832, %v2862, 0.0
    %2919 = vadd.xlane.f32.xlu0 %v2918
    %v2920 = vpop.xlane.xlu0 %2919
    %v2921 = vsel %vm832, %v2864, 0.0
    %2922 = vadd.xlane.f32.xlu0 %v2921
    %v2923 = vpop.xlane.xlu0 %2922
    %v2924 = vsel %vm832, %v2866, 0.0
    %2925 = vadd.xlane.f32.xlu0 %v2924
    %v2926 = vpop.xlane.xlu0 %2925
    %v2927 = vsel %vm832, %v2868, 0.0
    %2928 = vadd.xlane.f32.xlu0 %v2927
    %v2929 = vpop.xlane.xlu0 %2928
    %v2930 = vsel %vm832, %v2870, 0.0
    %2931 = vadd.xlane.f32.xlu0 %v2930
    %v2932 = vpop.xlane.xlu0 %2931
    %v2933 = vsel %vm832, %v2872, 0.0
    %2934 = vadd.xlane.f32.xlu0 %v2933
    %v2935 = vpop.xlane.xlu0 %2934
    %v2936 = vsel %vm832, %v2874, 0.0
    %2937 = vadd.xlane.f32.xlu0 %v2936
    %v2938 = vpop.xlane.xlu0 %2937
    %v2939 = vsel %vm832, %v2876, 0.0
    %2940 = vadd.xlane.f32.xlu0 %v2939
    %v2941 = vpop.xlane.xlu0 %2940
    %v2942 = vsel %vm832, %v2878, 0.0
    %2943 = vadd.xlane.f32.xlu0 %v2942
    %v2944 = vpop.xlane.xlu0 %2943
    %v2945 = vsel %vm832, %v2880, 0.0
    %2946 = vadd.xlane.f32.xlu0 %v2945
    %v2947 = vpop.xlane.xlu0 %2946
    %v2948 = vsel %vm832, %v2882, 0.0
    %2949 = vadd.xlane.f32.xlu0 %v2948
    %v2950 = vpop.xlane.xlu0 %2949
    %v2951 = vsel %vm832, %v2884, 0.0
    %2952 = vadd.xlane.f32.xlu0 %v2951
    %v2953 = vpop.xlane.xlu0 %2952
    %v2954 = vsel %vm832, %v2886, 0.0
    %2955 = vadd.xlane.f32.xlu0 %v2954
    %v2956 = vpop.xlane.xlu0 %2955
    %v2957 = vsel %vm832, %v2888, 0.0
    %2958 = vadd.xlane.f32.xlu0 %v2957
    %v2959 = vpop.xlane.xlu0 %2958
    %v2960 = vsel %vm832, %v2890, 0.0
    %2961 = vadd.xlane.f32.xlu0 %v2960
    %v2962 = vpop.xlane.xlu0 %2961
    %v2963 = vsel %vm832, %v2892, 0.0
    %2964 = vadd.xlane.f32.xlu0 %v2963
    %v2965 = vpop.xlane.xlu0 %2964
    %v2966 = vsel %vm832, %v2894, 0.0
    %2967 = vadd.xlane.f32.xlu0 %v2966
    %v2968 = vpop.xlane.xlu0 %2967
    %v2969 = vsel %vm832, %v2896, 0.0
    %2970 = vadd.xlane.f32.xlu0 %v2969
    %v2971 = vpop.xlane.xlu0 %2970
    %v2972 = vsel %vm832, %v2898, 0.0
    %2973 = vadd.xlane.f32.xlu0 %v2972
    %v2974 = vpop.xlane.xlu0 %2973
    %v2975 = vsel %vm832, %v2900, 0.0
    %2976 = vadd.xlane.f32.xlu0 %v2975
    %v2977 = vpop.xlane.xlu0 %2976
    %v2978 = vsel %vm832, %v2902, 0.0
    %2979 = vadd.xlane.f32.xlu0 %v2978
    %v2980 = vpop.xlane.xlu0 %2979
    %v2981 = vsel %vm832, %v2904, 0.0
    %2982 = vadd.xlane.f32.xlu0 %v2981
    %v2983 = vpop.xlane.xlu0 %2982
    %v2984 = vsel %vm832, %v2906, 0.0
    %2985 = vadd.xlane.f32.xlu0 %v2984
    %v2986 = vpop.xlane.xlu0 %2985
    %v2987 = vsel %vm832, %v2908, 0.0
    %2988 = vadd.xlane.f32.xlu0 %v2987
    %v2989 = vpop.xlane.xlu0 %2988
    %v2990 = vsel %vm832, %v2910, 0.0
    %2991 = vadd.xlane.f32.xlu0 %v2990
    %v2992 = vpop.xlane.xlu0 %2991
    %v2993 = vsel %vm832, %v2912, 0.0
    %2994 = vadd.xlane.f32.xlu0 %v2993
    %v2995 = vpop.xlane.xlu0 %2994
    %v2996 = vsel %vm832, %v2914, 0.0
    %2997 = vadd.xlane.f32.xlu0 %v2996
    %v2998 = vpop.xlane.xlu0 %2997
    %v2999 = vrcp.pop %v2917
    %v3000 = vmul.f32 %v2917, %v2999
    %v3001 = vsub.f32 1.0, %v3000
    %v3002 = vmul.f32 %v2999, %v3001
    %v3003 = vadd.f32 %v2999, %v3002
    %vm3004 = vweird.f32 %v2917
    %vm3005 = vweird.f32 %v2999
    %vm3006 = vmor %vm3004, %vm3005
    %v3007 = vsel %vm3006, %v2999, %v3003
    %v3008 = vand.u32 2147483647, %v2917
    %vm3009 = vcmp.eq.f32.partialorder %v3008, 8.507059e+37
    %v3010 = vand.u32 %v2917, 2147483648
    %v3011 = vor.u32 1.1754944e-38, %v3010
    %v3012 = vsel %vm3009, %v3011, %v3007
    %v3013 = vrcp.pop %v2920
    %v3014 = vmul.f32 %v2920, %v3013
    %v3015 = vsub.f32 1.0, %v3014
    %v3016 = vmul.f32 %v3013, %v3015
    %v3017 = vadd.f32 %v3013, %v3016
    %vm3018 = vweird.f32 %v2920
    %vm3019 = vweird.f32 %v3013
    %vm3020 = vmor %vm3018, %vm3019
    %v3021 = vsel %vm3020, %v3013, %v3017
    %v3022 = vand.u32 2147483647, %v2920
    %vm3023 = vcmp.eq.f32.partialorder %v3022, 8.507059e+37
    %v3024 = vand.u32 %v2920, 2147483648
    %v3025 = vor.u32 1.1754944e-38, %v3024
    %v3026 = vsel %vm3023, %v3025, %v3021
    %v3027 = vrcp.pop %v2923
    %v3028 = vmul.f32 %v2923, %v3027
    %v3029 = vsub.f32 1.0, %v3028
    %v3030 = vmul.f32 %v3027, %v3029
    %v3031 = vadd.f32 %v3027, %v3030
    %vm3032 = vweird.f32 %v2923
    %vm3033 = vweird.f32 %v3027
    %vm3034 = vmor %vm3032, %vm3033
    %v3035 = vsel %vm3034, %v3027, %v3031
    %v3036 = vand.u32 2147483647, %v2923
    %vm3037 = vcmp.eq.f32.partialorder %v3036, 8.507059e+37
    %v3038 = vand.u32 %v2923, 2147483648
    %v3039 = vor.u32 1.1754944e-38, %v3038
    %v3040 = vsel %vm3037, %v3039, %v3035
    %v3041 = vrcp.pop %v2926
    %v3042 = vmul.f32 %v2926, %v3041
    %v3043 = vsub.f32 1.0, %v3042
    %v3044 = vmul.f32 %v3041, %v3043
    %v3045 = vadd.f32 %v3041, %v3044
    %vm3046 = vweird.f32 %v2926
    %vm3047 = vweird.f32 %v3041
    %vm3048 = vmor %vm3046, %vm3047
    %v3049 = vsel %vm3048, %v3041, %v3045
    %v3050 = vand.u32 2147483647, %v2926
    %vm3051 = vcmp.eq.f32.partialorder %v3050, 8.507059e+37
    %v3052 = vand.u32 %v2926, 2147483648
    %v3053 = vor.u32 1.1754944e-38, %v3052
    %v3054 = vsel %vm3051, %v3053, %v3049
    %v3055 = vrcp.pop %v2929
    %v3056 = vmul.f32 %v2929, %v3055
    %v3057 = vsub.f32 1.0, %v3056
    %v3058 = vmul.f32 %v3055, %v3057
    %v3059 = vadd.f32 %v3055, %v3058
    %vm3060 = vweird.f32 %v2929
    %vm3061 = vweird.f32 %v3055
    %vm3062 = vmor %vm3060, %vm3061
    %v3063 = vsel %vm3062, %v3055, %v3059
    %v3064 = vand.u32 2147483647, %v2929
    %vm3065 = vcmp.eq.f32.partialorder %v3064, 8.507059e+37
    %v3066 = vand.u32 %v2929, 2147483648
    %v3067 = vor.u32 1.1754944e-38, %v3066
    %v3068 = vsel %vm3065, %v3067, %v3063
    %v3069 = vrcp.pop %v2932
    %v3070 = vmul.f32 %v2932, %v3069
    %v3071 = vsub.f32 1.0, %v3070
    %v3072 = vmul.f32 %v3069, %v3071
    %v3073 = vadd.f32 %v3069, %v3072
    %vm3074 = vweird.f32 %v2932
    %vm3075 = vweird.f32 %v3069
    %vm3076 = vmor %vm3074, %vm3075
    %v3077 = vsel %vm3076, %v3069, %v3073
    %v3078 = vand.u32 2147483647, %v2932
    %vm3079 = vcmp.eq.f32.partialorder %v3078, 8.507059e+37
    %v3080 = vand.u32 %v2932, 2147483648
    %v3081 = vor.u32 1.1754944e-38, %v3080
    %v3082 = vsel %vm3079, %v3081, %v3077
    %v3083 = vrcp.pop %v2935
    %v3084 = vmul.f32 %v2935, %v3083
    %v3085 = vsub.f32 1.0, %v3084
    %v3086 = vmul.f32 %v3083, %v3085
    %v3087 = vadd.f32 %v3083, %v3086
    %vm3088 = vweird.f32 %v2935
    %vm3089 = vweird.f32 %v3083
    %vm3090 = vmor %vm3088, %vm3089
    %v3091 = vsel %vm3090, %v3083, %v3087
    %v3092 = vand.u32 2147483647, %v2935
    %vm3093 = vcmp.eq.f32.partialorder %v3092, 8.507059e+37
    %v3094 = vand.u32 %v2935, 2147483648
    %v3095 = vor.u32 1.1754944e-38, %v3094
    %v3096 = vsel %vm3093, %v3095, %v3091
    %v3097 = vrcp.pop %v2938
    %v3098 = vmul.f32 %v2938, %v3097
    %v3099 = vsub.f32 1.0, %v3098
    %v3100 = vmul.f32 %v3097, %v3099
    %v3101 = vadd.f32 %v3097, %v3100
    %vm3102 = vweird.f32 %v2938
    %vm3103 = vweird.f32 %v3097
    %vm3104 = vmor %vm3102, %vm3103
    %v3105 = vsel %vm3104, %v3097, %v3101
    %v3106 = vand.u32 2147483647, %v2938
    %vm3107 = vcmp.eq.f32.partialorder %v3106, 8.507059e+37
    %v3108 = vand.u32 %v2938, 2147483648
    %v3109 = vor.u32 1.1754944e-38, %v3108
    %v3110 = vsel %vm3107, %v3109, %v3105
    %v3111 = vrcp.pop %v2941
    %v3112 = vmul.f32 %v2941, %v3111
    %v3113 = vsub.f32 1.0, %v3112
    %v3114 = vmul.f32 %v3111, %v3113
    %v3115 = vadd.f32 %v3111, %v3114
    %vm3116 = vweird.f32 %v2941
    %vm3117 = vweird.f32 %v3111
    %vm3118 = vmor %vm3116, %vm3117
    %v3119 = vsel %vm3118, %v3111, %v3115
    %v3120 = vand.u32 2147483647, %v2941
    %vm3121 = vcmp.eq.f32.partialorder %v3120, 8.507059e+37
    %v3122 = vand.u32 %v2941, 2147483648
    %v3123 = vor.u32 1.1754944e-38, %v3122
    %v3124 = vsel %vm3121, %v3123, %v3119
    %v3125 = vrcp.pop %v2944
    %v3126 = vmul.f32 %v2944, %v3125
    %v3127 = vsub.f32 1.0, %v3126
    %v3128 = vmul.f32 %v3125, %v3127
    %v3129 = vadd.f32 %v3125, %v3128
    %vm3130 = vweird.f32 %v2944
    %vm3131 = vweird.f32 %v3125
    %vm3132 = vmor %vm3130, %vm3131
    %v3133 = vsel %vm3132, %v3125, %v3129
    %v3134 = vand.u32 2147483647, %v2944
    %vm3135 = vcmp.eq.f32.partialorder %v3134, 8.507059e+37
    %v3136 = vand.u32 %v2944, 2147483648
    %v3137 = vor.u32 1.1754944e-38, %v3136
    %v3138 = vsel %vm3135, %v3137, %v3133
    %v3139 = vrcp.pop %v2947
    %v3140 = vmul.f32 %v2947, %v3139
    %v3141 = vsub.f32 1.0, %v3140
    %v3142 = vmul.f32 %v3139, %v3141
    %v3143 = vadd.f32 %v3139, %v3142
    %vm3144 = vweird.f32 %v2947
    %vm3145 = vweird.f32 %v3139
    %vm3146 = vmor %vm3144, %vm3145
    %v3147 = vsel %vm3146, %v3139, %v3143
    %v3148 = vand.u32 2147483647, %v2947
    %vm3149 = vcmp.eq.f32.partialorder %v3148, 8.507059e+37
    %v3150 = vand.u32 %v2947, 2147483648
    %v3151 = vor.u32 1.1754944e-38, %v3150
    %v3152 = vsel %vm3149, %v3151, %v3147
    %v3153 = vrcp.pop %v2950
    %v3154 = vmul.f32 %v2950, %v3153
    %v3155 = vsub.f32 1.0, %v3154
    %v3156 = vmul.f32 %v3153, %v3155
    %v3157 = vadd.f32 %v3153, %v3156
    %vm3158 = vweird.f32 %v2950
    %vm3159 = vweird.f32 %v3153
    %vm3160 = vmor %vm3158, %vm3159
    %v3161 = vsel %vm3160, %v3153, %v3157
    %v3162 = vand.u32 2147483647, %v2950
    %vm3163 = vcmp.eq.f32.partialorder %v3162, 8.507059e+37
    %v3164 = vand.u32 %v2950, 2147483648
    %v3165 = vor.u32 1.1754944e-38, %v3164
    %v3166 = vsel %vm3163, %v3165, %v3161
    %v3167 = vrcp.pop %v2953
    %v3168 = vmul.f32 %v2953, %v3167
    %v3169 = vsub.f32 1.0, %v3168
    %v3170 = vmul.f32 %v3167, %v3169
    %v3171 = vadd.f32 %v3167, %v3170
    %vm3172 = vweird.f32 %v2953
    %vm3173 = vweird.f32 %v3167
    %vm3174 = vmor %vm3172, %vm3173
    %v3175 = vsel %vm3174, %v3167, %v3171
    %v3176 = vand.u32 2147483647, %v2953
    %vm3177 = vcmp.eq.f32.partialorder %v3176, 8.507059e+37
    %v3178 = vand.u32 %v2953, 2147483648
    %v3179 = vor.u32 1.1754944e-38, %v3178
    %v3180 = vsel %vm3177, %v3179, %v3175
    %v3181 = vrcp.pop %v2956
    %v3182 = vmul.f32 %v2956, %v3181
    %v3183 = vsub.f32 1.0, %v3182
    %v3184 = vmul.f32 %v3181, %v3183
    %v3185 = vadd.f32 %v3181, %v3184
    %vm3186 = vweird.f32 %v2956
    %vm3187 = vweird.f32 %v3181
    %vm3188 = vmor %vm3186, %vm3187
    %v3189 = vsel %vm3188, %v3181, %v3185
    %v3190 = vand.u32 2147483647, %v2956
    %vm3191 = vcmp.eq.f32.partialorder %v3190, 8.507059e+37
    %v3192 = vand.u32 %v2956, 2147483648
    %v3193 = vor.u32 1.1754944e-38, %v3192
    %v3194 = vsel %vm3191, %v3193, %v3189
    %v3195 = vrcp.pop %v2959
    %v3196 = vmul.f32 %v2959, %v3195
    %v3197 = vsub.f32 1.0, %v3196
    %v3198 = vmul.f32 %v3195, %v3197
    %v3199 = vadd.f32 %v3195, %v3198
    %vm3200 = vweird.f32 %v2959
    %vm3201 = vweird.f32 %v3195
    %vm3202 = vmor %vm3200, %vm3201
    %v3203 = vsel %vm3202, %v3195, %v3199
    %v3204 = vand.u32 2147483647, %v2959
    %vm3205 = vcmp.eq.f32.partialorder %v3204, 8.507059e+37
    %v3206 = vand.u32 %v2959, 2147483648
    %v3207 = vor.u32 1.1754944e-38, %v3206
    %v3208 = vsel %vm3205, %v3207, %v3203
    %v3209 = vrcp.pop %v2962
    %v3210 = vmul.f32 %v2962, %v3209
    %v3211 = vsub.f32 1.0, %v3210
    %v3212 = vmul.f32 %v3209, %v3211
    %v3213 = vadd.f32 %v3209, %v3212
    %vm3214 = vweird.f32 %v2962
    %vm3215 = vweird.f32 %v3209
    %vm3216 = vmor %vm3214, %vm3215
    %v3217 = vsel %vm3216, %v3209, %v3213
    %v3218 = vand.u32 2147483647, %v2962
    %vm3219 = vcmp.eq.f32.partialorder %v3218, 8.507059e+37
    %v3220 = vand.u32 %v2962, 2147483648
    %v3221 = vor.u32 1.1754944e-38, %v3220
    %v3222 = vsel %vm3219, %v3221, %v3217
    %v3223 = vrcp.pop %v2965
    %v3224 = vmul.f32 %v2965, %v3223
    %v3225 = vsub.f32 1.0, %v3224
    %v3226 = vmul.f32 %v3223, %v3225
    %v3227 = vadd.f32 %v3223, %v3226
    %vm3228 = vweird.f32 %v2965
    %vm3229 = vweird.f32 %v3223
    %vm3230 = vmor %vm3228, %vm3229
    %v3231 = vsel %vm3230, %v3223, %v3227
    %v3232 = vand.u32 2147483647, %v2965
    %vm3233 = vcmp.eq.f32.partialorder %v3232, 8.507059e+37
    %v3234 = vand.u32 %v2965, 2147483648
    %v3235 = vor.u32 1.1754944e-38, %v3234
    %v3236 = vsel %vm3233, %v3235, %v3231
    %v3237 = vrcp.pop %v2968
    %v3238 = vmul.f32 %v2968, %v3237
    %v3239 = vsub.f32 1.0, %v3238
    %v3240 = vmul.f32 %v3237, %v3239
    %v3241 = vadd.f32 %v3237, %v3240
    %vm3242 = vweird.f32 %v2968
    %vm3243 = vweird.f32 %v3237
    %vm3244 = vmor %vm3242, %vm3243
    %v3245 = vsel %vm3244, %v3237, %v3241
    %v3246 = vand.u32 2147483647, %v2968
    %vm3247 = vcmp.eq.f32.partialorder %v3246, 8.507059e+37
    %v3248 = vand.u32 %v2968, 2147483648
    %v3249 = vor.u32 1.1754944e-38, %v3248
    %v3250 = vsel %vm3247, %v3249, %v3245
    %v3251 = vrcp.pop %v2971
    %v3252 = vmul.f32 %v2971, %v3251
    %v3253 = vsub.f32 1.0, %v3252
    %v3254 = vmul.f32 %v3251, %v3253
    %v3255 = vadd.f32 %v3251, %v3254
    %vm3256 = vweird.f32 %v2971
    %vm3257 = vweird.f32 %v3251
    %vm3258 = vmor %vm3256, %vm3257
    %v3259 = vsel %vm3258, %v3251, %v3255
    %v3260 = vand.u32 2147483647, %v2971
    %vm3261 = vcmp.eq.f32.partialorder %v3260, 8.507059e+37
    %v3262 = vand.u32 %v2971, 2147483648
    %v3263 = vor.u32 1.1754944e-38, %v3262
    %v3264 = vsel %vm3261, %v3263, %v3259
    %v3265 = vrcp.pop %v2974
    %v3266 = vmul.f32 %v2974, %v3265
    %v3267 = vsub.f32 1.0, %v3266
    %v3268 = vmul.f32 %v3265, %v3267
    %v3269 = vadd.f32 %v3265, %v3268
    %vm3270 = vweird.f32 %v2974
    %vm3271 = vweird.f32 %v3265
    %vm3272 = vmor %vm3270, %vm3271
    %v3273 = vsel %vm3272, %v3265, %v3269
    %v3274 = vand.u32 2147483647, %v2974
    %vm3275 = vcmp.eq.f32.partialorder %v3274, 8.507059e+37
    %v3276 = vand.u32 %v2974, 2147483648
    %v3277 = vor.u32 1.1754944e-38, %v3276
    %v3278 = vsel %vm3275, %v3277, %v3273
    %v3279 = vrcp.pop %v2977
    %v3280 = vmul.f32 %v2977, %v3279
    %v3281 = vsub.f32 1.0, %v3280
    %v3282 = vmul.f32 %v3279, %v3281
    %v3283 = vadd.f32 %v3279, %v3282
    %vm3284 = vweird.f32 %v2977
    %vm3285 = vweird.f32 %v3279
    %vm3286 = vmor %vm3284, %vm3285
    %v3287 = vsel %vm3286, %v3279, %v3283
    %v3288 = vand.u32 2147483647, %v2977
    %vm3289 = vcmp.eq.f32.partialorder %v3288, 8.507059e+37
    %v3290 = vand.u32 %v2977, 2147483648
    %v3291 = vor.u32 1.1754944e-38, %v3290
    %v3292 = vsel %vm3289, %v3291, %v3287
    %v3293 = vrcp.pop %v2980
    %v3294 = vmul.f32 %v2980, %v3293
    %v3295 = vsub.f32 1.0, %v3294
    %v3296 = vmul.f32 %v3293, %v3295
    %v3297 = vadd.f32 %v3293, %v3296
    %vm3298 = vweird.f32 %v2980
    %vm3299 = vweird.f32 %v3293
    %vm3300 = vmor %vm3298, %vm3299
    %v3301 = vsel %vm3300, %v3293, %v3297
    %v3302 = vand.u32 2147483647, %v2980
    %vm3303 = vcmp.eq.f32.partialorder %v3302, 8.507059e+37
    %v3304 = vand.u32 %v2980, 2147483648
    %v3305 = vor.u32 1.1754944e-38, %v3304
    %v3306 = vsel %vm3303, %v3305, %v3301
    %v3307 = vrcp.pop %v2983
    %v3308 = vmul.f32 %v2983, %v3307
    %v3309 = vsub.f32 1.0, %v3308
    %v3310 = vmul.f32 %v3307, %v3309
    %v3311 = vadd.f32 %v3307, %v3310
    %vm3312 = vweird.f32 %v2983
    %vm3313 = vweird.f32 %v3307
    %vm3314 = vmor %vm3312, %vm3313
    %v3315 = vsel %vm3314, %v3307, %v3311
    %v3316 = vand.u32 2147483647, %v2983
    %vm3317 = vcmp.eq.f32.partialorder %v3316, 8.507059e+37
    %v3318 = vand.u32 %v2983, 2147483648
    %v3319 = vor.u32 1.1754944e-38, %v3318
    %v3320 = vsel %vm3317, %v3319, %v3315
    %v3321 = vrcp.pop %v2986
    %v3322 = vmul.f32 %v2986, %v3321
    %v3323 = vsub.f32 1.0, %v3322
    %v3324 = vmul.f32 %v3321, %v3323
    %v3325 = vadd.f32 %v3321, %v3324
    %vm3326 = vweird.f32 %v2986
    %vm3327 = vweird.f32 %v3321
    %vm3328 = vmor %vm3326, %vm3327
    %v3329 = vsel %vm3328, %v3321, %v3325
    %v3330 = vand.u32 2147483647, %v2986
    %vm3331 = vcmp.eq.f32.partialorder %v3330, 8.507059e+37
    %v3332 = vand.u32 %v2986, 2147483648
    %v3333 = vor.u32 1.1754944e-38, %v3332
    %v3334 = vsel %vm3331, %v3333, %v3329
    %v3335 = vrcp.pop %v2989
    %v3336 = vmul.f32 %v2989, %v3335
    %v3337 = vsub.f32 1.0, %v3336
    %v3338 = vmul.f32 %v3335, %v3337
    %v3339 = vadd.f32 %v3335, %v3338
    %vm3340 = vweird.f32 %v2989
    %vm3341 = vweird.f32 %v3335
    %vm3342 = vmor %vm3340, %vm3341
    %v3343 = vsel %vm3342, %v3335, %v3339
    %v3344 = vand.u32 2147483647, %v2989
    %vm3345 = vcmp.eq.f32.partialorder %v3344, 8.507059e+37
    %v3346 = vand.u32 %v2989, 2147483648
    %v3347 = vor.u32 1.1754944e-38, %v3346
    %v3348 = vsel %vm3345, %v3347, %v3343
    %v3349 = vrcp.pop %v2992
    %v3350 = vmul.f32 %v2992, %v3349
    %v3351 = vsub.f32 1.0, %v3350
    %v3352 = vmul.f32 %v3349, %v3351
    %v3353 = vadd.f32 %v3349, %v3352
    %vm3354 = vweird.f32 %v2992
    %vm3355 = vweird.f32 %v3349
    %vm3356 = vmor %vm3354, %vm3355
    %v3357 = vsel %vm3356, %v3349, %v3353
    %v3358 = vand.u32 2147483647, %v2992
    %vm3359 = vcmp.eq.f32.partialorder %v3358, 8.507059e+37
    %v3360 = vand.u32 %v2992, 2147483648
    %v3361 = vor.u32 1.1754944e-38, %v3360
    %v3362 = vsel %vm3359, %v3361, %v3357
    %v3363 = vrcp.pop %v2995
    %v3364 = vmul.f32 %v2995, %v3363
    %v3365 = vsub.f32 1.0, %v3364
    %v3366 = vmul.f32 %v3363, %v3365
    %v3367 = vadd.f32 %v3363, %v3366
    %vm3368 = vweird.f32 %v2995
    %vm3369 = vweird.f32 %v3363
    %vm3370 = vmor %vm3368, %vm3369
    %v3371 = vsel %vm3370, %v3363, %v3367
    %v3372 = vand.u32 2147483647, %v2995
    %vm3373 = vcmp.eq.f32.partialorder %v3372, 8.507059e+37
    %v3374 = vand.u32 %v2995, 2147483648
    %v3375 = vor.u32 1.1754944e-38, %v3374
    %v3376 = vsel %vm3373, %v3375, %v3371
    %v3377 = vrcp.pop %v2998
    %v3378 = vmul.f32 %v2998, %v3377
    %v3379 = vsub.f32 1.0, %v3378
    %v3380 = vmul.f32 %v3377, %v3379
    %v3381 = vadd.f32 %v3377, %v3380
    %vm3382 = vweird.f32 %v2998
    %vm3383 = vweird.f32 %v3377
    %vm3384 = vmor %vm3382, %vm3383
    %v3385 = vsel %vm3384, %v3377, %v3381
    %v3386 = vand.u32 2147483647, %v2998
    %vm3387 = vcmp.eq.f32.partialorder %v3386, 8.507059e+37
    %v3388 = vand.u32 %v2998, 2147483648
    %v3389 = vor.u32 1.1754944e-38, %v3388
    %v3390 = vsel %vm3387, %v3389, %v3385
    %v3391 = vmul.f32 %v2860, %v3012
    %v3392 = vmul.f32 %v2862, %v3026
    %v3393 = vmul.f32 %v2864, %v3040
    %v3394 = vmul.f32 %v2866, %v3054
    %v3395 = vmul.f32 %v2868, %v3068
    %v3396 = vmul.f32 %v2870, %v3082
    %v3397 = vmul.f32 %v2872, %v3096
    %v3398 = vmul.f32 %v2874, %v3110
    %v3399 = vmul.f32 %v2876, %v3124
    %v3400 = vmul.f32 %v2878, %v3138
    %v3401 = vmul.f32 %v2880, %v3152
    %v3402 = vmul.f32 %v2882, %v3166
    %v3403 = vmul.f32 %v2884, %v3180
    %v3404 = vmul.f32 %v2886, %v3194
    %v3405 = vmul.f32 %v2888, %v3208
    %v3406 = vmul.f32 %v2890, %v3222
    %v3407 = vmul.f32 %v2892, %v3236
    %v3408 = vmul.f32 %v2894, %v3250
    %v3409 = vmul.f32 %v2896, %v3264
    %v3410 = vmul.f32 %v2898, %v3278
    %v3411 = vmul.f32 %v2900, %v3292
    %v3412 = vmul.f32 %v2902, %v3306
    %v3413 = vmul.f32 %v2904, %v3320
    %v3414 = vmul.f32 %v2906, %v3334
    %v3415 = vmul.f32 %v2908, %v3348
    %v3416 = vmul.f32 %v2910, %v3362
    %v3417 = vmul.f32 %v2912, %v3376
    %v3418 = vmul.f32 %v2914, %v3390
    %v3420 = vsel %vm832, %v3391, 0
    %v3423 = vsel %vm832, %v3392, 0
    %v3426 = vsel %vm832, %v3393, 0
    %v3429 = vsel %vm832, %v3394, 0
    %v3432 = vsel %vm832, %v3395, 0
    %v3435 = vsel %vm832, %v3396, 0
    %v3438 = vsel %vm832, %v3397, 0
    %v3441 = vsel %vm832, %v3398, 0
    %v3444 = vsel %vm832, %v3399, 0
    %v3447 = vsel %vm832, %v3400, 0
    %v3450 = vsel %vm832, %v3401, 0
    %v3453 = vsel %vm832, %v3402, 0
    %v3456 = vsel %vm832, %v3403, 0
    %v3459 = vsel %vm832, %v3404, 0
    %v3462 = vsel %vm832, %v3405, 0
    %v3465 = vsel %vm832, %v3406, 0
    %v3468 = vsel %vm832, %v3407, 0
    %v3471 = vsel %vm832, %v3408, 0
    %v3474 = vsel %vm832, %v3409, 0
    %v3477 = vsel %vm832, %v3410, 0
    %v3480 = vsel %vm832, %v3411, 0
    %v3483 = vsel %vm832, %v3412, 0
    %v3486 = vsel %vm832, %v3413, 0
    %v3489 = vsel %vm832, %v3414, 0
    %v3492 = vsel %vm832, %v3415, 0
    %v3495 = vsel %vm832, %v3416, 0
    %v3498 = vsel %vm832, %v3417, 0
    %v3501 = vsel %vm832, %v3418, 0
    %3503 = vmatpush.msra.mxu0 0.0
    %3504 = vmatpush.msra.mxu0 0.0
    %3505 = vmatpush.msra.mxu0 0.0
    %3506 = vmatpush.msra.mxu0 0.0
    %3507 = vmatpush.msra.mxu0 0.0
    %3508 = vmatpush.msra.mxu0 0.0
    %3509 = vmatpush.msra.mxu0 0.0
    %3510 = vmatpush.msra.mxu0 0.0
    %3511 = vmatpush.msra.mxu0 0.0
    %3512 = vmatpush.msra.mxu0 %v2511
    %3513 = vmatpush.msra.mxu0 %v2508
    %3514 = vmatpush.msra.mxu0 %v2505
    %3515 = vmatpush.msra.mxu0 %v2502
    %3516 = vmatpush.msra.mxu0 %v2499
    %3517 = vmatpush.msra.mxu0 %v2496
    %3518 = vmatpush.msra.mxu0 %v2493
    %3519 = vmatmul.f32.gmra.mxu0 %v3420
    %v3520 = vpop.f32.mrf.mxu0
    %v3521 = vadd.f32 0.0, %v3520
    %3522 = vmatmul.f32.gmra.mxu0 %v3423
    %v3523 = vpop.f32.mrf.mxu0
    %v3524 = vadd.f32 0.0, %v3523
    %3525 = vmatmul.f32.gmra.mxu0 %v3426
    %v3526 = vpop.f32.mrf.mxu0
    %v3527 = vadd.f32 0.0, %v3526
    %3528 = vmatmul.f32.gmra.mxu0 %v3429
    %v3529 = vpop.f32.mrf.mxu0
    %v3530 = vadd.f32 0.0, %v3529
    %3531 = vmatmul.f32.gmra.mxu0 %v3432
    %v3532 = vpop.f32.mrf.mxu0
    %v3533 = vadd.f32 0.0, %v3532
    %3534 = vmatmul.f32.gmra.mxu0 %v3435
    %v3535 = vpop.f32.mrf.mxu0
    %v3536 = vadd.f32 0.0, %v3535
    %3537 = vmatmul.f32.gmra.mxu0 %v3438
    %v3538 = vpop.f32.mrf.mxu0
    %v3539 = vadd.f32 0.0, %v3538
    %3540 = vmatmul.f32.gmra.mxu0 %v3441
    %v3541 = vpop.f32.mrf.mxu0
    %v3542 = vadd.f32 0.0, %v3541
    %3543 = vmatmul.f32.gmra.mxu0 %v3444
    %v3544 = vpop.f32.mrf.mxu0
    %v3545 = vadd.f32 0.0, %v3544
    %3546 = vmatmul.f32.gmra.mxu0 %v3447
    %v3547 = vpop.f32.mrf.mxu0
    %v3548 = vadd.f32 0.0, %v3547
    %3549 = vmatmul.f32.gmra.mxu0 %v3450
    %v3550 = vpop.f32.mrf.mxu0
    %v3551 = vadd.f32 0.0, %v3550
    %3552 = vmatmul.f32.gmra.mxu0 %v3453
    %v3553 = vpop.f32.mrf.mxu0
    %v3554 = vadd.f32 0.0, %v3553
    %3555 = vmatmul.f32.gmra.mxu0 %v3456
    %v3556 = vpop.f32.mrf.mxu0
    %v3557 = vadd.f32 0.0, %v3556
    %3558 = vmatmul.f32.gmra.mxu0 %v3459
    %v3559 = vpop.f32.mrf.mxu0
    %v3560 = vadd.f32 0.0, %v3559
    %3561 = vmatmul.f32.gmra.mxu0 %v3462
    %v3562 = vpop.f32.mrf.mxu0
    %v3563 = vadd.f32 0.0, %v3562
    %3564 = vmatmul.f32.gmra.mxu0 %v3465
    %v3565 = vpop.f32.mrf.mxu0
    %v3566 = vadd.f32 0.0, %v3565
    %3567 = vmatmul.f32.gmra.mxu0 %v3468
    %v3568 = vpop.f32.mrf.mxu0
    %v3569 = vadd.f32 0.0, %v3568
    %3570 = vmatmul.f32.gmra.mxu0 %v3471
    %v3571 = vpop.f32.mrf.mxu0
    %v3572 = vadd.f32 0.0, %v3571
    %3573 = vmatmul.f32.gmra.mxu0 %v3474
    %v3574 = vpop.f32.mrf.mxu0
    %v3575 = vadd.f32 0.0, %v3574
    %3576 = vmatmul.f32.gmra.mxu0 %v3477
    %v3577 = vpop.f32.mrf.mxu0
    %v3578 = vadd.f32 0.0, %v3577
    %3579 = vmatmul.f32.gmra.mxu0 %v3480
    %v3580 = vpop.f32.mrf.mxu0
    %v3581 = vadd.f32 0.0, %v3580
    %3582 = vmatmul.f32.gmra.mxu0 %v3483
    %v3583 = vpop.f32.mrf.mxu0
    %v3584 = vadd.f32 0.0, %v3583
    %3585 = vmatmul.f32.gmra.mxu0 %v3486
    %v3586 = vpop.f32.mrf.mxu0
    %v3587 = vadd.f32 0.0, %v3586
    %3588 = vmatmul.f32.gmra.mxu0 %v3489
    %v3589 = vpop.f32.mrf.mxu0
    %v3590 = vadd.f32 0.0, %v3589
    %3591 = vmatmul.f32.gmra.mxu0 %v3492
    %v3592 = vpop.f32.mrf.mxu0
    %v3593 = vadd.f32 0.0, %v3592
    %3594 = vmatmul.f32.gmra.mxu0 %v3495
    %v3595 = vpop.f32.mrf.mxu0
    %v3596 = vadd.f32 0.0, %v3595
    %3597 = vmatmul.f32.gmra.mxu0 %v3498
    %v3598 = vpop.f32.mrf.mxu0
    %v3599 = vadd.f32 0.0, %v3598
    %3600 = vmatmul.f32.gmra.mxu0 %v3501
    %v3601 = vpop.f32.mrf.mxu0
    %v3602 = vadd.f32 0.0, %v3601
    %3603 = vdwg.mxu0
    %v3604 = vmul.f32 %v3521, %v208
    %v3605 = vmul.f32 %v3524, %v209
    %v3606 = vmul.f32 %v3527, %v210
    %v3607 = vmul.f32 %v3530, %v211
    %v3608 = vmul.f32 %v3533, %v212
    %v3609 = vmul.f32 %v3536, %v213
    %v3610 = vmul.f32 %v3539, %v214
    %v3611 = vmul.f32 %v3542, %v215
    %v3612 = vmul.f32 %v3545, %v216
    %v3613 = vmul.f32 %v3548, %v217
    %v3614 = vmul.f32 %v3551, %v218
    %v3615 = vmul.f32 %v3554, %v219
    %v3616 = vmul.f32 %v3557, %v220
    %v3617 = vmul.f32 %v3560, %v221
    %v3618 = vmul.f32 %v3563, %v222
    %v3619 = vmul.f32 %v3566, %v223
    %v3620 = vmul.f32 %v3569, %v224
    %v3621 = vmul.f32 %v3572, %v225
    %v3622 = vmul.f32 %v3575, %v226
    %v3623 = vmul.f32 %v3578, %v227
    %v3624 = vmul.f32 %v3581, %v228
    %v3625 = vmul.f32 %v3584, %v229
    %v3626 = vmul.f32 %v3587, %v230
    %v3627 = vmul.f32 %v3590, %v231
    %v3628 = vmul.f32 %v3593, %v232
    %v3629 = vmul.f32 %v3596, %v233
    %v3630 = vmul.f32 %v3599, %v234
    %v3631 = vmul.f32 %v3602, %v235
    %v3632 = vadd.f32 %v3604, %v3611
    %v3633 = vadd.f32 %v3605, %v3612
    %v3634 = vadd.f32 %v3606, %v3613
    %v3635 = vadd.f32 %v3607, %v3614
    %v3636 = vadd.f32 %v3608, %v3615
    %v3637 = vadd.f32 %v3609, %v3616
    %v3638 = vadd.f32 %v3610, %v3617
    %v3639 = vadd.f32 %v3632, %v3618
    %v3640 = vadd.f32 %v3633, %v3619
    %v3641 = vadd.f32 %v3634, %v3620
    %v3642 = vadd.f32 %v3635, %v3621
    %v3643 = vadd.f32 %v3636, %v3622
    %v3644 = vadd.f32 %v3637, %v3623
    %v3645 = vadd.f32 %v3638, %v3624
    %v3646 = vadd.f32 %v3639, %v3625
    %v3647 = vadd.f32 %v3640, %v3626
    %v3648 = vadd.f32 %v3641, %v3627
    %v3649 = vadd.f32 %v3642, %v3628
    %v3650 = vadd.f32 %v3643, %v3629
    %v3651 = vadd.f32 %v3644, %v3630
    %v3652 = vadd.f32 %v3645, %v3631
    %v3654 = vsel %vm282, %v3646, 0
    %v3657 = vsel %vm282, %v3647, 0
    %v3660 = vsel %vm282, %v3648, 0
    %v3663 = vsel %vm282, %v3649, 0
    %v3666 = vsel %vm282, %v3650, 0
    %v3669 = vsel %vm282, %v3651, 0
    %v3672 = vsel %vm282, %v3652, 0
    %3674 = vmatpush.msra.mxu0 0.0
    %3675 = vmatpush.msra.mxu0 0.0
    %3676 = vmatpush.msra.mxu0 0.0
    %3677 = vmatpush.msra.mxu0 0.0
    %3678 = vmatpush.msra.mxu0 0.0
    %3679 = vmatpush.msra.mxu0 0.0
    %3680 = vmatpush.msra.mxu0 0.0
    %3681 = vmatpush.msra.mxu0 0.0
    %3682 = vmatpush.msra.mxu0 0.0
    %3683 = vmatpush.msra.mxu0 0.0
    %3684 = vmatpush.msra.mxu0 0.0
    %3685 = vmatpush.msra.mxu0 0.0
    %3686 = vmatpush.msra.mxu0 %v2184
    %3687 = vmatpush.msra.mxu0 %v2183
    %3688 = vmatpush.msra.mxu0 %v2182
    %3689 = vmatpush.msra.mxu0 %v2181
    %3690 = vmatmul.f32.gmra.mxu0 %v3654
    %v3691 = vpop.f32.mrf.mxu0
    %v3692 = vadd.f32 0.0, %v3691
    %3693 = vmatmul.f32.gmra.mxu0 %v3657
    %v3694 = vpop.f32.mrf.mxu0
    %v3695 = vadd.f32 0.0, %v3694
    %3696 = vmatmul.f32.gmra.mxu0 %v3660
    %v3697 = vpop.f32.mrf.mxu0
    %v3698 = vadd.f32 0.0, %v3697
    %3699 = vmatmul.f32.gmra.mxu0 %v3663
    %v3700 = vpop.f32.mrf.mxu0
    %v3701 = vadd.f32 0.0, %v3700
    %3702 = vmatmul.f32.gmra.mxu0 %v3666
    %v3703 = vpop.f32.mrf.mxu0
    %v3704 = vadd.f32 0.0, %v3703
    %3705 = vmatmul.f32.gmra.mxu0 %v3669
    %v3706 = vpop.f32.mrf.mxu0
    %v3707 = vadd.f32 0.0, %v3706
    %3708 = vmatmul.f32.gmra.mxu0 %v3672
    %v3709 = vpop.f32.mrf.mxu0
    %v3710 = vadd.f32 0.0, %v3709
    %3711 = vdwg.mxu0
    %v3712 = vadd.f32 %v2152, %v3692
    %v3713 = vadd.f32 %v2153, %v3695
    %v3714 = vadd.f32 %v2154, %v3698
    %v3715 = vadd.f32 %v2155, %v3701
    %v3716 = vadd.f32 %v2156, %v3704
    %v3717 = vadd.f32 %v2157, %v3707
    %v3718 = vadd.f32 %v2158, %v3710
    %v3719 = vperm.slane %v2164, 0
    %v3720 = vadd.f32 %v3712, %v3719
    %v3721 = vadd.f32 %v3713, %v3719
    %v3722 = vadd.f32 %v3714, %v3719
    %v3723 = vadd.f32 %v3715, %v3719
    %v3724 = vadd.f32 %v3716, %v3719
    %v3725 = vadd.f32 %v3717, %v3719
    %v3726 = vadd.f32 %v3718, %v3719
    %v3727 = vsel %vm282, %v3720, 0.0
    %3728 = vadd.xlane.f32.xlu0 %v3727
    %v3729 = vpop.xlane.xlu0 %3728
    %v3730 = vsel %vm282, %v3721, 0.0
    %3731 = vadd.xlane.f32.xlu0 %v3730
    %v3732 = vpop.xlane.xlu0 %3731
    %v3733 = vsel %vm282, %v3722, 0.0
    %3734 = vadd.xlane.f32.xlu0 %v3733
    %v3735 = vpop.xlane.xlu0 %3734
    %v3736 = vsel %vm282, %v3723, 0.0
    %3737 = vadd.xlane.f32.xlu0 %v3736
    %v3738 = vpop.xlane.xlu0 %3737
    %v3739 = vsel %vm282, %v3724, 0.0
    %3740 = vadd.xlane.f32.xlu0 %v3739
    %v3741 = vpop.xlane.xlu0 %3740
    %v3742 = vsel %vm282, %v3725, 0.0
    %3743 = vadd.xlane.f32.xlu0 %v3742
    %v3744 = vpop.xlane.xlu0 %3743
    %v3745 = vsel %vm282, %v3726, 0.0
    %3746 = vadd.xlane.f32.xlu0 %v3745
    %v3747 = vpop.xlane.xlu0 %3746
    %v3748 = vmul.f32 %v3729, %v310
    %v3749 = vmul.f32 %v3732, %v310
    %v3750 = vmul.f32 %v3735, %v310
    %v3751 = vmul.f32 %v3738, %v310
    %v3752 = vmul.f32 %v3741, %v310
    %v3753 = vmul.f32 %v3744, %v310
    %v3754 = vmul.f32 %v3747, %v310
    %v3755 = vsub.f32 %v3720, %v3748
    %v3756 = vsub.f32 %v3721, %v3749
    %v3757 = vsub.f32 %v3722, %v3750
    %v3758 = vsub.f32 %v3723, %v3751
    %v3759 = vsub.f32 %v3724, %v3752
    %v3760 = vsub.f32 %v3725, %v3753
    %v3761 = vsub.f32 %v3726, %v3754
    %v3762 = vmul.f32 %v3755, %v3755
    %v3763 = vmul.f32 %v3756, %v3756
    %v3764 = vmul.f32 %v3757, %v3757
    %v3765 = vmul.f32 %v3758, %v3758
    %v3766 = vmul.f32 %v3759, %v3759
    %v3767 = vmul.f32 %v3760, %v3760
    %v3768 = vmul.f32 %v3761, %v3761
    %v3769 = vsel %vm282, %v3762, 0.0
    %3770 = vadd.xlane.f32.xlu0 %v3769
    %v3771 = vpop.xlane.xlu0 %3770
    %v3772 = vsel %vm282, %v3763, 0.0
    %3773 = vadd.xlane.f32.xlu0 %v3772
    %v3774 = vpop.xlane.xlu0 %3773
    %v3775 = vsel %vm282, %v3764, 0.0
    %3776 = vadd.xlane.f32.xlu0 %v3775
    %v3777 = vpop.xlane.xlu0 %3776
    %v3778 = vsel %vm282, %v3765, 0.0
    %3779 = vadd.xlane.f32.xlu0 %v3778
    %v3780 = vpop.xlane.xlu0 %3779
    %v3781 = vsel %vm282, %v3766, 0.0
    %3782 = vadd.xlane.f32.xlu0 %v3781
    %v3783 = vpop.xlane.xlu0 %3782
    %v3784 = vsel %vm282, %v3767, 0.0
    %3785 = vadd.xlane.f32.xlu0 %v3784
    %v3786 = vpop.xlane.xlu0 %3785
    %v3787 = vsel %vm282, %v3768, 0.0
    %3788 = vadd.xlane.f32.xlu0 %v3787
    %v3789 = vpop.xlane.xlu0 %3788
    %v3790 = vmul.f32 %v3771, %v310
    %v3791 = vmul.f32 %v3774, %v310
    %v3792 = vmul.f32 %v3777, %v310
    %v3793 = vmul.f32 %v3780, %v310
    %v3794 = vmul.f32 %v3783, %v310
    %v3795 = vmul.f32 %v3786, %v310
    %v3796 = vmul.f32 %v3789, %v310
    %v3797 = vadd.f32 %v3790, 1e-05
    %v3798 = vadd.f32 %v3791, 1e-05
    %v3799 = vadd.f32 %v3792, 1e-05
    %v3800 = vadd.f32 %v3793, 1e-05
    %v3801 = vadd.f32 %v3794, 1e-05
    %v3802 = vadd.f32 %v3795, 1e-05
    %v3803 = vadd.f32 %v3796, 1e-05
    %v3804 = vrsqrt.pop %v3797
    %v3805 = vmul.f32 %v3804, %v3797
    %v3806 = vmul.f32 %v3805, %v3804
    %v3807 = vmul.f32 0.5, %v3806
    %v3808 = vsub.f32 1.5, %v3807
    %v3809 = vmul.f32 %v3804, %v3808
    %vm3810 = vweird.f32 %v3797
    %vm3811 = vweird.f32 %v3804
    %vm3812 = vmor %vm3810, %vm3811
    %v3813 = vsel %vm3812, %v3804, %v3809
    %v3814 = vrsqrt.pop %v3798
    %v3815 = vmul.f32 %v3814, %v3798
    %v3816 = vmul.f32 %v3815, %v3814
    %v3817 = vmul.f32 0.5, %v3816
    %v3818 = vsub.f32 1.5, %v3817
    %v3819 = vmul.f32 %v3814, %v3818
    %vm3820 = vweird.f32 %v3798
    %vm3821 = vweird.f32 %v3814
    %vm3822 = vmor %vm3820, %vm3821
    %v3823 = vsel %vm3822, %v3814, %v3819
    %v3824 = vrsqrt.pop %v3799
    %v3825 = vmul.f32 %v3824, %v3799
    %v3826 = vmul.f32 %v3825, %v3824
    %v3827 = vmul.f32 0.5, %v3826
    %v3828 = vsub.f32 1.5, %v3827
    %v3829 = vmul.f32 %v3824, %v3828
    %vm3830 = vweird.f32 %v3799
    %vm3831 = vweird.f32 %v3824
    %vm3832 = vmor %vm3830, %vm3831
    %v3833 = vsel %vm3832, %v3824, %v3829
    %v3834 = vrsqrt.pop %v3800
    %v3835 = vmul.f32 %v3834, %v3800
    %v3836 = vmul.f32 %v3835, %v3834
    %v3837 = vmul.f32 0.5, %v3836
    %v3838 = vsub.f32 1.5, %v3837
    %v3839 = vmul.f32 %v3834, %v3838
    %vm3840 = vweird.f32 %v3800
    %vm3841 = vweird.f32 %v3834
    %vm3842 = vmor %vm3840, %vm3841
    %v3843 = vsel %vm3842, %v3834, %v3839
    %v3844 = vrsqrt.pop %v3801
    %v3845 = vmul.f32 %v3844, %v3801
    %v3846 = vmul.f32 %v3845, %v3844
    %v3847 = vmul.f32 0.5, %v3846
    %v3848 = vsub.f32 1.5, %v3847
    %v3849 = vmul.f32 %v3844, %v3848
    %vm3850 = vweird.f32 %v3801
    %vm3851 = vweird.f32 %v3844
    %vm3852 = vmor %vm3850, %vm3851
    %v3853 = vsel %vm3852, %v3844, %v3849
    %v3854 = vrsqrt.pop %v3802
    %v3855 = vmul.f32 %v3854, %v3802
    %v3856 = vmul.f32 %v3855, %v3854
    %v3857 = vmul.f32 0.5, %v3856
    %v3858 = vsub.f32 1.5, %v3857
    %v3859 = vmul.f32 %v3854, %v3858
    %vm3860 = vweird.f32 %v3802
    %vm3861 = vweird.f32 %v3854
    %vm3862 = vmor %vm3860, %vm3861
    %v3863 = vsel %vm3862, %v3854, %v3859
    %v3864 = vrsqrt.pop %v3803
    %v3865 = vmul.f32 %v3864, %v3803
    %v3866 = vmul.f32 %v3865, %v3864
    %v3867 = vmul.f32 0.5, %v3866
    %v3868 = vsub.f32 1.5, %v3867
    %v3869 = vmul.f32 %v3864, %v3868
    %vm3870 = vweird.f32 %v3803
    %vm3871 = vweird.f32 %v3864
    %vm3872 = vmor %vm3870, %vm3871
    %v3873 = vsel %vm3872, %v3864, %v3869
    %v3874 = vmul.f32 %v3755, %v3813
    %v3875 = vmul.f32 %v3756, %v3823
    %v3876 = vmul.f32 %v3757, %v3833
    %v3877 = vmul.f32 %v3758, %v3843
    %v3878 = vmul.f32 %v3759, %v3853
    %v3879 = vmul.f32 %v3760, %v3863
    %v3880 = vmul.f32 %v3761, %v3873
    %v3881 = vperm.slane %v2165, 0
    %v3882 = vmul.f32 %v3874, %v3881
    %v3883 = vmul.f32 %v3875, %v3881
    %v3884 = vmul.f32 %v3876, %v3881
    %v3885 = vmul.f32 %v3877, %v3881
    %v3886 = vmul.f32 %v3878, %v3881
    %v3887 = vmul.f32 %v3879, %v3881
    %v3888 = vmul.f32 %v3880, %v3881
    %v3889 = vperm.slane %v2166, 0
    %v3890 = vadd.f32 %v3882, %v3889
    %v3891 = vadd.f32 %v3883, %v3889
    %v3892 = vadd.f32 %v3884, %v3889
    %v3893 = vadd.f32 %v3885, %v3889
    %v3894 = vadd.f32 %v3886, %v3889
    %v3895 = vadd.f32 %v3887, %v3889
    %v3896 = vadd.f32 %v3888, %v3889
    %v3897 = vperm.slane %v2167, 0
    %v3899 = vsel %vm282, %v3890, 0
    %v3902 = vsel %vm282, %v3891, 0
    %v3905 = vsel %vm282, %v3892, 0
    %v3908 = vsel %vm282, %v3893, 0
    %v3911 = vsel %vm282, %v3894, 0
    %v3914 = vsel %vm282, %v3895, 0
    %v3917 = vsel %vm282, %v3896, 0
    %3919 = vmatpush.msra.mxu0 0.0
    %3920 = vmatpush.msra.mxu0 0.0
    %3921 = vmatpush.msra.mxu0 0.0
    %3922 = vmatpush.msra.mxu0 0.0
    %3923 = vmatpush.msra.mxu0 0.0
    %3924 = vmatpush.msra.mxu0 0.0
    %3925 = vmatpush.msra.mxu0 0.0
    %3926 = vmatpush.msra.mxu0 0.0
    %3927 = vmatpush.msra.mxu0 0.0
    %3928 = vmatpush.msra.mxu0 0.0
    %3929 = vmatpush.msra.mxu0 0.0
    %3930 = vmatpush.msra.mxu0 0.0
    %3931 = vmatpush.msra.mxu0 %v2188
    %3932 = vmatpush.msra.mxu0 %v2187
    %3933 = vmatpush.msra.mxu0 %v2186
    %3934 = vmatpush.msra.mxu0 %v2185
    %3935 = vmatmul.f32.gmra.mxu0 %v3899
    %v3936 = vpop.f32.mrf.mxu0
    %v3937 = vadd.f32 %v3897, %v3936
    %3938 = vmatmul.f32.gmra.mxu0 %v3902
    %v3939 = vpop.f32.mrf.mxu0
    %v3940 = vadd.f32 %v3897, %v3939
    %3941 = vmatmul.f32.gmra.mxu0 %v3905
    %v3942 = vpop.f32.mrf.mxu0
    %v3943 = vadd.f32 %v3897, %v3942
    %3944 = vmatmul.f32.gmra.mxu0 %v3908
    %v3945 = vpop.f32.mrf.mxu0
    %v3946 = vadd.f32 %v3897, %v3945
    %3947 = vmatmul.f32.gmra.mxu0 %v3911
    %v3948 = vpop.f32.mrf.mxu0
    %v3949 = vadd.f32 %v3897, %v3948
    %3950 = vmatmul.f32.gmra.mxu0 %v3914
    %v3951 = vpop.f32.mrf.mxu0
    %v3952 = vadd.f32 %v3897, %v3951
    %3953 = vmatmul.f32.gmra.mxu0 %v3917
    %v3954 = vpop.f32.mrf.mxu0
    %v3955 = vadd.f32 %v3897, %v3954
    %3956 = vdwg.mxu0
    %v3957 = vmul.f32 %v3937, 0.5
    %v3958 = vmul.f32 %v3940, 0.5
    %v3959 = vmul.f32 %v3943, 0.5
    %v3960 = vmul.f32 %v3946, 0.5
    %v3961 = vmul.f32 %v3949, 0.5
    %v3962 = vmul.f32 %v3952, 0.5
    %v3963 = vmul.f32 %v3955, 0.5
    %v3964 = vmul.f32 %v3937, 0.044715
    %v3965 = vmul.f32 %v3940, 0.044715
    %v3966 = vmul.f32 %v3943, 0.044715
    %v3967 = vmul.f32 %v3946, 0.044715
    %v3968 = vmul.f32 %v3949, 0.044715
    %v3969 = vmul.f32 %v3952, 0.044715
    %v3970 = vmul.f32 %v3955, 0.044715
    %v3971 = vmul.f32 %v3964, %v3937
    %v3972 = vmul.f32 %v3965, %v3940
    %v3973 = vmul.f32 %v3966, %v3943
    %v3974 = vmul.f32 %v3967, %v3946
    %v3975 = vmul.f32 %v3968, %v3949
    %v3976 = vmul.f32 %v3969, %v3952
    %v3977 = vmul.f32 %v3970, %v3955
    %v3978 = vmul.f32 %v3971, %v3937
    %v3979 = vmul.f32 %v3972, %v3940
    %v3980 = vmul.f32 %v3973, %v3943
    %v3981 = vmul.f32 %v3974, %v3946
    %v3982 = vmul.f32 %v3975, %v3949
    %v3983 = vmul.f32 %v3976, %v3952
    %v3984 = vmul.f32 %v3977, %v3955
    %v3985 = vadd.f32 %v3937, %v3978
    %v3986 = vadd.f32 %v3940, %v3979
    %v3987 = vadd.f32 %v3943, %v3980
    %v3988 = vadd.f32 %v3946, %v3981
    %v3989 = vadd.f32 %v3949, %v3982
    %v3990 = vadd.f32 %v3952, %v3983
    %v3991 = vadd.f32 %v3955, %v3984
    %v3992 = vmul.f32 %v3985, 0.7978846
    %v3993 = vmul.f32 %v3986, 0.7978846
    %v3994 = vmul.f32 %v3987, 0.7978846
    %v3995 = vmul.f32 %v3988, 0.7978846
    %v3996 = vmul.f32 %v3989, 0.7978846
    %v3997 = vmul.f32 %v3990, 0.7978846
    %v3998 = vmul.f32 %v3991, 0.7978846
    %v3999 = vtanh.pop %v3992
    %v4000 = vtanh.pop %v3993
    %v4001 = vtanh.pop %v3994
    %v4002 = vtanh.pop %v3995
    %v4003 = vtanh.pop %v3996
    %v4004 = vtanh.pop %v3997
    %v4005 = vtanh.pop %v3998
    %v4006 = vadd.f32 %v3999, 1.0
    %v4007 = vadd.f32 %v4000, 1.0
    %v4008 = vadd.f32 %v4001, 1.0
    %v4009 = vadd.f32 %v4002, 1.0
    %v4010 = vadd.f32 %v4003, 1.0
    %v4011 = vadd.f32 %v4004, 1.0
    %v4012 = vadd.f32 %v4005, 1.0
    %v4013 = vmul.f32 %v3957, %v4006
    %v4014 = vmul.f32 %v3958, %v4007
    %v4015 = vmul.f32 %v3959, %v4008
    %v4016 = vmul.f32 %v3960, %v4009
    %v4017 = vmul.f32 %v3961, %v4010
    %v4018 = vmul.f32 %v3962, %v4011
    %v4019 = vmul.f32 %v3963, %v4012
    %4020 = vmatpush.msra.mxu0 %v2204
    %4021 = vmatpush.msra.mxu0 %v2203
    %4022 = vmatpush.msra.mxu0 %v2202
    %4023 = vmatpush.msra.mxu0 %v2201
    %4024 = vmatpush.msra.mxu0 %v2200
    %4025 = vmatpush.msra.mxu0 %v2199
    %4026 = vmatpush.msra.mxu0 %v2198
    %4027 = vmatpush.msra.mxu0 %v2197
    %4028 = vmatpush.msra.mxu0 %v2196
    %4029 = vmatpush.msra.mxu0 %v2195
    %4030 = vmatpush.msra.mxu0 %v2194
    %4031 = vmatpush.msra.mxu0 %v2193
    %4032 = vmatpush.msra.mxu0 %v2192
    %4033 = vmatpush.msra.mxu0 %v2191
    %4034 = vmatpush.msra.mxu0 %v2190
    %4035 = vmatpush.msra.mxu0 %v2189
    %4036 = vmatmul.f32.gmra.mxu0 %v4013
    %v4037 = vpop.f32.mrf.mxu0
    %v4038 = vadd.f32 0.0, %v4037
    %4039 = vmatmul.f32.gmra.mxu0 %v4014
    %v4040 = vpop.f32.mrf.mxu0
    %v4041 = vadd.f32 0.0, %v4040
    %4042 = vmatmul.f32.gmra.mxu0 %v4015
    %v4043 = vpop.f32.mrf.mxu0
    %v4044 = vadd.f32 0.0, %v4043
    %4045 = vmatmul.f32.gmra.mxu0 %v4016
    %v4046 = vpop.f32.mrf.mxu0
    %v4047 = vadd.f32 0.0, %v4046
    %4048 = vmatmul.f32.gmra.mxu0 %v4017
    %v4049 = vpop.f32.mrf.mxu0
    %v4050 = vadd.f32 0.0, %v4049
    %4051 = vmatmul.f32.gmra.mxu0 %v4018
    %v4052 = vpop.f32.mrf.mxu0
    %v4053 = vadd.f32 0.0, %v4052
    %4054 = vmatmul.f32.gmra.mxu0 %v4019
    %v4055 = vpop.f32.mrf.mxu0
    %v4056 = vadd.f32 0.0, %v4055
    %4057 = vdwg.mxu0
    %v4058 = vadd.f32 %v3720, %v4038
    %v4059 = vadd.f32 %v3721, %v4041
    %v4060 = vadd.f32 %v3722, %v4044
    %v4061 = vadd.f32 %v3723, %v4047
    %v4062 = vadd.f32 %v3724, %v4050
    %v4063 = vadd.f32 %v3725, %v4053
    %v4064 = vadd.f32 %v3726, %v4056
    %v4065 = vperm.slane %v2168, 0
    %v4066 = vadd.f32 %v4058, %v4065
    %v4067 = vadd.f32 %v4059, %v4065
    %v4068 = vadd.f32 %v4060, %v4065
    %v4069 = vadd.f32 %v4061, %v4065
    %v4070 = vadd.f32 %v4062, %v4065
    %v4071 = vadd.f32 %v4063, %v4065
    %v4072 = vadd.f32 %v4064, %v4065
    %v4073 = vld [vmem:[#allocation2 + $0x460] sm:$0x1]
    %v4074 = vld [vmem:[#allocation2 + $0x461] sm:$0x1]
    %v4075 = vsel %vm282, %v4066, 0.0
    %4076 = vadd.xlane.f32.xlu0 %v4075
    %v4077 = vpop.xlane.xlu0 %4076
    %v4078 = vsel %vm282, %v4067, 0.0
    %4079 = vadd.xlane.f32.xlu0 %v4078
    %v4080 = vpop.xlane.xlu0 %4079
    %v4081 = vsel %vm282, %v4068, 0.0
    %4082 = vadd.xlane.f32.xlu0 %v4081
    %v4083 = vpop.xlane.xlu0 %4082
    %v4084 = vsel %vm282, %v4069, 0.0
    %4085 = vadd.xlane.f32.xlu0 %v4084
    %v4086 = vpop.xlane.xlu0 %4085
    %v4087 = vsel %vm282, %v4070, 0.0
    %4088 = vadd.xlane.f32.xlu0 %v4087
    %v4089 = vpop.xlane.xlu0 %4088
    %v4090 = vsel %vm282, %v4071, 0.0
    %4091 = vadd.xlane.f32.xlu0 %v4090
    %v4092 = vpop.xlane.xlu0 %4091
    %v4093 = vsel %vm282, %v4072, 0.0
    %4094 = vadd.xlane.f32.xlu0 %v4093
    %v4095 = vpop.xlane.xlu0 %4094
    %v4096 = vmul.f32 %v4077, %v310
    %v4097 = vmul.f32 %v4080, %v310
    %v4098 = vmul.f32 %v4083, %v310
    %v4099 = vmul.f32 %v4086, %v310
    %v4100 = vmul.f32 %v4089, %v310
    %v4101 = vmul.f32 %v4092, %v310
    %v4102 = vmul.f32 %v4095, %v310
    %v4103 = vsub.f32 %v4066, %v4096
    %v4104 = vsub.f32 %v4067, %v4097
    %v4105 = vsub.f32 %v4068, %v4098
    %v4106 = vsub.f32 %v4069, %v4099
    %v4107 = vsub.f32 %v4070, %v4100
    %v4108 = vsub.f32 %v4071, %v4101
    %v4109 = vsub.f32 %v4072, %v4102
    %v4110 = vmul.f32 %v4103, %v4103
    %v4111 = vmul.f32 %v4104, %v4104
    %v4112 = vmul.f32 %v4105, %v4105
    %v4113 = vmul.f32 %v4106, %v4106
    %v4114 = vmul.f32 %v4107, %v4107
    %v4115 = vmul.f32 %v4108, %v4108
    %v4116 = vmul.f32 %v4109, %v4109
    %v4117 = vsel %vm282, %v4110, 0.0
    %4118 = vadd.xlane.f32.xlu0 %v4117
    %v4119 = vpop.xlane.xlu0 %4118
    %v4120 = vsel %vm282, %v4111, 0.0
    %4121 = vadd.xlane.f32.xlu0 %v4120
    %v4122 = vpop.xlane.xlu0 %4121
    %v4123 = vsel %vm282, %v4112, 0.0
    %4124 = vadd.xlane.f32.xlu0 %v4123
    %v4125 = vpop.xlane.xlu0 %4124
    %v4126 = vsel %vm282, %v4113, 0.0
    %4127 = vadd.xlane.f32.xlu0 %v4126
    %v4128 = vpop.xlane.xlu0 %4127
    %v4129 = vsel %vm282, %v4114, 0.0
    %4130 = vadd.xlane.f32.xlu0 %v4129
    %v4131 = vpop.xlane.xlu0 %4130
    %v4132 = vsel %vm282, %v4115, 0.0
    %4133 = vadd.xlane.f32.xlu0 %v4132
    %v4134 = vpop.xlane.xlu0 %4133
    %v4135 = vsel %vm282, %v4116, 0.0
    %4136 = vadd.xlane.f32.xlu0 %v4135
    %v4137 = vpop.xlane.xlu0 %4136
    %v4138 = vmul.f32 %v4119, %v310
    %v4139 = vmul.f32 %v4122, %v310
    %v4140 = vmul.f32 %v4125, %v310
    %v4141 = vmul.f32 %v4128, %v310
    %v4142 = vmul.f32 %v4131, %v310
    %v4143 = vmul.f32 %v4134, %v310
    %v4144 = vmul.f32 %v4137, %v310
    %v4145 = vadd.f32 %v4138, 1e-05
    %v4146 = vadd.f32 %v4139, 1e-05
    %v4147 = vadd.f32 %v4140, 1e-05
    %v4148 = vadd.f32 %v4141, 1e-05
    %v4149 = vadd.f32 %v4142, 1e-05
    %v4150 = vadd.f32 %v4143, 1e-05
    %v4151 = vadd.f32 %v4144, 1e-05
    %v4152 = vrsqrt.pop %v4145
    %v4153 = vmul.f32 %v4152, %v4145
    %v4154 = vmul.f32 %v4153, %v4152
    %v4155 = vmul.f32 0.5, %v4154
    %v4156 = vsub.f32 1.5, %v4155
    %v4157 = vmul.f32 %v4152, %v4156
    %vm4158 = vweird.f32 %v4145
    %vm4159 = vweird.f32 %v4152
    %vm4160 = vmor %vm4158, %vm4159
    %v4161 = vsel %vm4160, %v4152, %v4157
    %v4162 = vrsqrt.pop %v4146
    %v4163 = vmul.f32 %v4162, %v4146
    %v4164 = vmul.f32 %v4163, %v4162
    %v4165 = vmul.f32 0.5, %v4164
    %v4166 = vsub.f32 1.5, %v4165
    %v4167 = vmul.f32 %v4162, %v4166
    %vm4168 = vweird.f32 %v4146
    %vm4169 = vweird.f32 %v4162
    %vm4170 = vmor %vm4168, %vm4169
    %v4171 = vsel %vm4170, %v4162, %v4167
    %v4172 = vrsqrt.pop %v4147
    %v4173 = vmul.f32 %v4172, %v4147
    %v4174 = vmul.f32 %v4173, %v4172
    %v4175 = vmul.f32 0.5, %v4174
    %v4176 = vsub.f32 1.5, %v4175
    %v4177 = vmul.f32 %v4172, %v4176
    %vm4178 = vweird.f32 %v4147
    %vm4179 = vweird.f32 %v4172
    %vm4180 = vmor %vm4178, %vm4179
    %v4181 = vsel %vm4180, %v4172, %v4177
    %v4182 = vrsqrt.pop %v4148
    %v4183 = vmul.f32 %v4182, %v4148
    %v4184 = vmul.f32 %v4183, %v4182
    %v4185 = vmul.f32 0.5, %v4184
    %v4186 = vsub.f32 1.5, %v4185
    %v4187 = vmul.f32 %v4182, %v4186
    %vm4188 = vweird.f32 %v4148
    %vm4189 = vweird.f32 %v4182
    %vm4190 = vmor %vm4188, %vm4189
    %v4191 = vsel %vm4190, %v4182, %v4187
    %v4192 = vrsqrt.pop %v4149
    %v4193 = vmul.f32 %v4192, %v4149
    %v4194 = vmul.f32 %v4193, %v4192
    %v4195 = vmul.f32 0.5, %v4194
    %v4196 = vsub.f32 1.5, %v4195
    %v4197 = vmul.f32 %v4192, %v4196
    %vm4198 = vweird.f32 %v4149
    %vm4199 = vweird.f32 %v4192
    %vm4200 = vmor %vm4198, %vm4199
    %v4201 = vsel %vm4200, %v4192, %v4197
    %v4202 = vrsqrt.pop %v4150
    %v4203 = vmul.f32 %v4202, %v4150
    %v4204 = vmul.f32 %v4203, %v4202
    %v4205 = vmul.f32 0.5, %v4204
    %v4206 = vsub.f32 1.5, %v4205
    %v4207 = vmul.f32 %v4202, %v4206
    %vm4208 = vweird.f32 %v4150
    %vm4209 = vweird.f32 %v4202
    %vm4210 = vmor %vm4208, %vm4209
    %v4211 = vsel %vm4210, %v4202, %v4207
    %v4212 = vrsqrt.pop %v4151
    %v4213 = vmul.f32 %v4212, %v4151
    %v4214 = vmul.f32 %v4213, %v4212
    %v4215 = vmul.f32 0.5, %v4214
    %v4216 = vsub.f32 1.5, %v4215
    %v4217 = vmul.f32 %v4212, %v4216
    %vm4218 = vweird.f32 %v4151
    %vm4219 = vweird.f32 %v4212
    %vm4220 = vmor %vm4218, %vm4219
    %v4221 = vsel %vm4220, %v4212, %v4217
    %v4222 = vmul.f32 %v4103, %v4161
    %v4223 = vmul.f32 %v4104, %v4171
    %v4224 = vmul.f32 %v4105, %v4181
    %v4225 = vmul.f32 %v4106, %v4191
    %v4226 = vmul.f32 %v4107, %v4201
    %v4227 = vmul.f32 %v4108, %v4211
    %v4228 = vmul.f32 %v4109, %v4221
    %v4229 = vperm.slane %v4073, 0
    %v4230 = vmul.f32 %v4222, %v4229
    %v4231 = vmul.f32 %v4223, %v4229
    %v4232 = vmul.f32 %v4224, %v4229
    %v4233 = vmul.f32 %v4225, %v4229
    %v4234 = vmul.f32 %v4226, %v4229
    %v4235 = vmul.f32 %v4227, %v4229
    %v4236 = vmul.f32 %v4228, %v4229
    %v4237 = vperm.slane %v4074, 0
    %v4238 = vadd.f32 %v4230, %v4237
    %v4239 = vadd.f32 %v4231, %v4237
    %v4240 = vadd.f32 %v4232, %v4237
    %v4241 = vadd.f32 %v4233, %v4237
    %v4242 = vadd.f32 %v4234, %v4237
    %v4243 = vadd.f32 %v4235, %v4237
    %v4244 = vadd.f32 %v4236, %v4237
    %v4245 = vld [vmem:[#allocation2 + $0x548] sm:$0x1]
    %v4246 = vperm.slane %v4245, 0
    %v4247 = vld [vmem:[#allocation2 + $0x468] sm:$0xff]
    %v4248 = vld [vmem:[#allocation2 + $0x470] sm:$0xff]
    %v4249 = vld [vmem:[#allocation2 + $0x478] sm:$0xff]
    %v4250 = vld [vmem:[#allocation2 + $0x480] sm:$0xff]
    %v4252 = vsel %vm282, %v4238, 0
    %4254 = vmatpush.msra.mxu0 0.0
    %4255 = vmatpush.msra.mxu0 0.0
    %4256 = vmatpush.msra.mxu0 0.0
    %4257 = vmatpush.msra.mxu0 0.0
    %4258 = vmatpush.msra.mxu0 0.0
    %4259 = vmatpush.msra.mxu0 0.0
    %4260 = vmatpush.msra.mxu0 0.0
    %4261 = vmatpush.msra.mxu0 0.0
    %4262 = vmatpush.msra.mxu0 0.0
    %4263 = vmatpush.msra.mxu0 0.0
    %4264 = vmatpush.msra.mxu0 0.0
    %4265 = vmatpush.msra.mxu0 0.0
    %4266 = vmatpush.msra.mxu0 %v4250
    %4267 = vmatpush.msra.mxu0 %v4249
    %4268 = vmatpush.msra.mxu0 %v4248
    %4269 = vmatpush.msra.mxu0 %v4247
    %4270 = vmatmul.f32.gmra.mxu0 %v4252
    %v4271 = vpop.f32.mrf.mxu0
    %v4272 = vadd.f32 0.0, %v4271
    %4273 = vdwg.mxu0
    %v4274 = vadd.f32 %v4246, %v4272
    %v4275 = vld [vmem:[#allocation2 + $0x488] sm:$0xff]
    %v4276 = vld [vmem:[#allocation2 + $0x490] sm:$0xff]
    %v4277 = vld [vmem:[#allocation2 + $0x498] sm:$0xff]
    %v4278 = vld [vmem:[#allocation2 + $0x4a0] sm:$0xff]
    %v4280 = vsel %vm282, %v4239, 0
    %4282 = vmatpush.msra.mxu0 0.0
    %4283 = vmatpush.msra.mxu0 0.0
    %4284 = vmatpush.msra.mxu0 0.0
    %4285 = vmatpush.msra.mxu0 0.0
    %4286 = vmatpush.msra.mxu0 0.0
    %4287 = vmatpush.msra.mxu0 0.0
    %4288 = vmatpush.msra.mxu0 0.0
    %4289 = vmatpush.msra.mxu0 0.0
    %4290 = vmatpush.msra.mxu0 0.0
    %4291 = vmatpush.msra.mxu0 0.0
    %4292 = vmatpush.msra.mxu0 0.0
    %4293 = vmatpush.msra.mxu0 0.0
    %4294 = vmatpush.msra.mxu0 %v4278
    %4295 = vmatpush.msra.mxu0 %v4277
    %4296 = vmatpush.msra.mxu0 %v4276
    %4297 = vmatpush.msra.mxu0 %v4275
    %4298 = vmatmul.f32.gmra.mxu0 %v4280
    %v4299 = vpop.f32.mrf.mxu0
    %v4300 = vadd.f32 0.0, %v4299
    %4301 = vdwg.mxu0
    %v4302 = vadd.f32 %v4274, %v4300
    %v4303 = vld [vmem:[#allocation2 + $0x4a8] sm:$0xff]
    %v4304 = vld [vmem:[#allocation2 + $0x4b0] sm:$0xff]
    %v4305 = vld [vmem:[#allocation2 + $0x4b8] sm:$0xff]
    %v4306 = vld [vmem:[#allocation2 + $0x4c0] sm:$0xff]
    %v4308 = vsel %vm282, %v4240, 0
    %4310 = vmatpush.msra.mxu0 0.0
    %4311 = vmatpush.msra.mxu0 0.0
    %4312 = vmatpush.msra.mxu0 0.0
    %4313 = vmatpush.msra.mxu0 0.0
    %4314 = vmatpush.msra.mxu0 0.0
    %4315 = vmatpush.msra.mxu0 0.0
    %4316 = vmatpush.msra.mxu0 0.0
    %4317 = vmatpush.msra.mxu0 0.0
    %4318 = vmatpush.msra.mxu0 0.0
    %4319 = vmatpush.msra.mxu0 0.0
    %4320 = vmatpush.msra.mxu0 0.0
    %4321 = vmatpush.msra.mxu0 0.0
    %4322 = vmatpush.msra.mxu0 %v4306
    %4323 = vmatpush.msra.mxu0 %v4305
    %4324 = vmatpush.msra.mxu0 %v4304
    %4325 = vmatpush.msra.mxu0 %v4303
    %4326 = vmatmul.f32.gmra.mxu0 %v4308
    %v4327 = vpop.f32.mrf.mxu0
    %v4328 = vadd.f32 0.0, %v4327
    %4329 = vdwg.mxu0
    %v4330 = vadd.f32 %v4302, %v4328
    %v4331 = vld [vmem:[#allocation2 + $0x4c8] sm:$0xff]
    %v4332 = vld [vmem:[#allocation2 + $0x4d0] sm:$0xff]
    %v4333 = vld [vmem:[#allocation2 + $0x4d8] sm:$0xff]
    %v4334 = vld [vmem:[#allocation2 + $0x4e0] sm:$0xff]
    %v4336 = vsel %vm282, %v4241, 0
    %4338 = vmatpush.msra.mxu0 0.0
    %4339 = vmatpush.msra.mxu0 0.0
    %4340 = vmatpush.msra.mxu0 0.0
    %4341 = vmatpush.msra.mxu0 0.0
    %4342 = vmatpush.msra.mxu0 0.0
    %4343 = vmatpush.msra.mxu0 0.0
    %4344 = vmatpush.msra.mxu0 0.0
    %4345 = vmatpush.msra.mxu0 0.0
    %4346 = vmatpush.msra.mxu0 0.0
    %4347 = vmatpush.msra.mxu0 0.0
    %4348 = vmatpush.msra.mxu0 0.0
    %4349 = vmatpush.msra.mxu0 0.0
    %4350 = vmatpush.msra.mxu0 %v4334
    %4351 = vmatpush.msra.mxu0 %v4333
    %4352 = vmatpush.msra.mxu0 %v4332
    %4353 = vmatpush.msra.mxu0 %v4331
    %4354 = vmatmul.f32.gmra.mxu0 %v4336
    %v4355 = vpop.f32.mrf.mxu0
    %v4356 = vadd.f32 0.0, %v4355
    %4357 = vdwg.mxu0
    %v4358 = vadd.f32 %v4330, %v4356
    %v4359 = vld [vmem:[#allocation2 + $0x4e8] sm:$0xff]
    %v4360 = vld [vmem:[#allocation2 + $0x4f0] sm:$0xff]
    %v4361 = vld [vmem:[#allocation2 + $0x4f8] sm:$0xff]
    %v4362 = vld [vmem:[#allocation2 + $0x500] sm:$0xff]
    %v4364 = vsel %vm282, %v4242, 0
    %4366 = vmatpush.msra.mxu0 0.0
    %4367 = vmatpush.msra.mxu0 0.0
    %4368 = vmatpush.msra.mxu0 0.0
    %4369 = vmatpush.msra.mxu0 0.0
    %4370 = vmatpush.msra.mxu0 0.0
    %4371 = vmatpush.msra.mxu0 0.0
    %4372 = vmatpush.msra.mxu0 0.0
    %4373 = vmatpush.msra.mxu0 0.0
    %4374 = vmatpush.msra.mxu0 0.0
    %4375 = vmatpush.msra.mxu0 0.0
    %4376 = vmatpush.msra.mxu0 0.0
    %4377 = vmatpush.msra.mxu0 0.0
    %4378 = vmatpush.msra.mxu0 %v4362
    %4379 = vmatpush.msra.mxu0 %v4361
    %4380 = vmatpush.msra.mxu0 %v4360
    %4381 = vmatpush.msra.mxu0 %v4359
    %4382 = vmatmul.f32.gmra.mxu0 %v4364
    %v4383 = vpop.f32.mrf.mxu0
    %v4384 = vadd.f32 0.0, %v4383
    %4385 = vdwg.mxu0
    %v4386 = vadd.f32 %v4358, %v4384
    %v4387 = vld [vmem:[#allocation2 + $0x508] sm:$0xff]
    %v4388 = vld [vmem:[#allocation2 + $0x510] sm:$0xff]
    %v4389 = vld [vmem:[#allocation2 + $0x518] sm:$0xff]
    %v4390 = vld [vmem:[#allocation2 + $0x520] sm:$0xff]
    %v4392 = vsel %vm282, %v4243, 0
    %4394 = vmatpush.msra.mxu0 0.0
    %4395 = vmatpush.msra.mxu0 0.0
    %4396 = vmatpush.msra.mxu0 0.0
    %4397 = vmatpush.msra.mxu0 0.0
    %4398 = vmatpush.msra.mxu0 0.0
    %4399 = vmatpush.msra.mxu0 0.0
    %4400 = vmatpush.msra.mxu0 0.0
    %4401 = vmatpush.msra.mxu0 0.0
    %4402 = vmatpush.msra.mxu0 0.0
    %4403 = vmatpush.msra.mxu0 0.0
    %4404 = vmatpush.msra.mxu0 0.0
    %4405 = vmatpush.msra.mxu0 0.0
    %4406 = vmatpush.msra.mxu0 %v4390
    %4407 = vmatpush.msra.mxu0 %v4389
    %4408 = vmatpush.msra.mxu0 %v4388
    %4409 = vmatpush.msra.mxu0 %v4387
    %4410 = vmatmul.f32.gmra.mxu0 %v4392
    %v4411 = vpop.f32.mrf.mxu0
    %v4412 = vadd.f32 0.0, %v4411
    %4413 = vdwg.mxu0
    %v4414 = vadd.f32 %v4386, %v4412
    %v4415 = vld [vmem:[#allocation2 + $0x528] sm:$0xff]
    %v4416 = vld [vmem:[#allocation2 + $0x530] sm:$0xff]
    %v4417 = vld [vmem:[#allocation2 + $0x538] sm:$0xff]
    %v4418 = vld [vmem:[#allocation2 + $0x540] sm:$0xff]
    %v4420 = vsel %vm282, %v4244, 0
    %4422 = vmatpush.msra.mxu0 0.0
    %4423 = vmatpush.msra.mxu0 0.0
    %4424 = vmatpush.msra.mxu0 0.0
    %4425 = vmatpush.msra.mxu0 0.0
    %4426 = vmatpush.msra.mxu0 0.0
    %4427 = vmatpush.msra.mxu0 0.0
    %4428 = vmatpush.msra.mxu0 0.0
    %4429 = vmatpush.msra.mxu0 0.0
    %4430 = vmatpush.msra.mxu0 0.0
    %4431 = vmatpush.msra.mxu0 0.0
    %4432 = vmatpush.msra.mxu0 0.0
    %4433 = vmatpush.msra.mxu0 0.0
    %4434 = vmatpush.msra.mxu0 %v4418
    %4435 = vmatpush.msra.mxu0 %v4417
    %4436 = vmatpush.msra.mxu0 %v4416
    %4437 = vmatpush.msra.mxu0 %v4415
    %4438 = vmatmul.f32.gmra.mxu0 %v4420
    %v4439 = vpop.f32.mrf.mxu0
    %v4440 = vadd.f32 0.0, %v4439
    %4441 = vdwg.mxu0
    %v4442 = vadd.f32 %v4414, %v4440
    %v4443 = vmul.f32 %v4442, %v62
    %v4444 = vadd.f32 %v4443, %v43
    %4445 = vst [vmem:[#allocation5] sm:$0xff] %v4444
    // Predicated region
    $region18: #{gpt4ts_forward_pallas.1} parent=1 // pred_check
      _
    $region19: #{gpt4ts_forward_pallas.1} parent=1 // pred_check_branch
      %4447 = sbr.rel (0) target = $region21
    $region20: #{gpt4ts_forward_pallas.1} parent=1 // pred_region
      %4449 = vsyncadd [#allocation4], 0
      %s4451 = sshll.u32 [#allocation5], 4
      %s4452 = int_to_ptr.vmem [resolvable:$true] %s4451
      %s4453 = sshll.u32 %s3, 4
      %s4454 = int_to_ptr.hbm [resolvable:$true] %s4453
      %4456 = dma.vmem_to_hbm [thread:$0]  %s4452, 128, %s4454, [#allocation4]
    $region21: #{gpt4ts_forward_pallas.1} parent=1 // pred_fallthru
      _
    // Predicated region
    $region22: #{gpt4ts_forward_pallas.1} parent=1 // pred_check
      _
    $region23: #{gpt4ts_forward_pallas.1} parent=1 // pred_check_branch
      %4458 = sbr.rel (0) target = $region25
    $region24: #{gpt4ts_forward_pallas.1} parent=1 // pred_region
      %4460 = dma.done [#allocation4], 128
    $region25: #{gpt4ts_forward_pallas.1} parent=1 // pred_fallthru
      _
    %4461 = vsyncpa [#allocation3], 1
    %4462 = vsyncpa [#allocation4], 1

</llo_original>
